<compile_context>
chip_gen: v5e
topology: v5e:2x2
jax: 0.10.0
libtpu: 0.0.40
codegen_flags: <defaults>
</compile_context>

<pallas_src>
import functools

import jax
import jax.numpy as jnp
from jax.experimental import pallas as pl
from jax.experimental.pallas import tpu as pltpu

# ----- small synthetic config (stands in for DistilBERT) -----
B, S, H = 2, 8, 32            # batch, seq, hidden_size
NUM_HEADS = 2
DH = H // NUM_HEADS
FFN = 4 * H                   # 128 -> exactly one lane tile wide
VOCAB = 100
MAX_POS = 64
NUM_LAYERS = 2
CLS_HIDDEN = 512              # classifier: hidden -> 512 -> 512 -> 2 (as in the module)
NUM_LABELS = 2
CLS_PAD = 128                 # lane-dense padded logits slab
LN_EPS = 1e-12


# ---------------------------------------------------------------------------
# In-kernel helpers
# ---------------------------------------------------------------------------
def _ln(x, g, b):
    mean = jnp.mean(x, axis=-1, keepdims=True)
    xc = x - mean
    var = jnp.mean(xc * xc, axis=-1, keepdims=True)
    return xc * jax.lax.rsqrt(var + LN_EPS) * g + b


# ---------------------------------------------------------------------------
# Fully fused kernel: grid = (NUM_LAYERS,), activation resident in VMEM scratch,
# classifier head executed on the last grid step.
# ---------------------------------------------------------------------------
def _bert_kernel(h_in_ref, eg_ref, eb_ref,
                 wqkv_ref, bqkv_ref, wo_ref, bo_ref,
                 ln1g_ref, ln1b_ref,
                 w1_ref, b1_ref, w2_ref, b2_ref,
                 ln2g_ref, ln2b_ref,
                 cw1_ref, cb1_ref, cw2_ref, cb2_ref, cw3_ref, cb3_ref,
                 logits_ref, h_sc,
                 *, batch, seq, num_heads):
    hidden = h_in_ref.shape[-1]
    dh = hidden // num_heads
    scale = 1.0 / (dh ** 0.5)

    # Layer 0: pull embeddings into the resident scratch and apply embedding LayerNorm.
    @pl.when(pl.program_id(0) == 0)
    def _():
        h_sc[...] = _ln(h_in_ref[...].astype(jnp.float32), eg_ref[...], eb_ref[...])

    x = h_sc[...]                                     # [B*S, H], lives in VMEM across layers

    # --- fused QKV projection: one lane-dense [H, 3H] matmul ---
    qkv = jnp.dot(x, wqkv_ref[...], preferred_element_type=jnp.float32) + bqkv_ref[...]

    # --- multi-head self-attention ---
    # TODO(synk): attention_mask from the tokenizer is assumed all-ones (no padding mask).
    wo = wo_ref[...]                                  # [H, H]
    attn_out = bo_ref[...]                            # start from output-proj bias, broadcasts
    for hd in range(num_heads):
        lo = hd * dh
        q = qkv[:, lo:lo + dh].reshape(batch, seq, dh)
        k = qkv[:, hidden + lo:hidden + lo + dh].reshape(batch, seq, dh)
        v = qkv[:, 2 * hidden + lo:2 * hidden + lo + dh].reshape(batch, seq, dh)
        # batched over all batches in one einsum; no explicit k.T materialized
        s = jnp.einsum('bqd,bkd->bqk', q, k, preferred_element_type=jnp.float32) * scale
        m = jnp.max(s, axis=-1, keepdims=True)
        p = jnp.exp(s - m)
        p = p * pl.reciprocal(jnp.sum(p, axis=-1, keepdims=True), approx=True)
        ctx = jnp.einsum('bqk,bkd->bqd', p, v, preferred_element_type=jnp.float32)
        # fold the output projection per head (avoids an in-kernel head concat):
        attn_out = attn_out + jnp.dot(ctx.reshape(batch * seq, dh),
                                      wo[lo:lo + dh, :],
                                      preferred_element_type=jnp.float32)

    # residual + LayerNorm 1 (fused)
    h1 = _ln(x + attn_out, ln1g_ref[...], ln1b_ref[...])

    # --- feed-forward; the FFN intermediate never leaves VMEM/vregs ---
    ff = jnp.dot(h1, w1_ref[...], preferred_element_type=jnp.float32) + b1_ref[...]
    # TODO(synk): HF DistilBERT uses exact (erf) GELU; tanh approximation kept here.
    ff = jax.nn.gelu(ff, approximate=True)
    ff = jnp.dot(ff, w2_ref[...], preferred_element_type=jnp.float32) + b2_ref[...]

    # residual + LayerNorm 2 (fused)
    h2 = _ln(h1 + ff, ln2g_ref[...], ln2b_ref[...])
    h_sc[...] = h2                                    # carry to next layer

    # --- classifier head, only on the last layer; sole HBM writeback of the kernel ---
    @pl.when(pl.program_id(0) == pl.num_programs(0) - 1)
    def _():
        cls_tok = h2.reshape(batch, seq, hidden)[:, 0, :]          # [B, H] ([CLS] rows)
        z = jnp.dot(cls_tok, cw1_ref[...], preferred_element_type=jnp.float32) + cb1_ref[...]
        z = jnp.maximum(z, 0.0)
        z = jnp.dot(z, cw2_ref[...], preferred_element_type=jnp.float32) + cb2_ref[...]
        z = jnp.maximum(z, 0.0)
        logits_ref[...] = (jnp.dot(z, cw3_ref[...], preferred_element_type=jnp.float32)
                           + cb3_ref[...]).astype(logits_ref.dtype)


def bert_pallas_forward(x2d, params, *, batch, seq):
    enc = params["enc"]
    cls = params["cls"]
    M, hidden = x2d.shape

    def stacked(a):   # per-layer weight, indexed by the layer grid axis
        return pl.BlockSpec((None,) + tuple(a.shape[1:]), lambda l: (l, 0, 0))

    def const2d(a):   # same block every layer (fetched once, buffer reused)
        return pl.BlockSpec(tuple(a.shape), lambda l: (0, 0))

    kernel = functools.partial(_bert_kernel, batch=batch, seq=seq,
                               num_heads=NUM_HEADS)
    return pl.pallas_call(
        kernel,
        out_shape=jax.ShapeDtypeStruct((batch, CLS_PAD), jnp.float32),
        grid=(NUM_LAYERS,),
        in_specs=[
            const2d(x2d),
            const2d(params["emb_ln_g"]),
            const2d(params["emb_ln_b"]),
            stacked(enc["wqkv"]), stacked(enc["bqkv"]),
            stacked(enc["wo"]), stacked(enc["bo"]),
            stacked(enc["ln1_g"]), stacked(enc["ln1_b"]),
            stacked(enc["w1"]), stacked(enc["b1"]),
            stacked(enc["w2"]), stacked(enc["b2"]),
            stacked(enc["ln2_g"]), stacked(enc["ln2_b"]),
            const2d(cls["w1"]), const2d(cls["b1"]),
            const2d(cls["w2"]), const2d(cls["b2"]),
            const2d(cls["w3_pad"]), const2d(cls["b3_pad"]),
        ],
        out_specs=pl.BlockSpec((batch, CLS_PAD), lambda l: (0, 0)),
        scratch_shapes=[pltpu.VMEM((M, hidden), jnp.float32)],
        compiler_params=pltpu.CompilerParams(dimension_semantics=("arbitrary",)),
    )(x2d, params["emb_ln_g"], params["emb_ln_b"],
      enc["wqkv"], enc["bqkv"], enc["wo"], enc["bo"],
      enc["ln1_g"], enc["ln1_b"], enc["w1"], enc["b1"],
      enc["w2"], enc["b2"], enc["ln2_g"], enc["ln2_b"],
      cls["w1"], cls["b1"], cls["w2"], cls["b2"],
      cls["w3_pad"], cls["b3_pad"])


# ---------------------------------------------------------------------------
# Parameters (deterministic synthetic init), weights stacked per layer
# ---------------------------------------------------------------------------
def init_params(key):
    ks = iter(jax.random.split(key, 64))

    def nrm(shape, scale=0.02):
        return (scale * jax.random.normal(next(ks), shape)).astype(jnp.float32)

    L = NUM_LAYERS
    params = {
        "word_emb": nrm((VOCAB, H)),
        "pos_emb": nrm((MAX_POS, H)),
        "emb_ln_g": jnp.ones((1, H), jnp.float32),
        "emb_ln_b": jnp.zeros((1, H), jnp.float32),
        "enc": {
            "wqkv": nrm((L, H, 3 * H)),                      # fused Q|K|V weights
            "bqkv": jnp.zeros((L, 1, 3 * H), jnp.float32),
            "wo": nrm((L, H, H)),
            "bo": jnp.zeros((L, 1, H), jnp.float32),
            "ln1_g": jnp.ones((L, 1, H), jnp.float32),
            "ln1_b": jnp.zeros((L, 1, H), jnp.float32),
            "w1": nrm((L, H, FFN)),
            "b1": jnp.zeros((L, 1, FFN), jnp.float32),
            "w2": nrm((L, FFN, H)),
            "b2": jnp.zeros((L, 1, H), jnp.float32),
            "ln2_g": jnp.ones((L, 1, H), jnp.float32),
            "ln2_b": jnp.zeros((L, 1, H), jnp.float32),
        },
        "cls": {
            "w1": nrm((H, CLS_HIDDEN)),
            "b1": jnp.zeros((1, CLS_HIDDEN), jnp.float32),
            "w2": nrm((CLS_HIDDEN, CLS_HIDDEN)),
            "b2": jnp.zeros((1, CLS_HIDDEN), jnp.float32),
        },
    }
    # final classifier layer padded to a lane-dense 128-wide slab (sliced in the wrapper)
    w3 = nrm((CLS_HIDDEN, NUM_LABELS))
    b3 = jnp.zeros((NUM_LABELS,), jnp.float32)
    params["cls"]["w3_pad"] = jnp.zeros((CLS_HIDDEN, CLS_PAD), jnp.float32).at[:, :NUM_LABELS].set(w3)
    params["cls"]["b3_pad"] = jnp.zeros((1, CLS_PAD), jnp.float32).at[:, :NUM_LABELS].set(b3)
    return params


# ---------------------------------------------------------------------------
# Forward pass (matches BERT_IMDB.forward semantics)
# ---------------------------------------------------------------------------
def bert_imdb_forward(params, input_ids):
    b, s = input_ids.shape

    # embedding gather + positional add: plain-JAX glue
    x = params["word_emb"][input_ids] + params["pos_emb"][:s][None, :, :]

    # ONE pallas_call: embedding LN + encoder layers + [CLS] slice + classifier head
    logits_slab = bert_pallas_forward(x.reshape(b * s, H).astype(jnp.float32), params,
                                      batch=b, seq=s)                    # [B, 128]
    return logits_slab[:, :NUM_LABELS]                                   # [B, 2]


if __name__ == "__main__":
    key = jax.random.PRNGKey(0)
    k_params, k_ids = jax.random.split(key)

    params = init_params(k_params)
    input_ids = jax.random.randint(k_ids, (B, S), 0, VOCAB, dtype=jnp.int32)

    logits = jax.jit(bert_imdb_forward)(params, input_ids)
    jax.block_until_ready(logits)

    assert logits.shape == (B, NUM_LABELS)
    assert logits.dtype == jnp.float32
    print("KERNEL_OK")
</pallas_src>

<mosaic_0001>
module attributes {stable_mosaic.version = 11 : i64} {
  func.func @_bert_kernel(%arg0: i32, %arg1: memref<16x32xf32, #tpu.memory_space<vmem>>, %arg2: memref<1x32xf32, #tpu.memory_space<vmem>>, %arg3: memref<1x32xf32, #tpu.memory_space<vmem>>, %arg4: memref<1x32x96xf32, #tpu.memory_space<vmem>>, %arg5: memref<1x1x96xf32, #tpu.memory_space<vmem>>, %arg6: memref<1x32x32xf32, #tpu.memory_space<vmem>>, %arg7: memref<1x1x32xf32, #tpu.memory_space<vmem>>, %arg8: memref<1x1x32xf32, #tpu.memory_space<vmem>>, %arg9: memref<1x1x32xf32, #tpu.memory_space<vmem>>, %arg10: memref<1x32x128xf32, #tpu.memory_space<vmem>>, %arg11: memref<1x1x128xf32, #tpu.memory_space<vmem>>, %arg12: memref<1x128x32xf32, #tpu.memory_space<vmem>>, %arg13: memref<1x1x32xf32, #tpu.memory_space<vmem>>, %arg14: memref<1x1x32xf32, #tpu.memory_space<vmem>>, %arg15: memref<1x1x32xf32, #tpu.memory_space<vmem>>, %arg16: memref<32x512xf32, #tpu.memory_space<vmem>>, %arg17: memref<1x512xf32, #tpu.memory_space<vmem>>, %arg18: memref<512x512xf32, #tpu.memory_space<vmem>>, %arg19: memref<1x512xf32, #tpu.memory_space<vmem>>, %arg20: memref<512x128xf32, #tpu.memory_space<vmem>>, %arg21: memref<1x128xf32, #tpu.memory_space<vmem>>, %arg22: memref<2x128xf32, #tpu.memory_space<vmem>>, %arg23: memref<16x32xf32, #tpu.memory_space<vmem>>) attributes {dimension_semantics = [#tpu.dimension_semantics<arbitrary>], iteration_bounds = array<i64: 2>, scalar_prefetch = 0 : i64, scratch_operands = 1 : i64, tpu.core_type = #tpu.core_type<tc>, window_params = [{pipeline_mode = #tpu.pipeline_mode<synchronous>, transform_indices = @transform_0, window_bounds = array<i64: 16, 32>}, {pipeline_mode = #tpu.pipeline_mode<synchronous>, transform_indices = @transform_1, window_bounds = array<i64: 1, 32>}, {pipeline_mode = #tpu.pipeline_mode<synchronous>, transform_indices = @transform_2, window_bounds = array<i64: 1, 32>}, {transform_indices = @transform_3, window_bounds = array<i64: 1, 32, 96>}, {transform_indices = @transform_4, window_bounds = array<i64: 1, 1, 96>}, {transform_indices = @transform_5, window_bounds = array<i64: 1, 32, 32>}, {transform_indices = @transform_6, window_bounds = array<i64: 1, 1, 32>}, {transform_indices = @transform_7, window_bounds = array<i64: 1, 1, 32>}, {transform_indices = @transform_8, window_bounds = array<i64: 1, 1, 32>}, {transform_indices = @transform_9, window_bounds = array<i64: 1, 32, 128>}, {transform_indices = @transform_10, window_bounds = array<i64: 1, 1, 128>}, {transform_indices = @transform_11, window_bounds = array<i64: 1, 128, 32>}, {transform_indices = @transform_12, window_bounds = array<i64: 1, 1, 32>}, {transform_indices = @transform_13, window_bounds = array<i64: 1, 1, 32>}, {transform_indices = @transform_14, window_bounds = array<i64: 1, 1, 32>}, {pipeline_mode = #tpu.pipeline_mode<synchronous>, transform_indices = @transform_15, window_bounds = array<i64: 32, 512>}, {pipeline_mode = #tpu.pipeline_mode<synchronous>, transform_indices = @transform_16, window_bounds = array<i64: 1, 512>}, {pipeline_mode = #tpu.pipeline_mode<synchronous>, transform_indices = @transform_17, window_bounds = array<i64: 512, 512>}, {pipeline_mode = #tpu.pipeline_mode<synchronous>, transform_indices = @transform_18, window_bounds = array<i64: 1, 512>}, {pipeline_mode = #tpu.pipeline_mode<synchronous>, transform_indices = @transform_19, window_bounds = array<i64: 512, 128>}, {pipeline_mode = #tpu.pipeline_mode<synchronous>, transform_indices = @transform_20, window_bounds = array<i64: 1, 128>}, {pipeline_mode = #tpu.pipeline_mode<synchronous>, transform_indices = @transform_21, window_bounds = array<i64: 2, 128>}]} {
    %c0_i32 = arith.constant 0 : i32
    %0 = arith.cmpi eq, %arg0, %c0_i32 : i32
    %1 = arith.extui %0 : i1 to i32
    %c0_i32_0 = arith.constant 0 : i32
    %2 = arith.cmpi ne, %1, %c0_i32_0 : i32
    scf.if %2 {
      %c0_69 = arith.constant 0 : index
      %c0_70 = arith.constant 0 : index
      %145 = vector.load %arg1[%c0_69, %c0_70] : memref<16x32xf32, #tpu.memory_space<vmem>>, vector<16x32xf32>
      %c0_71 = arith.constant 0 : index
      %c0_72 = arith.constant 0 : index
      %146 = vector.load %arg2[%c0_71, %c0_72] : memref<1x32xf32, #tpu.memory_space<vmem>>, vector<1x32xf32>
      %c0_73 = arith.constant 0 : index
      %c0_74 = arith.constant 0 : index
      %147 = vector.load %arg3[%c0_73, %c0_74] : memref<1x32xf32, #tpu.memory_space<vmem>>, vector<1x32xf32>
      %cst_75 = arith.constant dense<0.000000e+00> : vector<16xf32>
      %148 = vector.multi_reduction <add>, %145, %cst_75 [1] : vector<16x32xf32> to vector<16xf32>
      %149 = vector.shape_cast %148 : vector<16xf32> to vector<16x1xf32>
      %cst_76 = arith.constant 3.200000e+01 : f32
      %150 = vector.broadcast %cst_76 : f32 to vector<16x1xf32>
      %151 = arith.divf %149, %150 : vector<16x1xf32>
      %152 = vector.broadcast %151 : vector<16x1xf32> to vector<16x32xf32>
      %153 = arith.subf %145, %152 : vector<16x32xf32>
      %154 = arith.mulf %153, %153 : vector<16x32xf32>
      %cst_77 = arith.constant dense<0.000000e+00> : vector<16xf32>
      %155 = vector.multi_reduction <add>, %154, %cst_77 [1] : vector<16x32xf32> to vector<16xf32>
      %156 = vector.shape_cast %155 : vector<16xf32> to vector<16x1xf32>
      %cst_78 = arith.constant 3.200000e+01 : f32
      %157 = vector.broadcast %cst_78 : f32 to vector<16x1xf32>
      %158 = arith.divf %156, %157 : vector<16x1xf32>
      %cst_79 = arith.constant 9.99999996E-13 : f32
      %159 = vector.broadcast %cst_79 : f32 to vector<16x1xf32>
      %160 = arith.addf %158, %159 : vector<16x1xf32>
      %161 = math.rsqrt %160 : vector<16x1xf32>
      %162 = vector.broadcast %161 : vector<16x1xf32> to vector<16x32xf32>
      %163 = arith.mulf %153, %162 : vector<16x32xf32>
      %164 = vector.broadcast %146 : vector<1x32xf32> to vector<16x32xf32>
      %165 = arith.mulf %163, %164 : vector<16x32xf32>
      %166 = vector.broadcast %147 : vector<1x32xf32> to vector<16x32xf32>
      %167 = arith.addf %165, %166 : vector<16x32xf32>
      %c0_80 = arith.constant 0 : index
      %c0_81 = arith.constant 0 : index
      %168 = vector.load %arg23[%c0_80, %c0_81] : memref<16x32xf32, #tpu.memory_space<vmem>>, vector<16x32xf32>
      tpu.vector_store %arg23[%c0_80, %c0_81], %167 {strides = array<i32>} : memref<16x32xf32, #tpu.memory_space<vmem>>, vector<16x32xf32>,
    } else {
    }
    %c0 = arith.constant 0 : index
    %c0_1 = arith.constant 0 : index
    %3 = vector.load %arg23[%c0, %c0_1] : memref<16x32xf32, #tpu.memory_space<vmem>>, vector<16x32xf32>
    %c0_2 = arith.constant 0 : index
    %c0_3 = arith.constant 0 : index
    %c0_4 = arith.constant 0 : index
    %4 = vector.load %arg4[%c0_2, %c0_3, %c0_4] : memref<1x32x96xf32, #tpu.memory_space<vmem>>, vector<1x32x96xf32>
    %5 = vector.shape_cast %4 : vector<1x32x96xf32> to vector<32x96xf32>
    %cst = arith.constant dense<0.000000e+00> : vector<16x96xf32>
    %6 = tpu.matmul %3, %5, %cst {dimension_numbers = #tpu.dot_dimension_numbers<[1], [0], [0], [1], [0, 0, 1, 1], [], []>} : vector<16x32xf32>, vector<32x96xf32>, vector<16x96xf32> -> vector<16x96xf32>
    %c0_5 = arith.constant 0 : index
    %c0_6 = arith.constant 0 : index
    %c0_7 = arith.constant 0 : index
    %7 = vector.load %arg5[%c0_5, %c0_6, %c0_7] : memref<1x1x96xf32, #tpu.memory_space<vmem>>, vector<1x1x96xf32>
    %8 = vector.shape_cast %7 : vector<1x1x96xf32> to vector<1x96xf32>
    %9 = vector.broadcast %8 : vector<1x96xf32> to vector<16x96xf32>
    %10 = arith.addf %6, %9 : vector<16x96xf32>
    %c0_8 = arith.constant 0 : index
    %c0_9 = arith.constant 0 : index
    %c0_10 = arith.constant 0 : index
    %11 = vector.load %arg6[%c0_8, %c0_9, %c0_10] : memref<1x32x32xf32, #tpu.memory_space<vmem>>, vector<1x32x32xf32>
    %12 = vector.shape_cast %11 : vector<1x32x32xf32> to vector<32x32xf32>
    %c0_11 = arith.constant 0 : index
    %c0_12 = arith.constant 0 : index
    %c0_13 = arith.constant 0 : index
    %13 = vector.load %arg7[%c0_11, %c0_12, %c0_13] : memref<1x1x32xf32, #tpu.memory_space<vmem>>, vector<1x1x32xf32>
    %14 = vector.shape_cast %13 : vector<1x1x32xf32> to vector<1x32xf32>
    %15 = vector.extract_strided_slice %10 {offsets = [0, 0], sizes = [16, 16], strides = [1, 1]} : vector<16x96xf32> to vector<16x16xf32>
    %16 = vector.shape_cast %15 : vector<16x16xf32> to vector<2x8x16xf32>
    %17 = vector.extract_strided_slice %10 {offsets = [0, 32], sizes = [16, 16], strides = [1, 1]} : vector<16x96xf32> to vector<16x16xf32>
    %18 = vector.shape_cast %17 : vector<16x16xf32> to vector<2x8x16xf32>
    %19 = vector.extract_strided_slice %10 {offsets = [0, 64], sizes = [16, 16], strides = [1, 1]} : vector<16x96xf32> to vector<16x16xf32>
    %20 = vector.shape_cast %19 : vector<16x16xf32> to vector<2x8x16xf32>
    "tpu.trace_start"() <{level = 10 : i32, message = "bqd,bkd->bqk"}> : () -> ()
    %cst_14 = arith.constant dense<0.000000e+00> : vector<2x8x8xf32>
    %21 = tpu.matmul %16, %18, %cst_14 {dimension_numbers = #tpu.dot_dimension_numbers<[2], [2], [1], [1], [0, 0, 0, 1, 1, 1], [0], [0]>} : vector<2x8x16xf32>, vector<2x8x16xf32>, vector<2x8x8xf32> -> vector<2x8x8xf32>
    "tpu.trace_stop"() : () -> ()
    %cst_15 = arith.constant 2.500000e-01 : f32
    %22 = vector.broadcast %cst_15 : f32 to vector<2x8x8xf32>
    %23 = arith.mulf %21, %22 : vector<2x8x8xf32>
    %cst_16 = arith.constant dense<0xFF800000> : vector<2x8xf32>
    %24 = vector.multi_reduction <maximumf>, %23, %cst_16 [2] : vector<2x8x8xf32> to vector<2x8xf32>
    %25 = vector.shape_cast %24 : vector<2x8xf32> to vector<2x8x1xf32>
    %26 = vector.broadcast %25 : vector<2x8x1xf32> to vector<2x8x8xf32>
    %27 = arith.subf %23, %26 : vector<2x8x8xf32>
    %28 = math.exp %27 : vector<2x8x8xf32>
    %cst_17 = arith.constant dense<0.000000e+00> : vector<2x8xf32>
    %29 = vector.multi_reduction <add>, %28, %cst_17 [2] : vector<2x8x8xf32> to vector<2x8xf32>
    %30 = vector.shape_cast %29 : vector<2x8xf32> to vector<2x8x1xf32>
    %31 = tpu.reciprocal %30 {approx = true} : vector<2x8x1xf32> -> vector<2x8x1xf32>
    %32 = vector.broadcast %31 : vector<2x8x1xf32> to vector<2x8x8xf32>
    %33 = arith.mulf %28, %32 : vector<2x8x8xf32>
    "tpu.trace_start"() <{level = 10 : i32, message = "bqk,bkd->bqd"}> : () -> ()
    %cst_18 = arith.constant dense<0.000000e+00> : vector<2x8x16xf32>
    %34 = tpu.matmul %33, %20, %cst_18 {dimension_numbers = #tpu.dot_dimension_numbers<[2], [1], [1], [2], [0, 0, 0, 1, 1, 2], [0], [0]>} : vector<2x8x8xf32>, vector<2x8x16xf32>, vector<2x8x16xf32> -> vector<2x8x16xf32>
    "tpu.trace_stop"() : () -> ()
    %35 = vector.shape_cast %34 : vector<2x8x16xf32> to vector<16x16xf32>
    %36 = vector.extract_strided_slice %12 {offsets = [0, 0], sizes = [16, 32], strides = [1, 1]} : vector<32x32xf32> to vector<16x32xf32>
    %cst_19 = arith.constant dense<0.000000e+00> : vector<16x32xf32>
    %37 = tpu.matmul %35, %36, %cst_19 {dimension_numbers = #tpu.dot_dimension_numbers<[1], [0], [0], [1], [0, 0, 1, 1], [], []>} : vector<16x16xf32>, vector<16x32xf32>, vector<16x32xf32> -> vector<16x32xf32>
    %38 = vector.broadcast %14 : vector<1x32xf32> to vector<16x32xf32>
    %39 = arith.addf %38, %37 : vector<16x32xf32>
    %40 = vector.extract_strided_slice %10 {offsets = [0, 16], sizes = [16, 16], strides = [1, 1]} : vector<16x96xf32> to vector<16x16xf32>
    %41 = vector.shape_cast %40 : vector<16x16xf32> to vector<2x8x16xf32>
    %42 = vector.extract_strided_slice %10 {offsets = [0, 48], sizes = [16, 16], strides = [1, 1]} : vector<16x96xf32> to vector<16x16xf32>
    %43 = vector.shape_cast %42 : vector<16x16xf32> to vector<2x8x16xf32>
    %44 = vector.extract_strided_slice %10 {offsets = [0, 80], sizes = [16, 16], strides = [1, 1]} : vector<16x96xf32> to vector<16x16xf32>
    %45 = vector.shape_cast %44 : vector<16x16xf32> to vector<2x8x16xf32>
    "tpu.trace_start"() <{level = 10 : i32, message = "bqd,bkd->bqk"}> : () -> ()
    %cst_20 = arith.constant dense<0.000000e+00> : vector<2x8x8xf32>
    %46 = tpu.matmul %41, %43, %cst_20 {dimension_numbers = #tpu.dot_dimension_numbers<[2], [2], [1], [1], [0, 0, 0, 1, 1, 1], [0], [0]>} : vector<2x8x16xf32>, vector<2x8x16xf32>, vector<2x8x8xf32> -> vector<2x8x8xf32>
    "tpu.trace_stop"() : () -> ()
    %cst_21 = arith.constant 2.500000e-01 : f32
    %47 = vector.broadcast %cst_21 : f32 to vector<2x8x8xf32>
    %48 = arith.mulf %46, %47 : vector<2x8x8xf32>
    %cst_22 = arith.constant dense<0xFF800000> : vector<2x8xf32>
    %49 = vector.multi_reduction <maximumf>, %48, %cst_22 [2] : vector<2x8x8xf32> to vector<2x8xf32>
    %50 = vector.shape_cast %49 : vector<2x8xf32> to vector<2x8x1xf32>
    %51 = vector.broadcast %50 : vector<2x8x1xf32> to vector<2x8x8xf32>
    %52 = arith.subf %48, %51 : vector<2x8x8xf32>
    %53 = math.exp %52 : vector<2x8x8xf32>
    %cst_23 = arith.constant dense<0.000000e+00> : vector<2x8xf32>
    %54 = vector.multi_reduction <add>, %53, %cst_23 [2] : vector<2x8x8xf32> to vector<2x8xf32>
    %55 = vector.shape_cast %54 : vector<2x8xf32> to vector<2x8x1xf32>
    %56 = tpu.reciprocal %55 {approx = true} : vector<2x8x1xf32> -> vector<2x8x1xf32>
    %57 = vector.broadcast %56 : vector<2x8x1xf32> to vector<2x8x8xf32>
    %58 = arith.mulf %53, %57 : vector<2x8x8xf32>
    "tpu.trace_start"() <{level = 10 : i32, message = "bqk,bkd->bqd"}> : () -> ()
    %cst_24 = arith.constant dense<0.000000e+00> : vector<2x8x16xf32>
    %59 = tpu.matmul %58, %45, %cst_24 {dimension_numbers = #tpu.dot_dimension_numbers<[2], [1], [1], [2], [0, 0, 0, 1, 1, 2], [0], [0]>} : vector<2x8x8xf32>, vector<2x8x16xf32>, vector<2x8x16xf32> -> vector<2x8x16xf32>
    "tpu.trace_stop"() : () -> ()
    %60 = vector.shape_cast %59 : vector<2x8x16xf32> to vector<16x16xf32>
    %61 = vector.extract_strided_slice %12 {offsets = [16, 0], sizes = [16, 32], strides = [1, 1]} : vector<32x32xf32> to vector<16x32xf32>
    %cst_25 = arith.constant dense<0.000000e+00> : vector<16x32xf32>
    %62 = tpu.matmul %60, %61, %cst_25 {dimension_numbers = #tpu.dot_dimension_numbers<[1], [0], [0], [1], [0, 0, 1, 1], [], []>} : vector<16x16xf32>, vector<16x32xf32>, vector<16x32xf32> -> vector<16x32xf32>
    %63 = arith.addf %39, %62 : vector<16x32xf32>
    %64 = arith.addf %3, %63 : vector<16x32xf32>
    %c0_26 = arith.constant 0 : index
    %c0_27 = arith.constant 0 : index
    %c0_28 = arith.constant 0 : index
    %65 = vector.load %arg8[%c0_26, %c0_27, %c0_28] : memref<1x1x32xf32, #tpu.memory_space<vmem>>, vector<1x1x32xf32>
    %66 = vector.shape_cast %65 : vector<1x1x32xf32> to vector<1x32xf32>
    %c0_29 = arith.constant 0 : index
    %c0_30 = arith.constant 0 : index
    %c0_31 = arith.constant 0 : index
    %67 = vector.load %arg9[%c0_29, %c0_30, %c0_31] : memref<1x1x32xf32, #tpu.memory_space<vmem>>, vector<1x1x32xf32>
    %68 = vector.shape_cast %67 : vector<1x1x32xf32> to vector<1x32xf32>
    %cst_32 = arith.constant dense<0.000000e+00> : vector<16xf32>
    %69 = vector.multi_reduction <add>, %64, %cst_32 [1] : vector<16x32xf32> to vector<16xf32>
    %70 = vector.shape_cast %69 : vector<16xf32> to vector<16x1xf32>
    %cst_33 = arith.constant 3.200000e+01 : f32
    %71 = vector.broadcast %cst_33 : f32 to vector<16x1xf32>
    %72 = arith.divf %70, %71 : vector<16x1xf32>
    %73 = vector.broadcast %72 : vector<16x1xf32> to vector<16x32xf32>
    %74 = arith.subf %64, %73 : vector<16x32xf32>
    %75 = arith.mulf %74, %74 : vector<16x32xf32>
    %cst_34 = arith.constant dense<0.000000e+00> : vector<16xf32>
    %76 = vector.multi_reduction <add>, %75, %cst_34 [1] : vector<16x32xf32> to vector<16xf32>
    %77 = vector.shape_cast %76 : vector<16xf32> to vector<16x1xf32>
    %cst_35 = arith.constant 3.200000e+01 : f32
    %78 = vector.broadcast %cst_35 : f32 to vector<16x1xf32>
    %79 = arith.divf %77, %78 : vector<16x1xf32>
    %cst_36 = arith.constant 9.99999996E-13 : f32
    %80 = vector.broadcast %cst_36 : f32 to vector<16x1xf32>
    %81 = arith.addf %79, %80 : vector<16x1xf32>
    %82 = math.rsqrt %81 : vector<16x1xf32>
    %83 = vector.broadcast %82 : vector<16x1xf32> to vector<16x32xf32>
    %84 = arith.mulf %74, %83 : vector<16x32xf32>
    %85 = vector.broadcast %66 : vector<1x32xf32> to vector<16x32xf32>
    %86 = arith.mulf %84, %85 : vector<16x32xf32>
    %87 = vector.broadcast %68 : vector<1x32xf32> to vector<16x32xf32>
    %88 = arith.addf %86, %87 : vector<16x32xf32>
    %c0_37 = arith.constant 0 : index
    %c0_38 = arith.constant 0 : index
    %c0_39 = arith.constant 0 : index
    %89 = vector.load %arg10[%c0_37, %c0_38, %c0_39] : memref<1x32x128xf32, #tpu.memory_space<vmem>>, vector<1x32x128xf32>
    %90 = vector.shape_cast %89 : vector<1x32x128xf32> to vector<32x128xf32>
    %cst_40 = arith.constant dense<0.000000e+00> : vector<16x128xf32>
    %91 = tpu.matmul %88, %90, %cst_40 {dimension_numbers = #tpu.dot_dimension_numbers<[1], [0], [0], [1], [0, 0, 1, 1], [], []>} : vector<16x32xf32>, vector<32x128xf32>, vector<16x128xf32> -> vector<16x128xf32>
    %c0_41 = arith.constant 0 : index
    %c0_42 = arith.constant 0 : index
    %c0_43 = arith.constant 0 : index
    %92 = vector.load %arg11[%c0_41, %c0_42, %c0_43] : memref<1x1x128xf32, #tpu.memory_space<vmem>>, vector<1x1x128xf32>
    %93 = vector.shape_cast %92 : vector<1x1x128xf32> to vector<1x128xf32>
    %94 = vector.broadcast %93 : vector<1x128xf32> to vector<16x128xf32>
    %95 = arith.addf %91, %94 : vector<16x128xf32>
    %96 = arith.mulf %95, %95 : vector<16x128xf32>
    %97 = arith.mulf %95, %96 : vector<16x128xf32>
    %cst_44 = arith.constant 4.471500e-02 : f32
    %98 = vector.broadcast %cst_44 : f32 to vector<16x128xf32>
    %99 = arith.mulf %98, %97 : vector<16x128xf32>
    %100 = arith.addf %95, %99 : vector<16x128xf32>
    %cst_45 = arith.constant 0.797884583 : f32
    %101 = vector.broadcast %cst_45 : f32 to vector<16x128xf32>
    %102 = arith.mulf %101, %100 : vector<16x128xf32>
    %103 = math.tanh %102 : vector<16x128xf32>
    %cst_46 = arith.constant 1.000000e+00 : f32
    %104 = vector.broadcast %cst_46 : f32 to vector<16x128xf32>
    %105 = arith.addf %104, %103 : vector<16x128xf32>
    %cst_47 = arith.constant 5.000000e-01 : f32
    %106 = vector.broadcast %cst_47 : f32 to vector<16x128xf32>
    %107 = arith.mulf %106, %105 : vector<16x128xf32>
    %108 = arith.mulf %95, %107 : vector<16x128xf32>
    %c0_48 = arith.constant 0 : index
    %c0_49 = arith.constant 0 : index
    %c0_50 = arith.constant 0 : index
    %109 = vector.load %arg12[%c0_48, %c0_49, %c0_50] : memref<1x128x32xf32, #tpu.memory_space<vmem>>, vector<1x128x32xf32>
    %110 = vector.shape_cast %109 : vector<1x128x32xf32> to vector<128x32xf32>
    %cst_51 = arith.constant dense<0.000000e+00> : vector<16x32xf32>
    %111 = tpu.matmul %108, %110, %cst_51 {dimension_numbers = #tpu.dot_dimension_numbers<[1], [0], [0], [1], [0, 0, 1, 1], [], []>} : vector<16x128xf32>, vector<128x32xf32>, vector<16x32xf32> -> vector<16x32xf32>
    %c0_52 = arith.constant 0 : index
    %c0_53 = arith.constant 0 : index
    %c0_54 = arith.constant 0 : index
    %112 = vector.load %arg13[%c0_52, %c0_53, %c0_54] : memref<1x1x32xf32, #tpu.memory_space<vmem>>, vector<1x1x32xf32>
    %113 = vector.shape_cast %112 : vector<1x1x32xf32> to vector<1x32xf32>
    %114 = vector.broadcast %113 : vector<1x32xf32> to vector<16x32xf32>
    %115 = arith.addf %111, %114 : vector<16x32xf32>
    %116 = arith.addf %88, %115 : vector<16x32xf32>
    %c0_55 = arith.constant 0 : index
    %c0_56 = arith.constant 0 : index
    %c0_57 = arith.constant 0 : index
    %117 = vector.load %arg14[%c0_55, %c0_56, %c0_57] : memref<1x1x32xf32, #tpu.memory_space<vmem>>, vector<1x1x32xf32>
    %118 = vector.shape_cast %117 : vector<1x1x32xf32> to vector<1x32xf32>
    %c0_58 = arith.constant 0 : index
    %c0_59 = arith.constant 0 : index
    %c0_60 = arith.constant 0 : index
    %119 = vector.load %arg15[%c0_58, %c0_59, %c0_60] : memref<1x1x32xf32, #tpu.memory_space<vmem>>, vector<1x1x32xf32>
    %120 = vector.shape_cast %119 : vector<1x1x32xf32> to vector<1x32xf32>
    %cst_61 = arith.constant dense<0.000000e+00> : vector<16xf32>
    %121 = vector.multi_reduction <add>, %116, %cst_61 [1] : vector<16x32xf32> to vector<16xf32>
    %122 = vector.shape_cast %121 : vector<16xf32> to vector<16x1xf32>
    %cst_62 = arith.constant 3.200000e+01 : f32
    %123 = vector.broadcast %cst_62 : f32 to vector<16x1xf32>
    %124 = arith.divf %122, %123 : vector<16x1xf32>
    %125 = vector.broadcast %124 : vector<16x1xf32> to vector<16x32xf32>
    %126 = arith.subf %116, %125 : vector<16x32xf32>
    %127 = arith.mulf %126, %126 : vector<16x32xf32>
    %cst_63 = arith.constant dense<0.000000e+00> : vector<16xf32>
    %128 = vector.multi_reduction <add>, %127, %cst_63 [1] : vector<16x32xf32> to vector<16xf32>
    %129 = vector.shape_cast %128 : vector<16xf32> to vector<16x1xf32>
    %cst_64 = arith.constant 3.200000e+01 : f32
    %130 = vector.broadcast %cst_64 : f32 to vector<16x1xf32>
    %131 = arith.divf %129, %130 : vector<16x1xf32>
    %cst_65 = arith.constant 9.99999996E-13 : f32
    %132 = vector.broadcast %cst_65 : f32 to vector<16x1xf32>
    %133 = arith.addf %131, %132 : vector<16x1xf32>
    %134 = math.rsqrt %133 : vector<16x1xf32>
    %135 = vector.broadcast %134 : vector<16x1xf32> to vector<16x32xf32>
    %136 = arith.mulf %126, %135 : vector<16x32xf32>
    %137 = vector.broadcast %118 : vector<1x32xf32> to vector<16x32xf32>
    %138 = arith.mulf %136, %137 : vector<16x32xf32>
    %139 = vector.broadcast %120 : vector<1x32xf32> to vector<16x32xf32>
    %140 = arith.addf %138, %139 : vector<16x32xf32>
    %c0_66 = arith.constant 0 : index
    %c0_67 = arith.constant 0 : index
    %141 = vector.load %arg23[%c0_66, %c0_67] : memref<16x32xf32, #tpu.memory_space<vmem>>, vector<16x32xf32>
    tpu.vector_store %arg23[%c0_66, %c0_67], %140 {strides = array<i32>} : memref<16x32xf32, #tpu.memory_space<vmem>>, vector<16x32xf32>,
    %c1_i32 = arith.constant 1 : i32
    %142 = arith.cmpi eq, %arg0, %c1_i32 : i32
    %143 = arith.extui %142 : i1 to i32
    %c0_i32_68 = arith.constant 0 : i32
    %144 = arith.cmpi ne, %143, %c0_i32_68 : i32
    scf.if %144 {
      %145 = vector.shape_cast %140 : vector<16x32xf32> to vector<2x8x32xf32>
      %146 = vector.extract_strided_slice %145 {offsets = [0, 0, 0], sizes = [2, 1, 32], strides = [1, 1, 1]} : vector<2x8x32xf32> to vector<2x1x32xf32>
      %147 = vector.shape_cast %146 : vector<2x1x32xf32> to vector<2x32xf32>
      %c0_69 = arith.constant 0 : index
      %c0_70 = arith.constant 0 : index
      %148 = vector.load %arg16[%c0_69, %c0_70] : memref<32x512xf32, #tpu.memory_space<vmem>>, vector<32x512xf32>
      %cst_71 = arith.constant dense<0.000000e+00> : vector<2x512xf32>
      %149 = tpu.matmul %147, %148, %cst_71 {dimension_numbers = #tpu.dot_dimension_numbers<[1], [0], [0], [1], [0, 0, 1, 1], [], []>} : vector<2x32xf32>, vector<32x512xf32>, vector<2x512xf32> -> vector<2x512xf32>
      %c0_72 = arith.constant 0 : index
      %c0_73 = arith.constant 0 : index
      %150 = vector.load %arg17[%c0_72, %c0_73] : memref<1x512xf32, #tpu.memory_space<vmem>>, vector<1x512xf32>
      %151 = vector.broadcast %150 : vector<1x512xf32> to vector<2x512xf32>
      %152 = arith.addf %149, %151 : vector<2x512xf32>
      %cst_74 = arith.constant 0.000000e+00 : f32
      %153 = vector.broadcast %cst_74 : f32 to vector<2x512xf32>
      %154 = arith.maximumf %152, %153 : vector<2x512xf32>
      %c0_75 = arith.constant 0 : index
      %c0_76 = arith.constant 0 : index
      %155 = vector.load %arg18[%c0_75, %c0_76] : memref<512x512xf32, #tpu.memory_space<vmem>>, vector<512x512xf32>
      %cst_77 = arith.constant dense<0.000000e+00> : vector<2x512xf32>
      %156 = tpu.matmul %154, %155, %cst_77 {dimension_numbers = #tpu.dot_dimension_numbers<[1], [0], [0], [1], [0, 0, 1, 1], [], []>} : vector<2x512xf32>, vector<512x512xf32>, vector<2x512xf32> -> vector<2x512xf32>
      %c0_78 = arith.constant 0 : index
      %c0_79 = arith.constant 0 : index
      %157 = vector.load %arg19[%c0_78, %c0_79] : memref<1x512xf32, #tpu.memory_space<vmem>>, vector<1x512xf32>
      %158 = vector.broadcast %157 : vector<1x512xf32> to vector<2x512xf32>
      %159 = arith.addf %156, %158 : vector<2x512xf32>
      %cst_80 = arith.constant 0.000000e+00 : f32
      %160 = vector.broadcast %cst_80 : f32 to vector<2x512xf32>
      %161 = arith.maximumf %159, %160 : vector<2x512xf32>
      %c0_81 = arith.constant 0 : index
      %c0_82 = arith.constant 0 : index
      %162 = vector.load %arg20[%c0_81, %c0_82] : memref<512x128xf32, #tpu.memory_space<vmem>>, vector<512x128xf32>
      %cst_83 = arith.constant dense<0.000000e+00> : vector<2x128xf32>
      %163 = tpu.matmul %161, %162, %cst_83 {dimension_numbers = #tpu.dot_dimension_numbers<[1], [0], [0], [1], [0, 0, 1, 1], [], []>} : vector<2x512xf32>, vector<512x128xf32>, vector<2x128xf32> -> vector<2x128xf32>
      %c0_84 = arith.constant 0 : index
      %c0_85 = arith.constant 0 : index
      %164 = vector.load %arg21[%c0_84, %c0_85] : memref<1x128xf32, #tpu.memory_space<vmem>>, vector<1x128xf32>
      %165 = vector.broadcast %164 : vector<1x128xf32> to vector<2x128xf32>
      %166 = arith.addf %163, %165 : vector<2x128xf32>
      %c0_86 = arith.constant 0 : index
      %c0_87 = arith.constant 0 : index
      %167 = vector.load %arg22[%c0_86, %c0_87] : memref<2x128xf32, #tpu.memory_space<vmem>>, vector<2x128xf32>
      tpu.vector_store %arg22[%c0_86, %c0_87], %166 {strides = array<i32>} : memref<2x128xf32, #tpu.memory_space<vmem>>, vector<2x128xf32>,
    } else {
    }
    return
  }
  func.func @transform_0(%arg0: i32) -> (i32, i32) {
    %c0_i32 = arith.constant 0 : i32
    %c0_i32_0 = arith.constant 0 : i32
    %c0_i32_1 = arith.constant 0 : i32
    return %c0_i32, %c0_i32_0 : i32, i32
  }
  func.func @transform_1(%arg0: i32) -> (i32, i32) {
    %c0_i32 = arith.constant 0 : i32
    %c0_i32_0 = arith.constant 0 : i32
    %c0_i32_1 = arith.constant 0 : i32
    return %c0_i32, %c0_i32_0 : i32, i32
  }
  func.func @transform_2(%arg0: i32) -> (i32, i32) {
    %c0_i32 = arith.constant 0 : i32
    %c0_i32_0 = arith.constant 0 : i32
    %c0_i32_1 = arith.constant 0 : i32
    return %c0_i32, %c0_i32_0 : i32, i32
  }
  func.func @transform_3(%arg0: i32) -> (i32, i32, i32) {
    %c0_i32 = arith.constant 0 : i32
    %c0_i32_0 = arith.constant 0 : i32
    %c0_i32_1 = arith.constant 0 : i32
    return %arg0, %c0_i32, %c0_i32_0 : i32, i32, i32
  }
  func.func @transform_4(%arg0: i32) -> (i32, i32, i32) {
    %c0_i32 = arith.constant 0 : i32
    %c0_i32_0 = arith.constant 0 : i32
    %c0_i32_1 = arith.constant 0 : i32
    return %arg0, %c0_i32, %c0_i32_0 : i32, i32, i32
  }
  func.func @transform_5(%arg0: i32) -> (i32, i32, i32) {
    %c0_i32 = arith.constant 0 : i32
    %c0_i32_0 = arith.constant 0 : i32
    %c0_i32_1 = arith.constant 0 : i32
    return %arg0, %c0_i32, %c0_i32_0 : i32, i32, i32
  }
  func.func @transform_6(%arg0: i32) -> (i32, i32, i32) {
    %c0_i32 = arith.constant 0 : i32
    %c0_i32_0 = arith.constant 0 : i32
    %c0_i32_1 = arith.constant 0 : i32
    return %arg0, %c0_i32, %c0_i32_0 : i32, i32, i32
  }
  func.func @transform_7(%arg0: i32) -> (i32, i32, i32) {
    %c0_i32 = arith.constant 0 : i32
    %c0_i32_0 = arith.constant 0 : i32
    %c0_i32_1 = arith.constant 0 : i32
    return %arg0, %c0_i32, %c0_i32_0 : i32, i32, i32
  }
  func.func @transform_8(%arg0: i32) -> (i32, i32, i32) {
    %c0_i32 = arith.constant 0 : i32
    %c0_i32_0 = arith.constant 0 : i32
    %c0_i32_1 = arith.constant 0 : i32
    return %arg0, %c0_i32, %c0_i32_0 : i32, i32, i32
  }
  func.func @transform_9(%arg0: i32) -> (i32, i32, i32) {
    %c0_i32 = arith.constant 0 : i32
    %c0_i32_0 = arith.constant 0 : i32
    %c0_i32_1 = arith.constant 0 : i32
    return %arg0, %c0_i32, %c0_i32_0 : i32, i32, i32
  }
  func.func @transform_10(%arg0: i32) -> (i32, i32, i32) {
    %c0_i32 = arith.constant 0 : i32
    %c0_i32_0 = arith.constant 0 : i32
    %c0_i32_1 = arith.constant 0 : i32
    return %arg0, %c0_i32, %c0_i32_0 : i32, i32, i32
  }
  func.func @transform_11(%arg0: i32) -> (i32, i32, i32) {
    %c0_i32 = arith.constant 0 : i32
    %c0_i32_0 = arith.constant 0 : i32
    %c0_i32_1 = arith.constant 0 : i32
    return %arg0, %c0_i32, %c0_i32_0 : i32, i32, i32
  }
  func.func @transform_12(%arg0: i32) -> (i32, i32, i32) {
    %c0_i32 = arith.constant 0 : i32
    %c0_i32_0 = arith.constant 0 : i32
    %c0_i32_1 = arith.constant 0 : i32
    return %arg0, %c0_i32, %c0_i32_0 : i32, i32, i32
  }
  func.func @transform_13(%arg0: i32) -> (i32, i32, i32) {
    %c0_i32 = arith.constant 0 : i32
    %c0_i32_0 = arith.constant 0 : i32
    %c0_i32_1 = arith.constant 0 : i32
    return %arg0, %c0_i32, %c0_i32_0 : i32, i32, i32
  }
  func.func @transform_14(%arg0: i32) -> (i32, i32, i32) {
    %c0_i32 = arith.constant 0 : i32
    %c0_i32_0 = arith.constant 0 : i32
    %c0_i32_1 = arith.constant 0 : i32
    return %arg0, %c0_i32, %c0_i32_0 : i32, i32, i32
  }
  func.func @transform_15(%arg0: i32) -> (i32, i32) {
    %c0_i32 = arith.constant 0 : i32
    %c0_i32_0 = arith.constant 0 : i32
    %c0_i32_1 = arith.constant 0 : i32
    return %c0_i32, %c0_i32_0 : i32, i32
  }
  func.func @transform_16(%arg0: i32) -> (i32, i32) {
    %c0_i32 = arith.constant 0 : i32
    %c0_i32_0 = arith.constant 0 : i32
    %c0_i32_1 = arith.constant 0 : i32
    return %c0_i32, %c0_i32_0 : i32, i32
  }
  func.func @transform_17(%arg0: i32) -> (i32, i32) {
    %c0_i32 = arith.constant 0 : i32
    %c0_i32_0 = arith.constant 0 : i32
    %c0_i32_1 = arith.constant 0 : i32
    return %c0_i32, %c0_i32_0 : i32, i32
  }
  func.func @transform_18(%arg0: i32) -> (i32, i32) {
    %c0_i32 = arith.constant 0 : i32
    %c0_i32_0 = arith.constant 0 : i32
    %c0_i32_1 = arith.constant 0 : i32
    return %c0_i32, %c0_i32_0 : i32, i32
  }
  func.func @transform_19(%arg0: i32) -> (i32, i32) {
    %c0_i32 = arith.constant 0 : i32
    %c0_i32_0 = arith.constant 0 : i32
    %c0_i32_1 = arith.constant 0 : i32
    return %c0_i32, %c0_i32_0 : i32, i32
  }
  func.func @transform_20(%arg0: i32) -> (i32, i32) {
    %c0_i32 = arith.constant 0 : i32
    %c0_i32_0 = arith.constant 0 : i32
    %c0_i32_1 = arith.constant 0 : i32
    return %c0_i32, %c0_i32_0 : i32, i32
  }
  func.func @transform_21(%arg0: i32) -> (i32, i32) {
    %c0_i32 = arith.constant 0 : i32
    %c0_i32_0 = arith.constant 0 : i32
    %c0_i32_1 = arith.constant 0 : i32
    return %c0_i32, %c0_i32_0 : i32, i32
  }
}

</mosaic_0001>

<llo_original>
// kernel: bert_imdb_forward.1
$region0: #{bert_imdb_forward.1}
  #allocation0 [shape = 'u32[]', space=smem, size = 0x4, offset = 0x4, fixed_abs, tag = 'smem constant byte address 0x4 - core index']
  #allocation1 [shape = 'u32[72,128]{1,0:T(1,128)}', space=vmem, size = 0x9000, scoped, tag = 'internal scratch']
  #allocation2 [shape = 'f32[16,32]{1,0:T(8,128)}', space=vmem, size = 0x2000, scoped, tag = 'scratch operand']
  %s0 = inlined_call_operand.vmem [shape: f32[16,32], index: 0, kind: input, shape index: {}]
  %s1 = inlined_call_operand.vmem [shape: f32[1,32], index: 1, kind: input, shape index: {}]
  %s2 = inlined_call_operand.vmem [shape: f32[1,32], index: 2, kind: input, shape index: {}]
  %s3 = inlined_call_operand.vmem [shape: f32[2,32,96], index: 3, kind: input, shape index: {}]
  %s4 = inlined_call_operand.vmem [shape: f32[2,1,96], index: 4, kind: input, shape index: {}]
  %s5 = inlined_call_operand.vmem [shape: f32[2,32,32], index: 5, kind: input, shape index: {}]
  %s6 = inlined_call_operand.vmem [shape: f32[2,1,32], index: 6, kind: input, shape index: {}]
  %s7 = inlined_call_operand.vmem [shape: f32[2,1,32], index: 7, kind: input, shape index: {}]
  %s8 = inlined_call_operand.vmem [shape: f32[2,1,32], index: 8, kind: input, shape index: {}]
  %s9 = inlined_call_operand.vmem [shape: f32[2,32,128], index: 9, kind: input, shape index: {}]
  %s10 = inlined_call_operand.vmem [shape: f32[2,1,128], index: 10, kind: input, shape index: {}]
  %s11 = inlined_call_operand.vmem [shape: f32[2,128,32], index: 11, kind: input, shape index: {}]
  %s12 = inlined_call_operand.vmem [shape: f32[2,1,32], index: 12, kind: input, shape index: {}]
  %s13 = inlined_call_operand.vmem [shape: f32[2,1,32], index: 13, kind: input, shape index: {}]
  %s14 = inlined_call_operand.vmem [shape: f32[2,1,32], index: 14, kind: input, shape index: {}]
  %s15 = inlined_call_operand.vmem [shape: f32[32,512], index: 15, kind: input, shape index: {}]
  %s16 = inlined_call_operand.vmem [shape: f32[1,512], index: 16, kind: input, shape index: {}]
  %s17 = inlined_call_operand.hbm [shape: f32[512,512], index: 17, kind: input, shape index: {}]
  %s18 = inlined_call_operand.vmem [shape: f32[1,512], index: 18, kind: input, shape index: {}]
  %s19 = inlined_call_operand.hbm [shape: f32[512,128], index: 19, kind: input, shape index: {}]
  %s20 = inlined_call_operand.vmem [shape: f32[1,128], index: 20, kind: input, shape index: {}]
  %s21 = inlined_call_operand.hbm [shape: f32[2,128], index: 21, kind: output, shape index: {}]
  %s22 = sld [smem:[#allocation0]]
  $region133: #{bert_imdb_forward.1} parent=0
    _
  %s24 = ssub.s32 1, %s22
  %s25 = scalar_select 0, %s24, %s22
  $region1: #{bert_imdb_forward.1} parent=0
    #allocation3 [shape = 'u8[1048576]{0}', space=vmem, size = 0x100000, scoped, tag = 'input window, operand 17, single buffered']
    #allocation4 [shape = 's32[2]{0}', space=sflag, size = 0x8, scoped, tag = 'scoped memory for bert_imdb_forward.1']
    #allocation5 [shape = 's32[2]{0}', space=sflag, size = 0x8, scoped, tag = 'scoped memory for bert_imdb_forward.1']
    #allocation6 [shape = 'u8[262144]{0}', space=vmem, size = 0x40000, scoped, tag = 'input window, operand 19, single buffered']
    #allocation7 [shape = 's32[1]{0}', space=sflag, size = 0x4, scoped, tag = 'scoped memory for bert_imdb_forward.1']
    #allocation8 [shape = 'u8[1024]{0}', space=vmem, size = 0x400, scoped, tag = 'output window, operand 0, single buffered']
    %26 = vsyncpa [#allocation4], 0
    %27 = vsyncpa [#allocation7], 0
    %28 = vsyncpa [#allocation5], 0
    loop: start=0, step=1, limit=4
    $region2: #{bert_imdb_forward.1} parent=1 // loop_pre_header
      _
    $region3: #{bert_imdb_forward.1} parent=1 // loop_header
      %s30 = sphi 0, %s34
      %p31 = scmp.ge.s32.totalorder %s30, 4
      %s38 = sphi 0, %s38
      %s40 = sphi 0, %s38
      %s41 = sphi 0, %s40
      %s55 = sphi 0, %s41
      %s59 = sphi 0, %s59
      %s61 = sphi 0, %s59
      %s62 = sphi 0, %s61
      %s76 = sphi 0, %s62
      %s80 = sphi 0, %s80
      %s82 = sphi 0, %s80
      %s83 = sphi 0, %s82
      %s97 = sphi 0, %s83
      %s103 = sphi 0, %s105
      %s106 = sphi 0, %s103
      %s107 = sphi 0, %s106
      %s123 = sphi 0, %s107
      %s129 = sphi 0, %s131
      %s132 = sphi 0, %s129
      %s133 = sphi 0, %s132
      %s149 = sphi 0, %s133
      %s155 = sphi 0, %s157
      %s158 = sphi 0, %s155
      %s159 = sphi 0, %s158
      %s175 = sphi 0, %s159
      %s181 = sphi 0, %s183
      %s184 = sphi 0, %s181
      %s185 = sphi 0, %s184
      %s201 = sphi 0, %s185
      %s207 = sphi 0, %s209
      %s210 = sphi 0, %s207
      %s211 = sphi 0, %s210
      %s227 = sphi 0, %s211
      %s233 = sphi 0, %s235
      %s236 = sphi 0, %s233
      %s237 = sphi 0, %s236
      %s253 = sphi 0, %s237
      %s259 = sphi 0, %s261
      %s262 = sphi 0, %s259
      %s263 = sphi 0, %s262
      %s279 = sphi 0, %s263
      %s285 = sphi 0, %s287
      %s288 = sphi 0, %s285
      %s289 = sphi 0, %s288
      %s305 = sphi 0, %s289
      %s311 = sphi 0, %s313
      %s314 = sphi 0, %s311
      %s315 = sphi 0, %s314
      %s331 = sphi 0, %s315
      %s337 = sphi 0, %s339
      %s340 = sphi 0, %s337
      %s341 = sphi 0, %s340
      %s357 = sphi 0, %s341
      %s363 = sphi 0, %s365
      %s366 = sphi 0, %s363
      %s367 = sphi 0, %s366
      %s383 = sphi 0, %s367
      %s389 = sphi 0, %s391
      %s392 = sphi 0, %s389
      %s393 = sphi 0, %s392
      %s409 = sphi 0, %s393
      %s413 = sphi 0, %s413
      %s415 = sphi 0, %s413
      %s416 = sphi 0, %s415
      %s430 = sphi 0, %s416
      %s434 = sphi 0, %s434
      %s436 = sphi 0, %s434
      %s437 = sphi 0, %s436
      %s451 = sphi 0, %s437
      %s455 = sphi 0, %s455
      %s457 = sphi 0, %s455
      %s458 = sphi 0, %s457
      %s472 = sphi 0, %s458
      %s476 = sphi 0, %s476
      %s478 = sphi 0, %s476
      %s479 = sphi 0, %s478
      %s493 = sphi 0, %s479
      %s497 = sphi 0, %s497
      %s499 = sphi 0, %s497
      %s500 = sphi 0, %s499
      %s514 = sphi 0, %s500
      %s518 = sphi 0, %s518
      %s520 = sphi 0, %s518
      %s521 = sphi 0, %s520
      %s535 = sphi 0, %s521
      %s539 = sphi 0, %s539
      %s541 = sphi 0, %s539
      %s542 = sphi 0, %s541
      %s556 = sphi 0, %s542
    $region4: #{bert_imdb_forward.1} parent=1 // loop_header_branch
      %33 = sbr.rel (%p31) target = $region8
    $region5: #{bert_imdb_forward.1} parent=1 // loop_body
      %s35 = ssub.s32 %s30, 1
      %s36 = ssub.s32 %s30, 2
      %s37 = sadd.s32 %s30, 1
      %s39 = sadd.s32 %s38, 1
      %p42 = scmp.eq.s32.totalorder %s30, 1
      %p43 = scmp.ne.s32.totalorder %s38, %s40
      %p44 = scmp.eq.s32.totalorder %s30, 0
      %p45 = por %p43, %p44
      %p46 = scmp.ne.s32.totalorder %s38, %s40
      %p47 = scmp.eq.s32.totalorder %s35, 1
      %p48 = por %p46, %p47
      %p49 = scmp.ne.s32.totalorder %s40, %s41
      %p50 = scmp.eq.s32.totalorder %s35, 0
      %p51 = por %p49, %p50
      %p52 = scmp.ne.s32.totalorder %s40, %s41
      %p53 = scmp.eq.s32.totalorder %s36, 1
      %p54 = por %p52, %p53
      %p56 = scmp.ne.s32.totalorder %s41, %s55
      %p57 = scmp.eq.s32.totalorder %s36, 0
      %p58 = por %p56, %p57
      %s60 = sadd.s32 %s59, 1
      %p63 = scmp.eq.s32.totalorder %s30, 1
      %p64 = scmp.ne.s32.totalorder %s59, %s61
      %p65 = scmp.eq.s32.totalorder %s30, 0
      %p66 = por %p64, %p65
      %p67 = scmp.ne.s32.totalorder %s59, %s61
      %p68 = scmp.eq.s32.totalorder %s35, 1
      %p69 = por %p67, %p68
      %p70 = scmp.ne.s32.totalorder %s61, %s62
      %p71 = scmp.eq.s32.totalorder %s35, 0
      %p72 = por %p70, %p71
      %p73 = scmp.ne.s32.totalorder %s61, %s62
      %p74 = scmp.eq.s32.totalorder %s36, 1
      %p75 = por %p73, %p74
      %p77 = scmp.ne.s32.totalorder %s62, %s76
      %p78 = scmp.eq.s32.totalorder %s36, 0
      %p79 = por %p77, %p78
      %s81 = sadd.s32 %s80, 1
      %p84 = scmp.eq.s32.totalorder %s30, 1
      %p85 = scmp.ne.s32.totalorder %s80, %s82
      %p86 = scmp.eq.s32.totalorder %s30, 0
      %p87 = por %p85, %p86
      %p88 = scmp.ne.s32.totalorder %s80, %s82
      %p89 = scmp.eq.s32.totalorder %s35, 1
      %p90 = por %p88, %p89
      %p91 = scmp.ne.s32.totalorder %s82, %s83
      %p92 = scmp.eq.s32.totalorder %s35, 0
      %p93 = por %p91, %p92
      %p94 = scmp.ne.s32.totalorder %s82, %s83
      %p95 = scmp.eq.s32.totalorder %s36, 1
      %p96 = por %p94, %p95
      %p98 = scmp.ne.s32.totalorder %s83, %s97
      %p99 = scmp.eq.s32.totalorder %s36, 0
      %p100 = por %p98, %p99
      %s101 = ssub.s32 %s30, %s37
      %p102 = scmp.eq.s32.totalorder %s101, 0
      %s104 = sadd.s32 %s103, 1
      %s105 = scalar_select %p102, %s103, %s104
      %p108 = pneg %p102
      %p109 = scmp.eq.s32.totalorder %s30, 1
      %p110 = por %p108, %p109
      %p111 = scmp.ne.s32.totalorder %s103, %s106
      %p112 = scmp.eq.s32.totalorder %s30, 0
      %p113 = por %p111, %p112
      %p114 = scmp.ne.s32.totalorder %s103, %s106
      %p115 = scmp.eq.s32.totalorder %s35, 1
      %p116 = por %p114, %p115
      %p117 = scmp.ne.s32.totalorder %s106, %s107
      %p118 = scmp.eq.s32.totalorder %s35, 0
      %p119 = por %p117, %p118
      %p120 = scmp.ne.s32.totalorder %s106, %s107
      %p121 = scmp.eq.s32.totalorder %s36, 1
      %p122 = por %p120, %p121
      %p124 = scmp.ne.s32.totalorder %s107, %s123
      %p125 = scmp.eq.s32.totalorder %s36, 0
      %p126 = por %p124, %p125
      %s127 = ssub.s32 %s30, %s37
      %p128 = scmp.eq.s32.totalorder %s127, 0
      %s130 = sadd.s32 %s129, 1
      %s131 = scalar_select %p128, %s129, %s130
      %p134 = pneg %p128
      %p135 = scmp.eq.s32.totalorder %s30, 1
      %p136 = por %p134, %p135
      %p137 = scmp.ne.s32.totalorder %s129, %s132
      %p138 = scmp.eq.s32.totalorder %s30, 0
      %p139 = por %p137, %p138
      %p140 = scmp.ne.s32.totalorder %s129, %s132
      %p141 = scmp.eq.s32.totalorder %s35, 1
      %p142 = por %p140, %p141
      %p143 = scmp.ne.s32.totalorder %s132, %s133
      %p144 = scmp.eq.s32.totalorder %s35, 0
      %p145 = por %p143, %p144
      %p146 = scmp.ne.s32.totalorder %s132, %s133
      %p147 = scmp.eq.s32.totalorder %s36, 1
      %p148 = por %p146, %p147
      %p150 = scmp.ne.s32.totalorder %s133, %s149
      %p151 = scmp.eq.s32.totalorder %s36, 0
      %p152 = por %p150, %p151
      %s153 = ssub.s32 %s30, %s37
      %p154 = scmp.eq.s32.totalorder %s153, 0
      %s156 = sadd.s32 %s155, 1
      %s157 = scalar_select %p154, %s155, %s156
      %p160 = pneg %p154
      %p161 = scmp.eq.s32.totalorder %s30, 1
      %p162 = por %p160, %p161
      %p163 = scmp.ne.s32.totalorder %s155, %s158
      %p164 = scmp.eq.s32.totalorder %s30, 0
      %p165 = por %p163, %p164
      %p166 = scmp.ne.s32.totalorder %s155, %s158
      %p167 = scmp.eq.s32.totalorder %s35, 1
      %p168 = por %p166, %p167
      %p169 = scmp.ne.s32.totalorder %s158, %s159
      %p170 = scmp.eq.s32.totalorder %s35, 0
      %p171 = por %p169, %p170
      %p172 = scmp.ne.s32.totalorder %s158, %s159
      %p173 = scmp.eq.s32.totalorder %s36, 1
      %p174 = por %p172, %p173
      %p176 = scmp.ne.s32.totalorder %s159, %s175
      %p177 = scmp.eq.s32.totalorder %s36, 0
      %p178 = por %p176, %p177
      %s179 = ssub.s32 %s30, %s37
      %p180 = scmp.eq.s32.totalorder %s179, 0
      %s182 = sadd.s32 %s181, 1
      %s183 = scalar_select %p180, %s181, %s182
      %p186 = pneg %p180
      %p187 = scmp.eq.s32.totalorder %s30, 1
      %p188 = por %p186, %p187
      %p189 = scmp.ne.s32.totalorder %s181, %s184
      %p190 = scmp.eq.s32.totalorder %s30, 0
      %p191 = por %p189, %p190
      %p192 = scmp.ne.s32.totalorder %s181, %s184
      %p193 = scmp.eq.s32.totalorder %s35, 1
      %p194 = por %p192, %p193
      %p195 = scmp.ne.s32.totalorder %s184, %s185
      %p196 = scmp.eq.s32.totalorder %s35, 0
      %p197 = por %p195, %p196
      %p198 = scmp.ne.s32.totalorder %s184, %s185
      %p199 = scmp.eq.s32.totalorder %s36, 1
      %p200 = por %p198, %p199
      %p202 = scmp.ne.s32.totalorder %s185, %s201
      %p203 = scmp.eq.s32.totalorder %s36, 0
      %p204 = por %p202, %p203
      %s205 = ssub.s32 %s30, %s37
      %p206 = scmp.eq.s32.totalorder %s205, 0
      %s208 = sadd.s32 %s207, 1
      %s209 = scalar_select %p206, %s207, %s208
      %p212 = pneg %p206
      %p213 = scmp.eq.s32.totalorder %s30, 1
      %p214 = por %p212, %p213
      %p215 = scmp.ne.s32.totalorder %s207, %s210
      %p216 = scmp.eq.s32.totalorder %s30, 0
      %p217 = por %p215, %p216
      %p218 = scmp.ne.s32.totalorder %s207, %s210
      %p219 = scmp.eq.s32.totalorder %s35, 1
      %p220 = por %p218, %p219
      %p221 = scmp.ne.s32.totalorder %s210, %s211
      %p222 = scmp.eq.s32.totalorder %s35, 0
      %p223 = por %p221, %p222
      %p224 = scmp.ne.s32.totalorder %s210, %s211
      %p225 = scmp.eq.s32.totalorder %s36, 1
      %p226 = por %p224, %p225
      %p228 = scmp.ne.s32.totalorder %s211, %s227
      %p229 = scmp.eq.s32.totalorder %s36, 0
      %p230 = por %p228, %p229
      %s231 = ssub.s32 %s30, %s37
      %p232 = scmp.eq.s32.totalorder %s231, 0
      %s234 = sadd.s32 %s233, 1
      %s235 = scalar_select %p232, %s233, %s234
      %p238 = pneg %p232
      %p239 = scmp.eq.s32.totalorder %s30, 1
      %p240 = por %p238, %p239
      %p241 = scmp.ne.s32.totalorder %s233, %s236
      %p242 = scmp.eq.s32.totalorder %s30, 0
      %p243 = por %p241, %p242
      %p244 = scmp.ne.s32.totalorder %s233, %s236
      %p245 = scmp.eq.s32.totalorder %s35, 1
      %p246 = por %p244, %p245
      %p247 = scmp.ne.s32.totalorder %s236, %s237
      %p248 = scmp.eq.s32.totalorder %s35, 0
      %p249 = por %p247, %p248
      %p250 = scmp.ne.s32.totalorder %s236, %s237
      %p251 = scmp.eq.s32.totalorder %s36, 1
      %p252 = por %p250, %p251
      %p254 = scmp.ne.s32.totalorder %s237, %s253
      %p255 = scmp.eq.s32.totalorder %s36, 0
      %p256 = por %p254, %p255
      %s257 = ssub.s32 %s30, %s37
      %p258 = scmp.eq.s32.totalorder %s257, 0
      %s260 = sadd.s32 %s259, 1
      %s261 = scalar_select %p258, %s259, %s260
      %p264 = pneg %p258
      %p265 = scmp.eq.s32.totalorder %s30, 1
      %p266 = por %p264, %p265
      %p267 = scmp.ne.s32.totalorder %s259, %s262
      %p268 = scmp.eq.s32.totalorder %s30, 0
      %p269 = por %p267, %p268
      %p270 = scmp.ne.s32.totalorder %s259, %s262
      %p271 = scmp.eq.s32.totalorder %s35, 1
      %p272 = por %p270, %p271
      %p273 = scmp.ne.s32.totalorder %s262, %s263
      %p274 = scmp.eq.s32.totalorder %s35, 0
      %p275 = por %p273, %p274
      %p276 = scmp.ne.s32.totalorder %s262, %s263
      %p277 = scmp.eq.s32.totalorder %s36, 1
      %p278 = por %p276, %p277
      %p280 = scmp.ne.s32.totalorder %s263, %s279
      %p281 = scmp.eq.s32.totalorder %s36, 0
      %p282 = por %p280, %p281
      %s283 = ssub.s32 %s30, %s37
      %p284 = scmp.eq.s32.totalorder %s283, 0
      %s286 = sadd.s32 %s285, 1
      %s287 = scalar_select %p284, %s285, %s286
      %p290 = pneg %p284
      %p291 = scmp.eq.s32.totalorder %s30, 1
      %p292 = por %p290, %p291
      %p293 = scmp.ne.s32.totalorder %s285, %s288
      %p294 = scmp.eq.s32.totalorder %s30, 0
      %p295 = por %p293, %p294
      %p296 = scmp.ne.s32.totalorder %s285, %s288
      %p297 = scmp.eq.s32.totalorder %s35, 1
      %p298 = por %p296, %p297
      %p299 = scmp.ne.s32.totalorder %s288, %s289
      %p300 = scmp.eq.s32.totalorder %s35, 0
      %p301 = por %p299, %p300
      %p302 = scmp.ne.s32.totalorder %s288, %s289
      %p303 = scmp.eq.s32.totalorder %s36, 1
      %p304 = por %p302, %p303
      %p306 = scmp.ne.s32.totalorder %s289, %s305
      %p307 = scmp.eq.s32.totalorder %s36, 0
      %p308 = por %p306, %p307
      %s309 = ssub.s32 %s30, %s37
      %p310 = scmp.eq.s32.totalorder %s309, 0
      %s312 = sadd.s32 %s311, 1
      %s313 = scalar_select %p310, %s311, %s312
      %p316 = pneg %p310
      %p317 = scmp.eq.s32.totalorder %s30, 1
      %p318 = por %p316, %p317
      %p319 = scmp.ne.s32.totalorder %s311, %s314
      %p320 = scmp.eq.s32.totalorder %s30, 0
      %p321 = por %p319, %p320
      %p322 = scmp.ne.s32.totalorder %s311, %s314
      %p323 = scmp.eq.s32.totalorder %s35, 1
      %p324 = por %p322, %p323
      %p325 = scmp.ne.s32.totalorder %s314, %s315
      %p326 = scmp.eq.s32.totalorder %s35, 0
      %p327 = por %p325, %p326
      %p328 = scmp.ne.s32.totalorder %s314, %s315
      %p329 = scmp.eq.s32.totalorder %s36, 1
      %p330 = por %p328, %p329
      %p332 = scmp.ne.s32.totalorder %s315, %s331
      %p333 = scmp.eq.s32.totalorder %s36, 0
      %p334 = por %p332, %p333
      %s335 = ssub.s32 %s30, %s37
      %p336 = scmp.eq.s32.totalorder %s335, 0
      %s338 = sadd.s32 %s337, 1
      %s339 = scalar_select %p336, %s337, %s338
      %p342 = pneg %p336
      %p343 = scmp.eq.s32.totalorder %s30, 1
      %p344 = por %p342, %p343
      %p345 = scmp.ne.s32.totalorder %s337, %s340
      %p346 = scmp.eq.s32.totalorder %s30, 0
      %p347 = por %p345, %p346
      %p348 = scmp.ne.s32.totalorder %s337, %s340
      %p349 = scmp.eq.s32.totalorder %s35, 1
      %p350 = por %p348, %p349
      %p351 = scmp.ne.s32.totalorder %s340, %s341
      %p352 = scmp.eq.s32.totalorder %s35, 0
      %p353 = por %p351, %p352
      %p354 = scmp.ne.s32.totalorder %s340, %s341
      %p355 = scmp.eq.s32.totalorder %s36, 1
      %p356 = por %p354, %p355
      %p358 = scmp.ne.s32.totalorder %s341, %s357
      %p359 = scmp.eq.s32.totalorder %s36, 0
      %p360 = por %p358, %p359
      %s361 = ssub.s32 %s30, %s37
      %p362 = scmp.eq.s32.totalorder %s361, 0
      %s364 = sadd.s32 %s363, 1
      %s365 = scalar_select %p362, %s363, %s364
      %p368 = pneg %p362
      %p369 = scmp.eq.s32.totalorder %s30, 1
      %p370 = por %p368, %p369
      %p371 = scmp.ne.s32.totalorder %s363, %s366
      %p372 = scmp.eq.s32.totalorder %s30, 0
      %p373 = por %p371, %p372
      %p374 = scmp.ne.s32.totalorder %s363, %s366
      %p375 = scmp.eq.s32.totalorder %s35, 1
      %p376 = por %p374, %p375
      %p377 = scmp.ne.s32.totalorder %s366, %s367
      %p378 = scmp.eq.s32.totalorder %s35, 0
      %p379 = por %p377, %p378
      %p380 = scmp.ne.s32.totalorder %s366, %s367
      %p381 = scmp.eq.s32.totalorder %s36, 1
      %p382 = por %p380, %p381
      %p384 = scmp.ne.s32.totalorder %s367, %s383
      %p385 = scmp.eq.s32.totalorder %s36, 0
      %p386 = por %p384, %p385
      %s387 = ssub.s32 %s30, %s37
      %p388 = scmp.eq.s32.totalorder %s387, 0
      %s390 = sadd.s32 %s389, 1
      %s391 = scalar_select %p388, %s389, %s390
      %p394 = pneg %p388
      %p395 = scmp.eq.s32.totalorder %s30, 1
      %p396 = por %p394, %p395
      %p397 = scmp.ne.s32.totalorder %s389, %s392
      %p398 = scmp.eq.s32.totalorder %s30, 0
      %p399 = por %p397, %p398
      %p400 = scmp.ne.s32.totalorder %s389, %s392
      %p401 = scmp.eq.s32.totalorder %s35, 1
      %p402 = por %p400, %p401
      %p403 = scmp.ne.s32.totalorder %s392, %s393
      %p404 = scmp.eq.s32.totalorder %s35, 0
      %p405 = por %p403, %p404
      %p406 = scmp.ne.s32.totalorder %s392, %s393
      %p407 = scmp.eq.s32.totalorder %s36, 1
      %p408 = por %p406, %p407
      %p410 = scmp.ne.s32.totalorder %s393, %s409
      %p411 = scmp.eq.s32.totalorder %s36, 0
      %p412 = por %p410, %p411
      %s414 = sadd.s32 %s413, 1
      %p417 = scmp.eq.s32.totalorder %s30, 1
      %p418 = scmp.ne.s32.totalorder %s413, %s415
      %p419 = scmp.eq.s32.totalorder %s30, 0
      %p420 = por %p418, %p419
      %p421 = scmp.ne.s32.totalorder %s413, %s415
      %p422 = scmp.eq.s32.totalorder %s35, 1
      %p423 = por %p421, %p422
      %p424 = scmp.ne.s32.totalorder %s415, %s416
      %p425 = scmp.eq.s32.totalorder %s35, 0
      %p426 = por %p424, %p425
      %p427 = scmp.ne.s32.totalorder %s415, %s416
      %p428 = scmp.eq.s32.totalorder %s36, 1
      %p429 = por %p427, %p428
      %p431 = scmp.ne.s32.totalorder %s416, %s430
      %p432 = scmp.eq.s32.totalorder %s36, 0
      %p433 = por %p431, %p432
      %s435 = sadd.s32 %s434, 1
      %p438 = scmp.eq.s32.totalorder %s30, 1
      %p439 = scmp.ne.s32.totalorder %s434, %s436
      %p440 = scmp.eq.s32.totalorder %s30, 0
      %p441 = por %p439, %p440
      %p442 = scmp.ne.s32.totalorder %s434, %s436
      %p443 = scmp.eq.s32.totalorder %s35, 1
      %p444 = por %p442, %p443
      %p445 = scmp.ne.s32.totalorder %s436, %s437
      %p446 = scmp.eq.s32.totalorder %s35, 0
      %p447 = por %p445, %p446
      %p448 = scmp.ne.s32.totalorder %s436, %s437
      %p449 = scmp.eq.s32.totalorder %s36, 1
      %p450 = por %p448, %p449
      %p452 = scmp.ne.s32.totalorder %s437, %s451
      %p453 = scmp.eq.s32.totalorder %s36, 0
      %p454 = por %p452, %p453
      %s456 = sadd.s32 %s455, 1
      %p459 = scmp.eq.s32.totalorder %s30, 1
      %p460 = scmp.ne.s32.totalorder %s455, %s457
      %p461 = scmp.eq.s32.totalorder %s30, 0
      %p462 = por %p460, %p461
      %p463 = scmp.ne.s32.totalorder %s455, %s457
      %p464 = scmp.eq.s32.totalorder %s35, 1
      %p465 = por %p463, %p464
      %p466 = scmp.ne.s32.totalorder %s457, %s458
      %p467 = scmp.eq.s32.totalorder %s35, 0
      %p468 = por %p466, %p467
      %p469 = scmp.ne.s32.totalorder %s457, %s458
      %p470 = scmp.eq.s32.totalorder %s36, 1
      %p471 = por %p469, %p470
      %p473 = scmp.ne.s32.totalorder %s458, %s472
      %p474 = scmp.eq.s32.totalorder %s36, 0
      %p475 = por %p473, %p474
      %s477 = sadd.s32 %s476, 1
      %p480 = scmp.eq.s32.totalorder %s30, 1
      %p481 = scmp.ne.s32.totalorder %s476, %s478
      %p482 = scmp.eq.s32.totalorder %s30, 0
      %p483 = por %p481, %p482
      %p484 = scmp.ne.s32.totalorder %s476, %s478
      %p485 = scmp.eq.s32.totalorder %s35, 1
      %p486 = por %p484, %p485
      %p487 = scmp.ne.s32.totalorder %s478, %s479
      %p488 = scmp.eq.s32.totalorder %s35, 0
      %p489 = por %p487, %p488
      %p490 = scmp.ne.s32.totalorder %s478, %s479
      %p491 = scmp.eq.s32.totalorder %s36, 1
      %p492 = por %p490, %p491
      %p494 = scmp.ne.s32.totalorder %s479, %s493
      %p495 = scmp.eq.s32.totalorder %s36, 0
      %p496 = por %p494, %p495
      %s498 = sadd.s32 %s497, 1
      %p501 = scmp.eq.s32.totalorder %s30, 1
      %p502 = scmp.ne.s32.totalorder %s497, %s499
      %p503 = scmp.eq.s32.totalorder %s30, 0
      %p504 = por %p502, %p503
      %p505 = scmp.ne.s32.totalorder %s497, %s499
      %p506 = scmp.eq.s32.totalorder %s35, 1
      %p507 = por %p505, %p506
      %p508 = scmp.ne.s32.totalorder %s499, %s500
      %p509 = scmp.eq.s32.totalorder %s35, 0
      %p510 = por %p508, %p509
      %p511 = scmp.ne.s32.totalorder %s499, %s500
      %p512 = scmp.eq.s32.totalorder %s36, 1
      %p513 = por %p511, %p512
      %p515 = scmp.ne.s32.totalorder %s500, %s514
      %p516 = scmp.eq.s32.totalorder %s36, 0
      %p517 = por %p515, %p516
      %s519 = sadd.s32 %s518, 1
      %p522 = scmp.eq.s32.totalorder %s30, 1
      %p523 = scmp.ne.s32.totalorder %s518, %s520
      %p524 = scmp.eq.s32.totalorder %s30, 0
      %p525 = por %p523, %p524
      %p526 = scmp.ne.s32.totalorder %s518, %s520
      %p527 = scmp.eq.s32.totalorder %s35, 1
      %p528 = por %p526, %p527
      %p529 = scmp.ne.s32.totalorder %s520, %s521
      %p530 = scmp.eq.s32.totalorder %s35, 0
      %p531 = por %p529, %p530
      %p532 = scmp.ne.s32.totalorder %s520, %s521
      %p533 = scmp.eq.s32.totalorder %s36, 1
      %p534 = por %p532, %p533
      %p536 = scmp.ne.s32.totalorder %s521, %s535
      %p537 = scmp.eq.s32.totalorder %s36, 0
      %p538 = por %p536, %p537
      %s540 = sadd.s32 %s539, 1
      %p543 = scmp.eq.s32.totalorder %s30, 1
      %p544 = scmp.ne.s32.totalorder %s539, %s541
      %p545 = scmp.eq.s32.totalorder %s30, 0
      %p546 = por %p544, %p545
      %p547 = scmp.ne.s32.totalorder %s539, %s541
      %p548 = scmp.eq.s32.totalorder %s35, 1
      %p549 = por %p547, %p548
      %p550 = scmp.ne.s32.totalorder %s541, %s542
      %p551 = scmp.eq.s32.totalorder %s35, 0
      %p552 = por %p550, %p551
      %p553 = scmp.ne.s32.totalorder %s541, %s542
      %p554 = scmp.eq.s32.totalorder %s36, 1
      %p555 = por %p553, %p554
      %p557 = scmp.ne.s32.totalorder %s542, %s556
      %p558 = scmp.eq.s32.totalorder %s36, 0
      %p559 = por %p557, %p558
      %p560 = scmp.le.s32.totalorder 1, %s30
      %p561 = scmp.lt.s32.totalorder %s30, 3
      %p562 = pnand %p560, %p561
      %p563 = pneg %p562
      // Predicated region
      $region9: #{bert_imdb_forward.1} parent=5 // pred_check
        _
      $region10: #{bert_imdb_forward.1} parent=5 // pred_check_branch
        %565 = sbr.rel (%p562) target = $region12
      $region11: #{bert_imdb_forward.1} parent=5 // pred_region
        %s566 = ssub.s32 %s30, 1
        // Predicated region
        $region13: #{bert_imdb_forward.1} parent=11 // pred_check
          %p567 = pneg %p51
        $region14: #{bert_imdb_forward.1} parent=11 // pred_check_branch
          %569 = sbr.rel (%p567) target = $region16
        $region15: #{bert_imdb_forward.1} parent=11 // pred_region
          _
        $region16: #{bert_imdb_forward.1} parent=11 // pred_fallthru
          _
        // Predicated region
        $region17: #{bert_imdb_forward.1} parent=11 // pred_check
          %p570 = pneg %p72
        $region18: #{bert_imdb_forward.1} parent=11 // pred_check_branch
          %572 = sbr.rel (%p570) target = $region20
        $region19: #{bert_imdb_forward.1} parent=11 // pred_region
          _
        $region20: #{bert_imdb_forward.1} parent=11 // pred_fallthru
          _
        // Predicated region
        $region21: #{bert_imdb_forward.1} parent=11 // pred_check
          %p573 = pneg %p93
        $region22: #{bert_imdb_forward.1} parent=11 // pred_check_branch
          %575 = sbr.rel (%p573) target = $region24
        $region23: #{bert_imdb_forward.1} parent=11 // pred_region
          _
        $region24: #{bert_imdb_forward.1} parent=11 // pred_fallthru
          _
        // Predicated region
        $region25: #{bert_imdb_forward.1} parent=11 // pred_check
          %p576 = pneg %p426
        $region26: #{bert_imdb_forward.1} parent=11 // pred_check_branch
          %578 = sbr.rel (%p576) target = $region28
        $region27: #{bert_imdb_forward.1} parent=11 // pred_region
          _
        $region28: #{bert_imdb_forward.1} parent=11 // pred_fallthru
          _
        // Predicated region
        $region29: #{bert_imdb_forward.1} parent=11 // pred_check
          %p579 = pneg %p447
        $region30: #{bert_imdb_forward.1} parent=11 // pred_check_branch
          %581 = sbr.rel (%p579) target = $region32
        $region31: #{bert_imdb_forward.1} parent=11 // pred_region
          _
        $region32: #{bert_imdb_forward.1} parent=11 // pred_fallthru
          _
        // Predicated region
        $region33: #{bert_imdb_forward.1} parent=11 // pred_check
          %p582 = pneg %p468
        $region34: #{bert_imdb_forward.1} parent=11 // pred_check_branch
          %584 = sbr.rel (%p582) target = $region36
        $region35: #{bert_imdb_forward.1} parent=11 // pred_region
          %586 = vsyncadd [#allocation4], 0
          %s587 = sshll.u32 %s17, 4
          %s588 = int_to_ptr.hbm [resolvable:$true] %s587
          %s589 = sshll.u32 [#allocation3], 4
          %s590 = int_to_ptr.vmem [resolvable:$true] %s589
          %595 = dma.hbm_to_vmem [thread:$0]  %s588, 32768, %s590, [#allocation4], 512, 512, 32
        $region36: #{bert_imdb_forward.1} parent=11 // pred_fallthru
          _
        // Predicated region
        $region37: #{bert_imdb_forward.1} parent=11 // pred_check
          %p596 = pneg %p489
        $region38: #{bert_imdb_forward.1} parent=11 // pred_check_branch
          %598 = sbr.rel (%p596) target = $region40
        $region39: #{bert_imdb_forward.1} parent=11 // pred_region
          _
        $region40: #{bert_imdb_forward.1} parent=11 // pred_fallthru
          _
        // Predicated region
        $region41: #{bert_imdb_forward.1} parent=11 // pred_check
          %p599 = pneg %p510
        $region42: #{bert_imdb_forward.1} parent=11 // pred_check_branch
          %601 = sbr.rel (%p599) target = $region44
        $region43: #{bert_imdb_forward.1} parent=11 // pred_region
          %603 = vsyncadd [#allocation7], 0
          %s604 = sshll.u32 %s19, 4
          %s605 = int_to_ptr.hbm [resolvable:$true] %s604
          %s606 = sshll.u32 [#allocation6], 4
          %s607 = int_to_ptr.vmem [resolvable:$true] %s606
          %612 = dma.hbm_to_vmem [thread:$0]  %s605, 8192, %s607, [#allocation7], 128, 128, 8
        $region44: #{bert_imdb_forward.1} parent=11 // pred_fallthru
          _
        // Predicated region
        $region45: #{bert_imdb_forward.1} parent=11 // pred_check
          %p613 = pneg %p531
        $region46: #{bert_imdb_forward.1} parent=11 // pred_check_branch
          %615 = sbr.rel (%p613) target = $region48
        $region47: #{bert_imdb_forward.1} parent=11 // pred_region
          _
        $region48: #{bert_imdb_forward.1} parent=11 // pred_fallthru
          _
      $region12: #{bert_imdb_forward.1} parent=5 // pred_fallthru
        _
      %p616 = scmp.lt.s32.totalorder %s30, 2
      // Predicated region
      $region49: #{bert_imdb_forward.1} parent=5 // pred_check
        %p617 = pneg %p616
      $region50: #{bert_imdb_forward.1} parent=5 // pred_check_branch
        %619 = sbr.rel (%p617) target = $region52
      $region51: #{bert_imdb_forward.1} parent=5 // pred_region
        // Predicated region
        $region53: #{bert_imdb_forward.1} parent=51 // pred_check
          %p620 = pneg %p113
        $region54: #{bert_imdb_forward.1} parent=51 // pred_check_branch
          %622 = sbr.rel (%p620) target = $region56
        $region55: #{bert_imdb_forward.1} parent=51 // pred_region
          %p623 = scmp.lt.s32.totalorder %s30, 1
          %s624 = scalar_select %p623, %s30, 1
          %s625 = smul.addr %s624, 4
          %s626 = smul.addr %s625, 8
          %s627 = scalar_lea.vmem %s3, %s626
        $region56: #{bert_imdb_forward.1} parent=51 // pred_fallthru
          _
        // Predicated region
        $region57: #{bert_imdb_forward.1} parent=51 // pred_check
          %p628 = pneg %p139
        $region58: #{bert_imdb_forward.1} parent=51 // pred_check_branch
          %630 = sbr.rel (%p628) target = $region60
        $region59: #{bert_imdb_forward.1} parent=51 // pred_region
          %p631 = scmp.lt.s32.totalorder %s30, 1
          %s632 = scalar_select %p631, %s30, 1
          %s633 = scalar_lea.vmem %s4, %s632
        $region60: #{bert_imdb_forward.1} parent=51 // pred_fallthru
          _
        // Predicated region
        $region61: #{bert_imdb_forward.1} parent=51 // pred_check
          %p634 = pneg %p165
        $region62: #{bert_imdb_forward.1} parent=51 // pred_check_branch
          %636 = sbr.rel (%p634) target = $region64
        $region63: #{bert_imdb_forward.1} parent=51 // pred_region
          %p637 = scmp.lt.s32.totalorder %s30, 1
          %s638 = scalar_select %p637, %s30, 1
          %s639 = smul.addr %s638, 4
          %s640 = smul.addr %s639, 8
          %s641 = scalar_lea.vmem %s5, %s640
        $region64: #{bert_imdb_forward.1} parent=51 // pred_fallthru
          _
        // Predicated region
        $region65: #{bert_imdb_forward.1} parent=51 // pred_check
          %p642 = pneg %p191
        $region66: #{bert_imdb_forward.1} parent=51 // pred_check_branch
          %644 = sbr.rel (%p642) target = $region68
        $region67: #{bert_imdb_forward.1} parent=51 // pred_region
          %p645 = scmp.lt.s32.totalorder %s30, 1
          %s646 = scalar_select %p645, %s30, 1
          %s647 = scalar_lea.vmem %s6, %s646
        $region68: #{bert_imdb_forward.1} parent=51 // pred_fallthru
          _
        // Predicated region
        $region69: #{bert_imdb_forward.1} parent=51 // pred_check
          %p648 = pneg %p217
        $region70: #{bert_imdb_forward.1} parent=51 // pred_check_branch
          %650 = sbr.rel (%p648) target = $region72
        $region71: #{bert_imdb_forward.1} parent=51 // pred_region
          %p651 = scmp.lt.s32.totalorder %s30, 1
          %s652 = scalar_select %p651, %s30, 1
          %s653 = scalar_lea.vmem %s7, %s652
        $region72: #{bert_imdb_forward.1} parent=51 // pred_fallthru
          _
        // Predicated region
        $region73: #{bert_imdb_forward.1} parent=51 // pred_check
          %p654 = pneg %p243
        $region74: #{bert_imdb_forward.1} parent=51 // pred_check_branch
          %656 = sbr.rel (%p654) target = $region76
        $region75: #{bert_imdb_forward.1} parent=51 // pred_region
          %p657 = scmp.lt.s32.totalorder %s30, 1
          %s658 = scalar_select %p657, %s30, 1
          %s659 = scalar_lea.vmem %s8, %s658
        $region76: #{bert_imdb_forward.1} parent=51 // pred_fallthru
          _
        // Predicated region
        $region77: #{bert_imdb_forward.1} parent=51 // pred_check
          %p660 = pneg %p269
        $region78: #{bert_imdb_forward.1} parent=51 // pred_check_branch
          %662 = sbr.rel (%p660) target = $region80
        $region79: #{bert_imdb_forward.1} parent=51 // pred_region
          %p663 = scmp.lt.s32.totalorder %s30, 1
          %s664 = scalar_select %p663, %s30, 1
          %s665 = smul.addr %s664, 4
          %s666 = smul.addr %s665, 8
          %s667 = scalar_lea.vmem %s9, %s666
        $region80: #{bert_imdb_forward.1} parent=51 // pred_fallthru
          _
        // Predicated region
        $region81: #{bert_imdb_forward.1} parent=51 // pred_check
          %p668 = pneg %p295
        $region82: #{bert_imdb_forward.1} parent=51 // pred_check_branch
          %670 = sbr.rel (%p668) target = $region84
        $region83: #{bert_imdb_forward.1} parent=51 // pred_region
          %p671 = scmp.lt.s32.totalorder %s30, 1
          %s672 = scalar_select %p671, %s30, 1
          %s673 = scalar_lea.vmem %s10, %s672
        $region84: #{bert_imdb_forward.1} parent=51 // pred_fallthru
          _
        // Predicated region
        $region85: #{bert_imdb_forward.1} parent=51 // pred_check
          %p674 = pneg %p321
        $region86: #{bert_imdb_forward.1} parent=51 // pred_check_branch
          %676 = sbr.rel (%p674) target = $region88
        $region87: #{bert_imdb_forward.1} parent=51 // pred_region
          %p677 = scmp.lt.s32.totalorder %s30, 1
          %s678 = scalar_select %p677, %s30, 1
          %s679 = smul.addr %s678, 16
          %s680 = smul.addr %s679, 8
          %s681 = scalar_lea.vmem %s11, %s680
        $region88: #{bert_imdb_forward.1} parent=51 // pred_fallthru
          _
        // Predicated region
        $region89: #{bert_imdb_forward.1} parent=51 // pred_check
          %p682 = pneg %p347
        $region90: #{bert_imdb_forward.1} parent=51 // pred_check_branch
          %684 = sbr.rel (%p682) target = $region92
        $region91: #{bert_imdb_forward.1} parent=51 // pred_region
          %p685 = scmp.lt.s32.totalorder %s30, 1
          %s686 = scalar_select %p685, %s30, 1
          %s687 = scalar_lea.vmem %s12, %s686
        $region92: #{bert_imdb_forward.1} parent=51 // pred_fallthru
          _
        // Predicated region
        $region93: #{bert_imdb_forward.1} parent=51 // pred_check
          %p688 = pneg %p373
        $region94: #{bert_imdb_forward.1} parent=51 // pred_check_branch
          %690 = sbr.rel (%p688) target = $region96
        $region95: #{bert_imdb_forward.1} parent=51 // pred_region
          %p691 = scmp.lt.s32.totalorder %s30, 1
          %s692 = scalar_select %p691, %s30, 1
          %s693 = scalar_lea.vmem %s13, %s692
        $region96: #{bert_imdb_forward.1} parent=51 // pred_fallthru
          _
        // Predicated region
        $region97: #{bert_imdb_forward.1} parent=51 // pred_check
          %p694 = pneg %p399
        $region98: #{bert_imdb_forward.1} parent=51 // pred_check_branch
          %696 = sbr.rel (%p694) target = $region100
        $region99: #{bert_imdb_forward.1} parent=51 // pred_region
          %p697 = scmp.lt.s32.totalorder %s30, 1
          %s698 = scalar_select %p697, %s30, 1
          %s699 = scalar_lea.vmem %s14, %s698
        $region100: #{bert_imdb_forward.1} parent=51 // pred_fallthru
          _
      $region52: #{bert_imdb_forward.1} parent=5 // pred_fallthru
        _
      %p700 = scmp.le.s32.totalorder 1, %s30
      %p701 = scmp.lt.s32.totalorder %s30, 3
      %p702 = pnand %p700, %p701
      %p703 = pneg %p702
      // Predicated region
      $region101: #{bert_imdb_forward.1} parent=5 // pred_check
        _
      $region102: #{bert_imdb_forward.1} parent=5 // pred_check_branch
        %705 = sbr.rel (%p702) target = $region104
      $region103: #{bert_imdb_forward.1} parent=5 // pred_region
        %s706 = ssub.s32 %s30, 1
        // Predicated region
        $region105: #{bert_imdb_forward.1} parent=103 // pred_check
          %p707 = pneg %p468
        $region106: #{bert_imdb_forward.1} parent=103 // pred_check_branch
          %709 = sbr.rel (%p707) target = $region108
        $region107: #{bert_imdb_forward.1} parent=103 // pred_region
          %711 = dma.done [#allocation4], 32768
        $region108: #{bert_imdb_forward.1} parent=103 // pred_fallthru
          _
        // Predicated region
        $region109: #{bert_imdb_forward.1} parent=103 // pred_check
          %p712 = pneg %p510
        $region110: #{bert_imdb_forward.1} parent=103 // pred_check_branch
          %714 = sbr.rel (%p712) target = $region112
        $region111: #{bert_imdb_forward.1} parent=103 // pred_region
          %716 = dma.done [#allocation7], 8192
        $region112: #{bert_imdb_forward.1} parent=103 // pred_fallthru
          _
        %p717 = pneg %p51
        %p718 = pneg %p48
        %p719 = pneg %p72
        %p720 = pneg %p69
        %p721 = pneg %p93
        %p722 = pneg %p90
        %p723 = scmp.lt.s32.totalorder %s35, 1
        %s724 = scalar_select %p723, %s35, 1
        %s725 = smul.addr %s724, 4
        %s726 = smul.addr %s725, 8
        %s727 = scalar_lea.vmem %s3, %s726
        %p728 = pneg %p119
        %p729 = pneg %p116
        %p730 = scmp.lt.s32.totalorder %s35, 1
        %s731 = scalar_select %p730, %s35, 1
        %s732 = scalar_lea.vmem %s4, %s731
        %p733 = pneg %p145
        %p734 = pneg %p142
        %p735 = scmp.lt.s32.totalorder %s35, 1
        %s736 = scalar_select %p735, %s35, 1
        %s737 = smul.addr %s736, 4
        %s738 = smul.addr %s737, 8
        %s739 = scalar_lea.vmem %s5, %s738
        %p740 = pneg %p171
        %p741 = pneg %p168
        %p742 = scmp.lt.s32.totalorder %s35, 1
        %s743 = scalar_select %p742, %s35, 1
        %s744 = scalar_lea.vmem %s6, %s743
        %p745 = pneg %p197
        %p746 = pneg %p194
        %p747 = scmp.lt.s32.totalorder %s35, 1
        %s748 = scalar_select %p747, %s35, 1
        %s749 = scalar_lea.vmem %s7, %s748
        %p750 = pneg %p223
        %p751 = pneg %p220
        %p752 = scmp.lt.s32.totalorder %s35, 1
        %s753 = scalar_select %p752, %s35, 1
        %s754 = scalar_lea.vmem %s8, %s753
        %p755 = pneg %p249
        %p756 = pneg %p246
        %p757 = scmp.lt.s32.totalorder %s35, 1
        %s758 = scalar_select %p757, %s35, 1
        %s759 = smul.addr %s758, 4
        %s760 = smul.addr %s759, 8
        %s761 = scalar_lea.vmem %s9, %s760
        %p762 = pneg %p275
        %p763 = pneg %p272
        %p764 = scmp.lt.s32.totalorder %s35, 1
        %s765 = scalar_select %p764, %s35, 1
        %s766 = scalar_lea.vmem %s10, %s765
        %p767 = pneg %p301
        %p768 = pneg %p298
        %p769 = scmp.lt.s32.totalorder %s35, 1
        %s770 = scalar_select %p769, %s35, 1
        %s771 = smul.addr %s770, 16
        %s772 = smul.addr %s771, 8
        %s773 = scalar_lea.vmem %s11, %s772
        %p774 = pneg %p327
        %p775 = pneg %p324
        %p776 = scmp.lt.s32.totalorder %s35, 1
        %s777 = scalar_select %p776, %s35, 1
        %s778 = scalar_lea.vmem %s12, %s777
        %p779 = pneg %p353
        %p780 = pneg %p350
        %p781 = scmp.lt.s32.totalorder %s35, 1
        %s782 = scalar_select %p781, %s35, 1
        %s783 = scalar_lea.vmem %s13, %s782
        %p784 = pneg %p379
        %p785 = pneg %p376
        %p786 = scmp.lt.s32.totalorder %s35, 1
        %s787 = scalar_select %p786, %s35, 1
        %s788 = scalar_lea.vmem %s14, %s787
        %p789 = pneg %p405
        %p790 = pneg %p402
        %p791 = pneg %p426
        %p792 = pneg %p423
        %p793 = pneg %p447
        %p794 = pneg %p444
        %p795 = pneg %p468
        %p796 = pneg %p465
        %p797 = pneg %p489
        %p798 = pneg %p486
        %p799 = pneg %p510
        %p800 = pneg %p507
        %p801 = pneg %p531
        %p802 = pneg %p528
        %p803 = pneg %p552
        %p804 = pneg %p549
        %p805 = scmp.lt.s32.totalorder %s35, 1
        %s806 = scalar_select %p805, %s35, 1
        %s807 = smul.addr %s806, 4
        %s808 = smul.addr %s807, 8
        %s809 = scalar_lea.vmem %s3, %s808
        %p810 = scmp.lt.s32.totalorder %s35, 1
        %s811 = scalar_select %p810, %s35, 1
        %s812 = scalar_lea.vmem %s4, %s811
        %p813 = scmp.lt.s32.totalorder %s35, 1
        %s814 = scalar_select %p813, %s35, 1
        %s815 = smul.addr %s814, 4
        %s816 = smul.addr %s815, 8
        %s817 = scalar_lea.vmem %s5, %s816
        %p818 = scmp.lt.s32.totalorder %s35, 1
        %s819 = scalar_select %p818, %s35, 1
        %s820 = scalar_lea.vmem %s6, %s819
        %p821 = scmp.lt.s32.totalorder %s35, 1
        %s822 = scalar_select %p821, %s35, 1
        %s823 = scalar_lea.vmem %s7, %s822
        %p824 = scmp.lt.s32.totalorder %s35, 1
        %s825 = scalar_select %p824, %s35, 1
        %s826 = scalar_lea.vmem %s8, %s825
        %p827 = scmp.lt.s32.totalorder %s35, 1
        %s828 = scalar_select %p827, %s35, 1
        %s829 = smul.addr %s828, 4
        %s830 = smul.addr %s829, 8
        %s831 = scalar_lea.vmem %s9, %s830
        %p832 = scmp.lt.s32.totalorder %s35, 1
        %s833 = scalar_select %p832, %s35, 1
        %s834 = scalar_lea.vmem %s10, %s833
        %p835 = scmp.lt.s32.totalorder %s35, 1
        %s836 = scalar_select %p835, %s35, 1
        %s837 = smul.addr %s836, 16
        %s838 = smul.addr %s837, 8
        %s839 = scalar_lea.vmem %s11, %s838
        %p840 = scmp.lt.s32.totalorder %s35, 1
        %s841 = scalar_select %p840, %s35, 1
        %s842 = scalar_lea.vmem %s12, %s841
        %p843 = scmp.lt.s32.totalorder %s35, 1
        %s844 = scalar_select %p843, %s35, 1
        %s845 = scalar_lea.vmem %s13, %s844
        %p846 = scmp.lt.s32.totalorder %s35, 1
        %s847 = scalar_select %p846, %s35, 1
        %s848 = scalar_lea.vmem %s14, %s847
        %p849 = scmp.eq.s32.totalorder %s35, 0
        // Predicated region
        $region113: #{bert_imdb_forward.1} parent=103 // pred_check
          %p850 = pneg %p849
        $region114: #{bert_imdb_forward.1} parent=103 // pred_check_branch
          %852 = sbr.rel (%p850) target = $region116
        $region115: #{bert_imdb_forward.1} parent=103 // pred_region
          %v853 = vld [vmem:[%s0] sm:$0xff]
          %v854 = vld [vmem:[%s0 + $0x8] sm:$0xff]
          %v855 = vld [vmem:[%s1] sm:$0x1]
          %v856 = vld [vmem:[%s2] sm:$0x1]
          %vm857 = vcmask 261120
          %v858 = vsel %vm857, %v853, 0.0
          %859 = vadd.xlane.f32.xlu0 %v858
          %v860 = vpop.xlane.xlu0 %859
          %v861 = vsel %vm857, %v854, 0.0
          %862 = vadd.xlane.f32.xlu0 %v861
          %v863 = vpop.xlane.xlu0 %862
          %v864 = vrcp.pop 32.0
          %v865 = vmul.f32 32.0, %v864
          %v866 = vsub.f32 1.0, %v865
          %v867 = vmul.f32 %v864, %v866
          %v868 = vadd.f32 %v864, %v867
          %vm869 = vweird.f32 %v864
          %v870 = vsel %vm869, %v864, %v868
          %v871 = vmul.f32 %v860, %v870
          %v872 = vmul.f32 %v863, %v870
          %v873 = vsub.f32 %v853, %v871
          %v874 = vsub.f32 %v854, %v872
          %v875 = vmul.f32 %v873, %v873
          %v876 = vmul.f32 %v874, %v874
          %v877 = vsel %vm857, %v875, 0.0
          %878 = vadd.xlane.f32.xlu0 %v877
          %v879 = vpop.xlane.xlu0 %878
          %v880 = vsel %vm857, %v876, 0.0
          %881 = vadd.xlane.f32.xlu0 %v880
          %v882 = vpop.xlane.xlu0 %881
          %v883 = vmul.f32 %v879, %v870
          %v884 = vmul.f32 %v882, %v870
          %v885 = vadd.f32 %v883, 1e-12
          %v886 = vadd.f32 %v884, 1e-12
          %v887 = vrsqrt.pop %v885
          %v888 = vmul.f32 %v887, %v885
          %v889 = vmul.f32 %v888, %v887
          %v890 = vmul.f32 0.5, %v889
          %v891 = vsub.f32 1.5, %v890
          %v892 = vmul.f32 %v887, %v891
          %vm893 = vweird.f32 %v885
          %vm894 = vweird.f32 %v887
          %vm895 = vmor %vm893, %vm894
          %v896 = vsel %vm895, %v887, %v892
          %v897 = vrsqrt.pop %v886
          %v898 = vmul.f32 %v897, %v886
          %v899 = vmul.f32 %v898, %v897
          %v900 = vmul.f32 0.5, %v899
          %v901 = vsub.f32 1.5, %v900
          %v902 = vmul.f32 %v897, %v901
          %vm903 = vweird.f32 %v886
          %vm904 = vweird.f32 %v897
          %vm905 = vmor %vm903, %vm904
          %v906 = vsel %vm905, %v897, %v902
          %v907 = vmul.f32 %v873, %v896
          %v908 = vmul.f32 %v874, %v906
          %v910 = vperm.slane %v855, 0
          %v912 = vmul.f32 %v907, %v910
          %v913 = vmul.f32 %v908, %v910
          %v915 = vperm.slane %v856, 0
          %v917 = vadd.f32 %v912, %v915
          %v918 = vadd.f32 %v913, %v915
          %919 = vst.msk [vmem:[#allocation2] sm:$0xff] %vm857, %v917
          %920 = vst.msk [vmem:[#allocation2 + $0x8] sm:$0xff] %vm857, %v918
        $region116: #{bert_imdb_forward.1} parent=103 // pred_fallthru
          _
        %v921 = vld [vmem:[#allocation2] sm:$0xff]
        %v922 = vld [vmem:[#allocation2 + $0x8] sm:$0xff]
        %v923 = vld [vmem:[%s809] sm:$0xff]
        %v924 = vld [vmem:[%s809 + $0x8] sm:$0xff]
        %v925 = vld [vmem:[%s809 + $0x10] sm:$0xff]
        %v926 = vld [vmem:[%s809 + $0x18] sm:$0xff]
        %v927 = vld [vmem:[%s812] sm:$0x1]
        %v929 = vperm.slane %v927, 0
        %vm931 = vcmask 261120
        %v933 = vsel %vm931, %v921, 0
        %v936 = vsel %vm931, %v922, 0
        %938 = vmatpush.msra.mxu0 0.0
        %939 = vmatpush.msra.mxu0 0.0
        %940 = vmatpush.msra.mxu0 0.0
        %941 = vmatpush.msra.mxu0 0.0
        %942 = vmatpush.msra.mxu0 0.0
        %943 = vmatpush.msra.mxu0 0.0
        %944 = vmatpush.msra.mxu0 0.0
        %945 = vmatpush.msra.mxu0 0.0
        %946 = vmatpush.msra.mxu0 0.0
        %947 = vmatpush.msra.mxu0 0.0
        %948 = vmatpush.msra.mxu0 0.0
        %949 = vmatpush.msra.mxu0 0.0
        %950 = vmatpush.msra.mxu0 %v926
        %951 = vmatpush.msra.mxu0 %v925
        %952 = vmatpush.msra.mxu0 %v924
        %953 = vmatpush.msra.mxu0 %v923
        %954 = vmatmul.f32.gmra.mxu0 %v933
        %v955 = vpop.f32.mrf.mxu0
        %v956 = vadd.f32 %v929, %v955
        %957 = vmatmul.f32.gmra.mxu0 %v936
        %v958 = vpop.f32.mrf.mxu0
        %v959 = vadd.f32 %v929, %v958
        %960 = vdwg.mxu0
        %v961 = vld [vmem:[%s817] sm:$0xff]
        %v962 = vld [vmem:[%s817 + $0x8] sm:$0xff]
        %v963 = vld [vmem:[%s817 + $0x10] sm:$0xff]
        %v964 = vld [vmem:[%s817 + $0x18] sm:$0xff]
        %v965 = vld [vmem:[%s820] sm:$0x1]
        %967 = vrot.lane.b32.xlu0 %v956, 96
        %v968 = vpop.permute.xlu0 %967
        %vm969 = vcmask 130048
        %v970 = vsel %vm969, %v956, 0
        %v972 = vsel %vm969, %v968, 0
        %974 = vmatpush.xpose.msra.mxu0 0.0
        %975 = vmatpush.xpose.msra.mxu0 0.0
        %976 = vmatpush.xpose.msra.mxu0 0.0
        %977 = vmatpush.xpose.msra.mxu0 0.0
        %978 = vmatpush.xpose.msra.mxu0 0.0
        %979 = vmatpush.xpose.msra.mxu0 0.0
        %980 = vmatpush.xpose.msra.mxu0 0.0
        %981 = vmatpush.xpose.msra.mxu0 0.0
        %982 = vmatpush.xpose.msra.mxu0 0.0
        %983 = vmatpush.xpose.msra.mxu0 0.0
        %984 = vmatpush.xpose.msra.mxu0 0.0
        %985 = vmatpush.xpose.msra.mxu0 0.0
        %986 = vmatpush.xpose.msra.mxu0 0.0
        %987 = vmatpush.xpose.msra.mxu0 0.0
        %988 = vmatpush.xpose.msra.mxu0 0.0
        %989 = vmatpush.xpose.msra.mxu0 %v972
        %990 = vmatmul.f32.gmra.mxu0 %v970
        %v991 = vpop.f32.mrf.mxu0
        %v992 = vadd.f32 0.0, %v991
        %993 = vdwg.mxu0
        %995 = vrot.lane.b32.xlu0 %v959, 96
        %v996 = vpop.permute.xlu0 %995
        %v997 = vsel %vm969, %v959, 0
        %v999 = vsel %vm969, %v996, 0
        %1001 = vmatpush.xpose.msra.mxu0 0.0
        %1002 = vmatpush.xpose.msra.mxu0 0.0
        %1003 = vmatpush.xpose.msra.mxu0 0.0
        %1004 = vmatpush.xpose.msra.mxu0 0.0
        %1005 = vmatpush.xpose.msra.mxu0 0.0
        %1006 = vmatpush.xpose.msra.mxu0 0.0
        %1007 = vmatpush.xpose.msra.mxu0 0.0
        %1008 = vmatpush.xpose.msra.mxu0 0.0
        %1009 = vmatpush.xpose.msra.mxu0 0.0
        %1010 = vmatpush.xpose.msra.mxu0 0.0
        %1011 = vmatpush.xpose.msra.mxu0 0.0
        %1012 = vmatpush.xpose.msra.mxu0 0.0
        %1013 = vmatpush.xpose.msra.mxu0 0.0
        %1014 = vmatpush.xpose.msra.mxu0 0.0
        %1015 = vmatpush.xpose.msra.mxu0 0.0
        %1016 = vmatpush.xpose.msra.mxu0 %v999
        %1017 = vmatmul.f32.gmra.mxu0 %v997
        %v1018 = vpop.f32.mrf.mxu0
        %v1019 = vadd.f32 0.0, %v1018
        %1020 = vdwg.mxu0
        %v1021 = vmul.f32 %v992, 0.25
        %v1022 = vmul.f32 %v1019, 0.25
        %vm1023 = vcmask 64512
        %v1024 = vsel %vm1023, %v1021, -inf
        %1025 = vmax.xlane.f32.xlu0 %v1024
        %v1026 = vpop.xlane.xlu0 %1025
        %v1027 = vsel %vm1023, %v1022, -inf
        %1028 = vmax.xlane.f32.xlu0 %v1027
        %v1029 = vpop.xlane.xlu0 %1028
        %v1030 = vsub.f32 %v1021, %v1026
        %v1031 = vsub.f32 %v1022, %v1029
        %v1032 = vmul.f32 %v1030, 1.442695
        %v1033 = vpow.pop %v1032
        %v1034 = vmul.f32 %v1031, 1.442695
        %v1035 = vpow.pop %v1034
        %v1036 = vsel %vm1023, %v1033, 0.0
        %1037 = vadd.xlane.f32.xlu0 %v1036
        %v1038 = vpop.xlane.xlu0 %1037
        %v1039 = vsel %vm1023, %v1035, 0.0
        %1040 = vadd.xlane.f32.xlu0 %v1039
        %v1041 = vpop.xlane.xlu0 %1040
        %v1042 = vrcp.pop %v1038
        %v1043 = vrcp.pop %v1041
        %v1044 = vmul.f32 %v1033, %v1042
        %v1045 = vmul.f32 %v1035, %v1043
        %1046 = vrot.lane.b32.xlu0 %v956, 64
        %v1047 = vpop.permute.xlu0 %1046
        %v1050 = vsel %vm1023, %v1044, 0
        %1052 = vmatpush.msra.mxu0 0.0
        %1053 = vmatpush.msra.mxu0 0.0
        %1054 = vmatpush.msra.mxu0 0.0
        %1055 = vmatpush.msra.mxu0 0.0
        %1056 = vmatpush.msra.mxu0 0.0
        %1057 = vmatpush.msra.mxu0 0.0
        %1058 = vmatpush.msra.mxu0 0.0
        %1059 = vmatpush.msra.mxu0 0.0
        %1060 = vmatpush.msra.mxu0 0.0
        %1061 = vmatpush.msra.mxu0 0.0
        %1062 = vmatpush.msra.mxu0 0.0
        %1063 = vmatpush.msra.mxu0 0.0
        %1064 = vmatpush.msra.mxu0 0.0
        %1065 = vmatpush.msra.mxu0 0.0
        %1066 = vmatpush.msra.mxu0 0.0
        %1067 = vmatpush.msra.mxu0 %v1047
        %1068 = vmatmul.f32.gmra.mxu0 %v1050
        %v1069 = vpop.f32.mrf.mxu0
        %v1070 = vadd.f32 0.0, %v1069
        %1071 = vdwg.mxu0
        %1072 = vrot.lane.b32.xlu0 %v959, 64
        %v1073 = vpop.permute.xlu0 %1072
        %v1076 = vsel %vm1023, %v1045, 0
        %1078 = vmatpush.msra.mxu0 0.0
        %1079 = vmatpush.msra.mxu0 0.0
        %1080 = vmatpush.msra.mxu0 0.0
        %1081 = vmatpush.msra.mxu0 0.0
        %1082 = vmatpush.msra.mxu0 0.0
        %1083 = vmatpush.msra.mxu0 0.0
        %1084 = vmatpush.msra.mxu0 0.0
        %1085 = vmatpush.msra.mxu0 0.0
        %1086 = vmatpush.msra.mxu0 0.0
        %1087 = vmatpush.msra.mxu0 0.0
        %1088 = vmatpush.msra.mxu0 0.0
        %1089 = vmatpush.msra.mxu0 0.0
        %1090 = vmatpush.msra.mxu0 0.0
        %1091 = vmatpush.msra.mxu0 0.0
        %1092 = vmatpush.msra.mxu0 0.0
        %1093 = vmatpush.msra.mxu0 %v1073
        %1094 = vmatmul.f32.gmra.mxu0 %v1076
        %v1095 = vpop.f32.mrf.mxu0
        %v1096 = vadd.f32 0.0, %v1095
        %1097 = vdwg.mxu0
        %v1099 = vsel %vm969, %v1070, 0
        %v1102 = vsel %vm969, %v1096, 0
        %1104 = vmatpush.msra.mxu0 0.0
        %1105 = vmatpush.msra.mxu0 0.0
        %1106 = vmatpush.msra.mxu0 0.0
        %1107 = vmatpush.msra.mxu0 0.0
        %1108 = vmatpush.msra.mxu0 0.0
        %1109 = vmatpush.msra.mxu0 0.0
        %1110 = vmatpush.msra.mxu0 0.0
        %1111 = vmatpush.msra.mxu0 0.0
        %1112 = vmatpush.msra.mxu0 0.0
        %1113 = vmatpush.msra.mxu0 0.0
        %1114 = vmatpush.msra.mxu0 0.0
        %1115 = vmatpush.msra.mxu0 0.0
        %1116 = vmatpush.msra.mxu0 0.0
        %1117 = vmatpush.msra.mxu0 0.0
        %1118 = vmatpush.msra.mxu0 %v962
        %1119 = vmatpush.msra.mxu0 %v961
        %1120 = vmatmul.f32.gmra.mxu0 %v1099
        %v1121 = vpop.f32.mrf.mxu0
        %v1122 = vadd.f32 0.0, %v1121
        %1123 = vmatmul.f32.gmra.mxu0 %v1102
        %v1124 = vpop.f32.mrf.mxu0
        %v1125 = vadd.f32 0.0, %v1124
        %1126 = vdwg.mxu0
        %v1128 = vperm.slane %v965, 0
        %v1130 = vadd.f32 %v1128, %v1122
        %v1131 = vadd.f32 %v1128, %v1125
        %1132 = vrot.lane.b32.xlu0 %v956, 112
        %v1133 = vpop.permute.xlu0 %1132
        %1134 = vrot.lane.b32.xlu0 %v956, 80
        %v1135 = vpop.permute.xlu0 %1134
        %v1136 = vsel %vm969, %v1133, 0
        %v1138 = vsel %vm969, %v1135, 0
        %1140 = vmatpush.xpose.msra.mxu0 0.0
        %1141 = vmatpush.xpose.msra.mxu0 0.0
        %1142 = vmatpush.xpose.msra.mxu0 0.0
        %1143 = vmatpush.xpose.msra.mxu0 0.0
        %1144 = vmatpush.xpose.msra.mxu0 0.0
        %1145 = vmatpush.xpose.msra.mxu0 0.0
        %1146 = vmatpush.xpose.msra.mxu0 0.0
        %1147 = vmatpush.xpose.msra.mxu0 0.0
        %1148 = vmatpush.xpose.msra.mxu0 0.0
        %1149 = vmatpush.xpose.msra.mxu0 0.0
        %1150 = vmatpush.xpose.msra.mxu0 0.0
        %1151 = vmatpush.xpose.msra.mxu0 0.0
        %1152 = vmatpush.xpose.msra.mxu0 0.0
        %1153 = vmatpush.xpose.msra.mxu0 0.0
        %1154 = vmatpush.xpose.msra.mxu0 0.0
        %1155 = vmatpush.xpose.msra.mxu0 %v1138
        %1156 = vmatmul.f32.gmra.mxu0 %v1136
        %v1157 = vpop.f32.mrf.mxu0
        %v1158 = vadd.f32 0.0, %v1157
        %1159 = vdwg.mxu0
        %1160 = vrot.lane.b32.xlu0 %v959, 112
        %v1161 = vpop.permute.xlu0 %1160
        %1162 = vrot.lane.b32.xlu0 %v959, 80
        %v1163 = vpop.permute.xlu0 %1162
        %v1164 = vsel %vm969, %v1161, 0
        %v1166 = vsel %vm969, %v1163, 0
        %1168 = vmatpush.xpose.msra.mxu0 0.0
        %1169 = vmatpush.xpose.msra.mxu0 0.0
        %1170 = vmatpush.xpose.msra.mxu0 0.0
        %1171 = vmatpush.xpose.msra.mxu0 0.0
        %1172 = vmatpush.xpose.msra.mxu0 0.0
        %1173 = vmatpush.xpose.msra.mxu0 0.0
        %1174 = vmatpush.xpose.msra.mxu0 0.0
        %1175 = vmatpush.xpose.msra.mxu0 0.0
        %1176 = vmatpush.xpose.msra.mxu0 0.0
        %1177 = vmatpush.xpose.msra.mxu0 0.0
        %1178 = vmatpush.xpose.msra.mxu0 0.0
        %1179 = vmatpush.xpose.msra.mxu0 0.0
        %1180 = vmatpush.xpose.msra.mxu0 0.0
        %1181 = vmatpush.xpose.msra.mxu0 0.0
        %1182 = vmatpush.xpose.msra.mxu0 0.0
        %1183 = vmatpush.xpose.msra.mxu0 %v1166
        %1184 = vmatmul.f32.gmra.mxu0 %v1164
        %v1185 = vpop.f32.mrf.mxu0
        %v1186 = vadd.f32 0.0, %v1185
        %1187 = vdwg.mxu0
        %v1188 = vmul.f32 %v1158, 0.25
        %v1189 = vmul.f32 %v1186, 0.25
        %v1190 = vsel %vm1023, %v1188, -inf
        %1191 = vmax.xlane.f32.xlu0 %v1190
        %v1192 = vpop.xlane.xlu0 %1191
        %v1193 = vsel %vm1023, %v1189, -inf
        %1194 = vmax.xlane.f32.xlu0 %v1193
        %v1195 = vpop.xlane.xlu0 %1194
        %v1196 = vsub.f32 %v1188, %v1192
        %v1197 = vsub.f32 %v1189, %v1195
        %v1198 = vmul.f32 %v1196, 1.442695
        %v1199 = vpow.pop %v1198
        %v1200 = vmul.f32 %v1197, 1.442695
        %v1201 = vpow.pop %v1200
        %v1202 = vsel %vm1023, %v1199, 0.0
        %1203 = vadd.xlane.f32.xlu0 %v1202
        %v1204 = vpop.xlane.xlu0 %1203
        %v1205 = vsel %vm1023, %v1201, 0.0
        %1206 = vadd.xlane.f32.xlu0 %v1205
        %v1207 = vpop.xlane.xlu0 %1206
        %v1208 = vrcp.pop %v1204
        %v1209 = vrcp.pop %v1207
        %v1210 = vmul.f32 %v1199, %v1208
        %v1211 = vmul.f32 %v1201, %v1209
        %1212 = vrot.lane.b32.xlu0 %v956, 48
        %v1213 = vpop.permute.xlu0 %1212
        %v1216 = vsel %vm1023, %v1210, 0
        %1218 = vmatpush.msra.mxu0 0.0
        %1219 = vmatpush.msra.mxu0 0.0
        %1220 = vmatpush.msra.mxu0 0.0
        %1221 = vmatpush.msra.mxu0 0.0
        %1222 = vmatpush.msra.mxu0 0.0
        %1223 = vmatpush.msra.mxu0 0.0
        %1224 = vmatpush.msra.mxu0 0.0
        %1225 = vmatpush.msra.mxu0 0.0
        %1226 = vmatpush.msra.mxu0 0.0
        %1227 = vmatpush.msra.mxu0 0.0
        %1228 = vmatpush.msra.mxu0 0.0
        %1229 = vmatpush.msra.mxu0 0.0
        %1230 = vmatpush.msra.mxu0 0.0
        %1231 = vmatpush.msra.mxu0 0.0
        %1232 = vmatpush.msra.mxu0 0.0
        %1233 = vmatpush.msra.mxu0 %v1213
        %1234 = vmatmul.f32.gmra.mxu0 %v1216
        %v1235 = vpop.f32.mrf.mxu0
        %v1236 = vadd.f32 0.0, %v1235
        %1237 = vdwg.mxu0
        %1238 = vrot.lane.b32.xlu0 %v959, 48
        %v1239 = vpop.permute.xlu0 %1238
        %v1242 = vsel %vm1023, %v1211, 0
        %1244 = vmatpush.msra.mxu0 0.0
        %1245 = vmatpush.msra.mxu0 0.0
        %1246 = vmatpush.msra.mxu0 0.0
        %1247 = vmatpush.msra.mxu0 0.0
        %1248 = vmatpush.msra.mxu0 0.0
        %1249 = vmatpush.msra.mxu0 0.0
        %1250 = vmatpush.msra.mxu0 0.0
        %1251 = vmatpush.msra.mxu0 0.0
        %1252 = vmatpush.msra.mxu0 0.0
        %1253 = vmatpush.msra.mxu0 0.0
        %1254 = vmatpush.msra.mxu0 0.0
        %1255 = vmatpush.msra.mxu0 0.0
        %1256 = vmatpush.msra.mxu0 0.0
        %1257 = vmatpush.msra.mxu0 0.0
        %1258 = vmatpush.msra.mxu0 0.0
        %1259 = vmatpush.msra.mxu0 %v1239
        %1260 = vmatmul.f32.gmra.mxu0 %v1242
        %v1261 = vpop.f32.mrf.mxu0
        %v1262 = vadd.f32 0.0, %v1261
        %1263 = vdwg.mxu0
        %v1265 = vsel %vm969, %v1236, 0
        %v1268 = vsel %vm969, %v1262, 0
        %1270 = vmatpush.msra.mxu0 0.0
        %1271 = vmatpush.msra.mxu0 0.0
        %1272 = vmatpush.msra.mxu0 0.0
        %1273 = vmatpush.msra.mxu0 0.0
        %1274 = vmatpush.msra.mxu0 0.0
        %1275 = vmatpush.msra.mxu0 0.0
        %1276 = vmatpush.msra.mxu0 0.0
        %1277 = vmatpush.msra.mxu0 0.0
        %1278 = vmatpush.msra.mxu0 0.0
        %1279 = vmatpush.msra.mxu0 0.0
        %1280 = vmatpush.msra.mxu0 0.0
        %1281 = vmatpush.msra.mxu0 0.0
        %1282 = vmatpush.msra.mxu0 0.0
        %1283 = vmatpush.msra.mxu0 0.0
        %1284 = vmatpush.msra.mxu0 %v964
        %1285 = vmatpush.msra.mxu0 %v963
        %1286 = vmatmul.f32.gmra.mxu0 %v1265
        %v1287 = vpop.f32.mrf.mxu0
        %v1288 = vadd.f32 0.0, %v1287
        %1289 = vmatmul.f32.gmra.mxu0 %v1268
        %v1290 = vpop.f32.mrf.mxu0
        %v1291 = vadd.f32 0.0, %v1290
        %1292 = vdwg.mxu0
        %v1293 = vadd.f32 %v1130, %v1288
        %v1294 = vadd.f32 %v1131, %v1291
        %v1295 = vadd.f32 %v921, %v1293
        %v1296 = vadd.f32 %v922, %v1294
        %v1297 = vld [vmem:[%s823] sm:$0x1]
        %v1298 = vld [vmem:[%s826] sm:$0x1]
        %v1299 = vsel %vm931, %v1295, 0.0
        %1300 = vadd.xlane.f32.xlu0 %v1299
        %v1301 = vpop.xlane.xlu0 %1300
        %v1302 = vsel %vm931, %v1296, 0.0
        %1303 = vadd.xlane.f32.xlu0 %v1302
        %v1304 = vpop.xlane.xlu0 %1303
        %v1305 = vrcp.pop 32.0
        %v1306 = vmul.f32 32.0, %v1305
        %v1307 = vsub.f32 1.0, %v1306
        %v1308 = vmul.f32 %v1305, %v1307
        %v1309 = vadd.f32 %v1305, %v1308
        %vm1310 = vweird.f32 %v1305
        %v1311 = vsel %vm1310, %v1305, %v1309
        %v1312 = vmul.f32 %v1301, %v1311
        %v1313 = vmul.f32 %v1304, %v1311
        %v1314 = vsub.f32 %v1295, %v1312
        %v1315 = vsub.f32 %v1296, %v1313
        %v1316 = vmul.f32 %v1314, %v1314
        %v1317 = vmul.f32 %v1315, %v1315
        %v1318 = vsel %vm931, %v1316, 0.0
        %1319 = vadd.xlane.f32.xlu0 %v1318
        %v1320 = vpop.xlane.xlu0 %1319
        %v1321 = vsel %vm931, %v1317, 0.0
        %1322 = vadd.xlane.f32.xlu0 %v1321
        %v1323 = vpop.xlane.xlu0 %1322
        %v1324 = vmul.f32 %v1320, %v1311
        %v1325 = vmul.f32 %v1323, %v1311
        %v1326 = vadd.f32 %v1324, 1e-12
        %v1327 = vadd.f32 %v1325, 1e-12
        %v1328 = vrsqrt.pop %v1326
        %v1329 = vmul.f32 %v1328, %v1326
        %v1330 = vmul.f32 %v1329, %v1328
        %v1331 = vmul.f32 0.5, %v1330
        %v1332 = vsub.f32 1.5, %v1331
        %v1333 = vmul.f32 %v1328, %v1332
        %vm1334 = vweird.f32 %v1326
        %vm1335 = vweird.f32 %v1328
        %vm1336 = vmor %vm1334, %vm1335
        %v1337 = vsel %vm1336, %v1328, %v1333
        %v1338 = vrsqrt.pop %v1327
        %v1339 = vmul.f32 %v1338, %v1327
        %v1340 = vmul.f32 %v1339, %v1338
        %v1341 = vmul.f32 0.5, %v1340
        %v1342 = vsub.f32 1.5, %v1341
        %v1343 = vmul.f32 %v1338, %v1342
        %vm1344 = vweird.f32 %v1327
        %vm1345 = vweird.f32 %v1338
        %vm1346 = vmor %vm1344, %vm1345
        %v1347 = vsel %vm1346, %v1338, %v1343
        %v1348 = vmul.f32 %v1314, %v1337
        %v1349 = vmul.f32 %v1315, %v1347
        %v1351 = vperm.slane %v1297, 0
        %v1353 = vmul.f32 %v1348, %v1351
        %v1354 = vmul.f32 %v1349, %v1351
        %v1356 = vperm.slane %v1298, 0
        %v1358 = vadd.f32 %v1353, %v1356
        %v1359 = vadd.f32 %v1354, %v1356
        %v1360 = vld [vmem:[%s831] sm:$0xff]
        %v1361 = vld [vmem:[%s831 + $0x8] sm:$0xff]
        %v1362 = vld [vmem:[%s831 + $0x10] sm:$0xff]
        %v1363 = vld [vmem:[%s831 + $0x18] sm:$0xff]
        %v1364 = vld [vmem:[%s834] sm:$0x1]
        %v1366 = vperm.slane %v1364, 0
        %v1369 = vsel %vm931, %v1358, 0
        %v1372 = vsel %vm931, %v1359, 0
        %1374 = vmatpush.msra.mxu0 0.0
        %1375 = vmatpush.msra.mxu0 0.0
        %1376 = vmatpush.msra.mxu0 0.0
        %1377 = vmatpush.msra.mxu0 0.0
        %1378 = vmatpush.msra.mxu0 0.0
        %1379 = vmatpush.msra.mxu0 0.0
        %1380 = vmatpush.msra.mxu0 0.0
        %1381 = vmatpush.msra.mxu0 0.0
        %1382 = vmatpush.msra.mxu0 0.0
        %1383 = vmatpush.msra.mxu0 0.0
        %1384 = vmatpush.msra.mxu0 0.0
        %1385 = vmatpush.msra.mxu0 0.0
        %1386 = vmatpush.msra.mxu0 %v1363
        %1387 = vmatpush.msra.mxu0 %v1362
        %1388 = vmatpush.msra.mxu0 %v1361
        %1389 = vmatpush.msra.mxu0 %v1360
        %1390 = vmatmul.f32.gmra.mxu0 %v1369
        %v1391 = vpop.f32.mrf.mxu0
        %v1392 = vadd.f32 %v1366, %v1391
        %1393 = vmatmul.f32.gmra.mxu0 %v1372
        %v1394 = vpop.f32.mrf.mxu0
        %v1395 = vadd.f32 %v1366, %v1394
        %1396 = vdwg.mxu0
        %v1397 = vmul.f32 %v1392, %v1392
        %v1398 = vmul.f32 %v1395, %v1395
        %v1399 = vmul.f32 %v1392, %v1397
        %v1400 = vmul.f32 %v1395, %v1398
        %v1401 = vmul.f32 %v1399, 0.044715
        %v1402 = vmul.f32 %v1400, 0.044715
        %v1403 = vadd.f32 %v1392, %v1401
        %v1404 = vadd.f32 %v1395, %v1402
        %v1405 = vmul.f32 %v1403, 0.7978846
        %v1406 = vmul.f32 %v1404, 0.7978846
        %v1407 = vtanh.pop %v1405
        %v1408 = vtanh.pop %v1406
        %v1409 = vadd.f32 %v1407, 1.0
        %v1410 = vadd.f32 %v1408, 1.0
        %v1411 = vmul.f32 %v1409, 0.5
        %v1412 = vmul.f32 %v1410, 0.5
        %v1413 = vmul.f32 %v1392, %v1411
        %v1414 = vmul.f32 %v1395, %v1412
        %v1415 = vld [vmem:[%s839] sm:$0xff]
        %v1416 = vld [vmem:[%s839 + $0x8] sm:$0xff]
        %v1417 = vld [vmem:[%s839 + $0x10] sm:$0xff]
        %v1418 = vld [vmem:[%s839 + $0x18] sm:$0xff]
        %v1419 = vld [vmem:[%s839 + $0x20] sm:$0xff]
        %v1420 = vld [vmem:[%s839 + $0x28] sm:$0xff]
        %v1421 = vld [vmem:[%s839 + $0x30] sm:$0xff]
        %v1422 = vld [vmem:[%s839 + $0x38] sm:$0xff]
        %v1423 = vld [vmem:[%s839 + $0x40] sm:$0xff]
        %v1424 = vld [vmem:[%s839 + $0x48] sm:$0xff]
        %v1425 = vld [vmem:[%s839 + $0x50] sm:$0xff]
        %v1426 = vld [vmem:[%s839 + $0x58] sm:$0xff]
        %v1427 = vld [vmem:[%s839 + $0x60] sm:$0xff]
        %v1428 = vld [vmem:[%s839 + $0x68] sm:$0xff]
        %v1429 = vld [vmem:[%s839 + $0x70] sm:$0xff]
        %v1430 = vld [vmem:[%s839 + $0x78] sm:$0xff]
        %v1431 = vld [vmem:[%s842] sm:$0x1]
        %v1433 = vperm.slane %v1431, 0
        %1435 = vmatpush.msra.mxu0 %v1430
        %1436 = vmatpush.msra.mxu0 %v1429
        %1437 = vmatpush.msra.mxu0 %v1428
        %1438 = vmatpush.msra.mxu0 %v1427
        %1439 = vmatpush.msra.mxu0 %v1426
        %1440 = vmatpush.msra.mxu0 %v1425
        %1441 = vmatpush.msra.mxu0 %v1424
        %1442 = vmatpush.msra.mxu0 %v1423
        %1443 = vmatpush.msra.mxu0 %v1422
        %1444 = vmatpush.msra.mxu0 %v1421
        %1445 = vmatpush.msra.mxu0 %v1420
        %1446 = vmatpush.msra.mxu0 %v1419
        %1447 = vmatpush.msra.mxu0 %v1418
        %1448 = vmatpush.msra.mxu0 %v1417
        %1449 = vmatpush.msra.mxu0 %v1416
        %1450 = vmatpush.msra.mxu0 %v1415
        %1451 = vmatmul.f32.gmra.mxu0 %v1413
        %v1452 = vpop.f32.mrf.mxu0
        %v1453 = vadd.f32 %v1433, %v1452
        %1454 = vmatmul.f32.gmra.mxu0 %v1414
        %v1455 = vpop.f32.mrf.mxu0
        %v1456 = vadd.f32 %v1433, %v1455
        %1457 = vdwg.mxu0
        %v1458 = vadd.f32 %v1358, %v1453
        %v1459 = vadd.f32 %v1359, %v1456
        %v1460 = vld [vmem:[%s845] sm:$0x1]
        %v1461 = vld [vmem:[%s848] sm:$0x1]
        %v1462 = vsel %vm931, %v1458, 0.0
        %1463 = vadd.xlane.f32.xlu0 %v1462
        %v1464 = vpop.xlane.xlu0 %1463
        %v1465 = vsel %vm931, %v1459, 0.0
        %1466 = vadd.xlane.f32.xlu0 %v1465
        %v1467 = vpop.xlane.xlu0 %1466
        %v1468 = vmul.f32 %v1464, %v1311
        %v1469 = vmul.f32 %v1467, %v1311
        %v1470 = vsub.f32 %v1458, %v1468
        %v1471 = vsub.f32 %v1459, %v1469
        %v1472 = vmul.f32 %v1470, %v1470
        %v1473 = vmul.f32 %v1471, %v1471
        %v1474 = vsel %vm931, %v1472, 0.0
        %1475 = vadd.xlane.f32.xlu0 %v1474
        %v1476 = vpop.xlane.xlu0 %1475
        %v1477 = vsel %vm931, %v1473, 0.0
        %1478 = vadd.xlane.f32.xlu0 %v1477
        %v1479 = vpop.xlane.xlu0 %1478
        %v1480 = vmul.f32 %v1476, %v1311
        %v1481 = vmul.f32 %v1479, %v1311
        %v1482 = vadd.f32 %v1480, 1e-12
        %v1483 = vadd.f32 %v1481, 1e-12
        %v1484 = vrsqrt.pop %v1482
        %v1485 = vmul.f32 %v1484, %v1482
        %v1486 = vmul.f32 %v1485, %v1484
        %v1487 = vmul.f32 0.5, %v1486
        %v1488 = vsub.f32 1.5, %v1487
        %v1489 = vmul.f32 %v1484, %v1488
        %vm1490 = vweird.f32 %v1482
        %vm1491 = vweird.f32 %v1484
        %vm1492 = vmor %vm1490, %vm1491
        %v1493 = vsel %vm1492, %v1484, %v1489
        %v1494 = vrsqrt.pop %v1483
        %v1495 = vmul.f32 %v1494, %v1483
        %v1496 = vmul.f32 %v1495, %v1494
        %v1497 = vmul.f32 0.5, %v1496
        %v1498 = vsub.f32 1.5, %v1497
        %v1499 = vmul.f32 %v1494, %v1498
        %vm1500 = vweird.f32 %v1483
        %vm1501 = vweird.f32 %v1494
        %vm1502 = vmor %vm1500, %vm1501
        %v1503 = vsel %vm1502, %v1494, %v1499
        %v1504 = vmul.f32 %v1470, %v1493
        %v1505 = vmul.f32 %v1471, %v1503
        %v1507 = vperm.slane %v1460, 0
        %v1509 = vmul.f32 %v1504, %v1507
        %v1510 = vmul.f32 %v1505, %v1507
        %v1512 = vperm.slane %v1461, 0
        %v1514 = vadd.f32 %v1509, %v1512
        %v1515 = vadd.f32 %v1510, %v1512
        %1516 = vst.msk [vmem:[#allocation2] sm:$0xff] %vm931, %v1514
        %1517 = vst.msk [vmem:[#allocation2 + $0x8] sm:$0xff] %vm931, %v1515
        %p1518 = scmp.eq.s32.totalorder %s35, 1
        // Predicated region
        $region117: #{bert_imdb_forward.1} parent=103 // pred_check
          %p1519 = pneg %p1518
        $region118: #{bert_imdb_forward.1} parent=103 // pred_check_branch
          %1521 = sbr.rel (%p1519) target = $region120
        $region119: #{bert_imdb_forward.1} parent=103 // pred_region
          %v1522 = vld [vmem:[%s15] sm:$0xff]
          %v1523 = vld [vmem:[%s15 + $0x8] sm:$0xff]
          %v1524 = vld [vmem:[%s15 + $0x10] sm:$0xff]
          %v1525 = vld [vmem:[%s15 + $0x18] sm:$0xff]
          %v1526 = vld [vmem:[%s15 + $0x20] sm:$0xff]
          %v1527 = vld [vmem:[%s15 + $0x28] sm:$0xff]
          %v1528 = vld [vmem:[%s15 + $0x30] sm:$0xff]
          %v1529 = vld [vmem:[%s15 + $0x38] sm:$0xff]
          %v1530 = vld [vmem:[%s15 + $0x40] sm:$0xff]
          %v1531 = vld [vmem:[%s15 + $0x48] sm:$0xff]
          %v1532 = vld [vmem:[%s15 + $0x50] sm:$0xff]
          %v1533 = vld [vmem:[%s15 + $0x58] sm:$0xff]
          %v1534 = vld [vmem:[%s15 + $0x60] sm:$0xff]
          %v1535 = vld [vmem:[%s15 + $0x68] sm:$0xff]
          %v1536 = vld [vmem:[%s15 + $0x70] sm:$0xff]
          %v1537 = vld [vmem:[%s15 + $0x78] sm:$0xff]
          %v1538 = vld [vmem:[%s16] sm:$0xf]
          %v1540 = vperm.slane %v1538, 0
          %v1541 = vperm.slane %v1538, 1
          %v1542 = vperm.slane %v1538, 2
          %v1543 = vperm.slane %v1538, 3
          %v1550 = vrot.slane %v1515, 7
          %vm1551 = vcmask 1041409
          %v1552 = vsel %vm1551, %v1550, %v1514
          %v1553 = vsel %vm931, %v1552, 0
          %1555 = vmatpush.msra.mxu0 0.0
          %1556 = vmatpush.msra.mxu0 0.0
          %1557 = vmatpush.msra.mxu0 0.0
          %1558 = vmatpush.msra.mxu0 0.0
          %1559 = vmatpush.msra.mxu0 0.0
          %1560 = vmatpush.msra.mxu0 0.0
          %1561 = vmatpush.msra.mxu0 0.0
          %1562 = vmatpush.msra.mxu0 0.0
          %1563 = vmatpush.msra.mxu0 0.0
          %1564 = vmatpush.msra.mxu0 0.0
          %1565 = vmatpush.msra.mxu0 0.0
          %1566 = vmatpush.msra.mxu0 0.0
          %1567 = vmatpush.msra.mxu0 %v1534
          %1568 = vmatpush.msra.mxu0 %v1530
          %1569 = vmatpush.msra.mxu0 %v1526
          %1570 = vmatpush.msra.mxu0 %v1522
          %1571 = vmatmul.f32.gmra.mxu0 %v1553
          %v1572 = vpop.f32.mrf.mxu0
          %v1573 = vadd.f32 %v1540, %v1572
          %1574 = vdwg.mxu0
          %1575 = vmatpush.msra.mxu0 0.0
          %1576 = vmatpush.msra.mxu0 0.0
          %1577 = vmatpush.msra.mxu0 0.0
          %1578 = vmatpush.msra.mxu0 0.0
          %1579 = vmatpush.msra.mxu0 0.0
          %1580 = vmatpush.msra.mxu0 0.0
          %1581 = vmatpush.msra.mxu0 0.0
          %1582 = vmatpush.msra.mxu0 0.0
          %1583 = vmatpush.msra.mxu0 0.0
          %1584 = vmatpush.msra.mxu0 0.0
          %1585 = vmatpush.msra.mxu0 0.0
          %1586 = vmatpush.msra.mxu0 0.0
          %1587 = vmatpush.msra.mxu0 %v1535
          %1588 = vmatpush.msra.mxu0 %v1531
          %1589 = vmatpush.msra.mxu0 %v1527
          %1590 = vmatpush.msra.mxu0 %v1523
          %1591 = vmatmul.f32.gmra.mxu0 %v1553
          %v1592 = vpop.f32.mrf.mxu0
          %v1593 = vadd.f32 %v1541, %v1592
          %1594 = vdwg.mxu0
          %1595 = vmatpush.msra.mxu0 0.0
          %1596 = vmatpush.msra.mxu0 0.0
          %1597 = vmatpush.msra.mxu0 0.0
          %1598 = vmatpush.msra.mxu0 0.0
          %1599 = vmatpush.msra.mxu0 0.0
          %1600 = vmatpush.msra.mxu0 0.0
          %1601 = vmatpush.msra.mxu0 0.0
          %1602 = vmatpush.msra.mxu0 0.0
          %1603 = vmatpush.msra.mxu0 0.0
          %1604 = vmatpush.msra.mxu0 0.0
          %1605 = vmatpush.msra.mxu0 0.0
          %1606 = vmatpush.msra.mxu0 0.0
          %1607 = vmatpush.msra.mxu0 %v1536
          %1608 = vmatpush.msra.mxu0 %v1532
          %1609 = vmatpush.msra.mxu0 %v1528
          %1610 = vmatpush.msra.mxu0 %v1524
          %1611 = vmatmul.f32.gmra.mxu0 %v1553
          %v1612 = vpop.f32.mrf.mxu0
          %v1613 = vadd.f32 %v1542, %v1612
          %1614 = vdwg.mxu0
          %1615 = vmatpush.msra.mxu0 0.0
          %1616 = vmatpush.msra.mxu0 0.0
          %1617 = vmatpush.msra.mxu0 0.0
          %1618 = vmatpush.msra.mxu0 0.0
          %1619 = vmatpush.msra.mxu0 0.0
          %1620 = vmatpush.msra.mxu0 0.0
          %1621 = vmatpush.msra.mxu0 0.0
          %1622 = vmatpush.msra.mxu0 0.0
          %1623 = vmatpush.msra.mxu0 0.0
          %1624 = vmatpush.msra.mxu0 0.0
          %1625 = vmatpush.msra.mxu0 0.0
          %1626 = vmatpush.msra.mxu0 0.0
          %1627 = vmatpush.msra.mxu0 %v1537
          %1628 = vmatpush.msra.mxu0 %v1533
          %1629 = vmatpush.msra.mxu0 %v1529
          %1630 = vmatpush.msra.mxu0 %v1525
          %1631 = vmatmul.f32.gmra.mxu0 %v1553
          %v1632 = vpop.f32.mrf.mxu0
          %v1633 = vadd.f32 %v1543, %v1632
          %1634 = vdwg.mxu0
          %v1635 = vmax.f32 %v1573, 0.0
          %v1636 = vmax.f32 %v1593, 0.0
          %v1637 = vmax.f32 %v1613, 0.0
          %v1638 = vmax.f32 %v1633, 0.0
          %v1639 = vld [vmem:[#allocation3] sm:$0xff]
          %v1640 = vld [vmem:[#allocation3 + $0x8] sm:$0xff]
          %v1641 = vld [vmem:[#allocation3 + $0x10] sm:$0xff]
          %v1642 = vld [vmem:[#allocation3 + $0x18] sm:$0xff]
          %v1643 = vld [vmem:[#allocation3 + $0x20] sm:$0xff]
          %v1644 = vld [vmem:[#allocation3 + $0x28] sm:$0xff]
          %v1645 = vld [vmem:[#allocation3 + $0x30] sm:$0xff]
          %v1646 = vld [vmem:[#allocation3 + $0x38] sm:$0xff]
          %v1647 = vld [vmem:[#allocation3 + $0x40] sm:$0xff]
          %v1648 = vld [vmem:[#allocation3 + $0x48] sm:$0xff]
          %v1649 = vld [vmem:[#allocation3 + $0x50] sm:$0xff]
          %v1650 = vld [vmem:[#allocation3 + $0x58] sm:$0xff]
          %v1651 = vld [vmem:[#allocation3 + $0x60] sm:$0xff]
          %v1652 = vld [vmem:[#allocation3 + $0x68] sm:$0xff]
          %v1653 = vld [vmem:[#allocation3 + $0x70] sm:$0xff]
          %v1654 = vld [vmem:[#allocation3 + $0x78] sm:$0xff]
          %v1655 = vld [vmem:[#allocation3 + $0x80] sm:$0xff]
          %v1656 = vld [vmem:[#allocation3 + $0x88] sm:$0xff]
          %v1657 = vld [vmem:[#allocation3 + $0x90] sm:$0xff]
          %v1658 = vld [vmem:[#allocation3 + $0x98] sm:$0xff]
          %v1659 = vld [vmem:[#allocation3 + $0xa0] sm:$0xff]
          %v1660 = vld [vmem:[#allocation3 + $0xa8] sm:$0xff]
          %v1661 = vld [vmem:[#allocation3 + $0xb0] sm:$0xff]
          %v1662 = vld [vmem:[#allocation3 + $0xb8] sm:$0xff]
          %v1663 = vld [vmem:[#allocation3 + $0xc0] sm:$0xff]
          %v1664 = vld [vmem:[#allocation3 + $0xc8] sm:$0xff]
          %v1665 = vld [vmem:[#allocation3 + $0xd0] sm:$0xff]
          %v1666 = vld [vmem:[#allocation3 + $0xd8] sm:$0xff]
          %v1667 = vld [vmem:[#allocation3 + $0xe0] sm:$0xff]
          %v1668 = vld [vmem:[#allocation3 + $0xe8] sm:$0xff]
          %v1669 = vld [vmem:[#allocation3 + $0xf0] sm:$0xff]
          %v1670 = vld [vmem:[#allocation3 + $0xf8] sm:$0xff]
          %v1671 = vld [vmem:[#allocation3 + $0x100] sm:$0xff]
          %v1672 = vld [vmem:[#allocation3 + $0x108] sm:$0xff]
          %v1673 = vld [vmem:[#allocation3 + $0x110] sm:$0xff]
          %v1674 = vld [vmem:[#allocation3 + $0x118] sm:$0xff]
          %v1675 = vld [vmem:[#allocation3 + $0x120] sm:$0xff]
          %v1676 = vld [vmem:[#allocation3 + $0x128] sm:$0xff]
          %v1677 = vld [vmem:[#allocation3 + $0x130] sm:$0xff]
          %v1678 = vld [vmem:[#allocation3 + $0x138] sm:$0xff]
          %v1679 = vld [vmem:[#allocation3 + $0x140] sm:$0xff]
          %v1680 = vld [vmem:[#allocation3 + $0x148] sm:$0xff]
          %v1681 = vld [vmem:[#allocation3 + $0x150] sm:$0xff]
          %v1682 = vld [vmem:[#allocation3 + $0x158] sm:$0xff]
          %v1683 = vld [vmem:[#allocation3 + $0x160] sm:$0xff]
          %v1684 = vld [vmem:[#allocation3 + $0x168] sm:$0xff]
          %v1685 = vld [vmem:[#allocation3 + $0x170] sm:$0xff]
          %v1686 = vld [vmem:[#allocation3 + $0x178] sm:$0xff]
          %v1687 = vld [vmem:[#allocation3 + $0x180] sm:$0xff]
          %v1688 = vld [vmem:[#allocation3 + $0x188] sm:$0xff]
          %v1689 = vld [vmem:[#allocation3 + $0x190] sm:$0xff]
          %v1690 = vld [vmem:[#allocation3 + $0x198] sm:$0xff]
          %v1691 = vld [vmem:[#allocation3 + $0x1a0] sm:$0xff]
          %v1692 = vld [vmem:[#allocation3 + $0x1a8] sm:$0xff]
          %v1693 = vld [vmem:[#allocation3 + $0x1b0] sm:$0xff]
          %v1694 = vld [vmem:[#allocation3 + $0x1b8] sm:$0xff]
          %v1695 = vld [vmem:[#allocation3 + $0x1c0] sm:$0xff]
          %v1696 = vld [vmem:[#allocation3 + $0x1c8] sm:$0xff]
          %v1697 = vld [vmem:[#allocation3 + $0x1d0] sm:$0xff]
          %v1698 = vld [vmem:[#allocation3 + $0x1d8] sm:$0xff]
          %v1699 = vld [vmem:[#allocation3 + $0x1e0] sm:$0xff]
          %v1700 = vld [vmem:[#allocation3 + $0x1e8] sm:$0xff]
          %v1701 = vld [vmem:[#allocation3 + $0x1f0] sm:$0xff]
          %v1702 = vld [vmem:[#allocation3 + $0x1f8] sm:$0xff]
          %v1703 = vld [vmem:[#allocation3 + $0x200] sm:$0xff]
          %v1704 = vld [vmem:[#allocation3 + $0x208] sm:$0xff]
          %v1705 = vld [vmem:[#allocation3 + $0x210] sm:$0xff]
          %v1706 = vld [vmem:[#allocation3 + $0x218] sm:$0xff]
          %v1707 = vld [vmem:[#allocation3 + $0x220] sm:$0xff]
          %v1708 = vld [vmem:[#allocation3 + $0x228] sm:$0xff]
          %v1709 = vld [vmem:[#allocation3 + $0x230] sm:$0xff]
          %v1710 = vld [vmem:[#allocation3 + $0x238] sm:$0xff]
          %v1711 = vld [vmem:[#allocation3 + $0x240] sm:$0xff]
          %v1712 = vld [vmem:[#allocation3 + $0x248] sm:$0xff]
          %v1713 = vld [vmem:[#allocation3 + $0x250] sm:$0xff]
          %v1714 = vld [vmem:[#allocation3 + $0x258] sm:$0xff]
          %v1715 = vld [vmem:[#allocation3 + $0x260] sm:$0xff]
          %v1716 = vld [vmem:[#allocation3 + $0x268] sm:$0xff]
          %v1717 = vld [vmem:[#allocation3 + $0x270] sm:$0xff]
          %v1718 = vld [vmem:[#allocation3 + $0x278] sm:$0xff]
          %v1719 = vld [vmem:[#allocation3 + $0x280] sm:$0xff]
          %v1720 = vld [vmem:[#allocation3 + $0x288] sm:$0xff]
          %v1721 = vld [vmem:[#allocation3 + $0x290] sm:$0xff]
          %v1722 = vld [vmem:[#allocation3 + $0x298] sm:$0xff]
          %v1723 = vld [vmem:[#allocation3 + $0x2a0] sm:$0xff]
          %v1724 = vld [vmem:[#allocation3 + $0x2a8] sm:$0xff]
          %v1725 = vld [vmem:[#allocation3 + $0x2b0] sm:$0xff]
          %v1726 = vld [vmem:[#allocation3 + $0x2b8] sm:$0xff]
          %v1727 = vld [vmem:[#allocation3 + $0x2c0] sm:$0xff]
          %v1728 = vld [vmem:[#allocation3 + $0x2c8] sm:$0xff]
          %v1729 = vld [vmem:[#allocation3 + $0x2d0] sm:$0xff]
          %v1730 = vld [vmem:[#allocation3 + $0x2d8] sm:$0xff]
          %v1731 = vld [vmem:[#allocation3 + $0x2e0] sm:$0xff]
          %v1732 = vld [vmem:[#allocation3 + $0x2e8] sm:$0xff]
          %v1733 = vld [vmem:[#allocation3 + $0x2f0] sm:$0xff]
          %v1734 = vld [vmem:[#allocation3 + $0x2f8] sm:$0xff]
          %v1735 = vld [vmem:[#allocation3 + $0x300] sm:$0xff]
          %v1736 = vld [vmem:[#allocation3 + $0x308] sm:$0xff]
          %v1737 = vld [vmem:[#allocation3 + $0x310] sm:$0xff]
          %v1738 = vld [vmem:[#allocation3 + $0x318] sm:$0xff]
          %v1739 = vld [vmem:[#allocation3 + $0x320] sm:$0xff]
          %v1740 = vld [vmem:[#allocation3 + $0x328] sm:$0xff]
          %v1741 = vld [vmem:[#allocation3 + $0x330] sm:$0xff]
          %v1742 = vld [vmem:[#allocation3 + $0x338] sm:$0xff]
          %v1743 = vld [vmem:[#allocation3 + $0x340] sm:$0xff]
          %v1744 = vld [vmem:[#allocation3 + $0x348] sm:$0xff]
          %v1745 = vld [vmem:[#allocation3 + $0x350] sm:$0xff]
          %v1746 = vld [vmem:[#allocation3 + $0x358] sm:$0xff]
          %v1747 = vld [vmem:[#allocation3 + $0x360] sm:$0xff]
          %v1748 = vld [vmem:[#allocation3 + $0x368] sm:$0xff]
          %v1749 = vld [vmem:[#allocation3 + $0x370] sm:$0xff]
          %v1750 = vld [vmem:[#allocation3 + $0x378] sm:$0xff]
          %v1751 = vld [vmem:[#allocation3 + $0x380] sm:$0xff]
          %v1752 = vld [vmem:[#allocation3 + $0x388] sm:$0xff]
          %v1753 = vld [vmem:[#allocation3 + $0x390] sm:$0xff]
          %v1754 = vld [vmem:[#allocation3 + $0x398] sm:$0xff]
          %v1755 = vld [vmem:[#allocation3 + $0x3a0] sm:$0xff]
          %v1756 = vld [vmem:[#allocation3 + $0x3a8] sm:$0xff]
          %v1757 = vld [vmem:[#allocation3 + $0x3b0] sm:$0xff]
          %v1758 = vld [vmem:[#allocation3 + $0x3b8] sm:$0xff]
          %v1759 = vld [vmem:[#allocation3 + $0x3c0] sm:$0xff]
          %v1760 = vld [vmem:[#allocation3 + $0x3c8] sm:$0xff]
          %v1761 = vld [vmem:[#allocation3 + $0x3d0] sm:$0xff]
          %v1762 = vld [vmem:[#allocation3 + $0x3d8] sm:$0xff]
          %v1763 = vld [vmem:[#allocation3 + $0x3e0] sm:$0xff]
          %v1764 = vld [vmem:[#allocation3 + $0x3e8] sm:$0xff]
          %v1765 = vld [vmem:[#allocation3 + $0x3f0] sm:$0xff]
          %v1766 = vld [vmem:[#allocation3 + $0x3f8] sm:$0xff]
          %v1767 = vld [vmem:[#allocation3 + $0x400] sm:$0xff]
          %v1768 = vld [vmem:[#allocation3 + $0x408] sm:$0xff]
          %v1769 = vld [vmem:[#allocation3 + $0x410] sm:$0xff]
          %v1770 = vld [vmem:[#allocation3 + $0x418] sm:$0xff]
          %v1771 = vld [vmem:[#allocation3 + $0x420] sm:$0xff]
          %v1772 = vld [vmem:[#allocation3 + $0x428] sm:$0xff]
          %v1773 = vld [vmem:[#allocation3 + $0x430] sm:$0xff]
          %v1774 = vld [vmem:[#allocation3 + $0x438] sm:$0xff]
          %v1775 = vld [vmem:[#allocation3 + $0x440] sm:$0xff]
          %v1776 = vld [vmem:[#allocation3 + $0x448] sm:$0xff]
          %v1777 = vld [vmem:[#allocation3 + $0x450] sm:$0xff]
          %v1778 = vld [vmem:[#allocation3 + $0x458] sm:$0xff]
          %v1779 = vld [vmem:[#allocation3 + $0x460] sm:$0xff]
          %v1780 = vld [vmem:[#allocation3 + $0x468] sm:$0xff]
          %v1781 = vld [vmem:[#allocation3 + $0x470] sm:$0xff]
          %v1782 = vld [vmem:[#allocation3 + $0x478] sm:$0xff]
          %v1783 = vld [vmem:[#allocation3 + $0x480] sm:$0xff]
          %v1784 = vld [vmem:[#allocation3 + $0x488] sm:$0xff]
          %v1785 = vld [vmem:[#allocation3 + $0x490] sm:$0xff]
          %v1786 = vld [vmem:[#allocation3 + $0x498] sm:$0xff]
          %v1787 = vld [vmem:[#allocation3 + $0x4a0] sm:$0xff]
          %v1788 = vld [vmem:[#allocation3 + $0x4a8] sm:$0xff]
          %v1789 = vld [vmem:[#allocation3 + $0x4b0] sm:$0xff]
          %v1790 = vld [vmem:[#allocation3 + $0x4b8] sm:$0xff]
          %v1791 = vld [vmem:[#allocation3 + $0x4c0] sm:$0xff]
          %v1792 = vld [vmem:[#allocation3 + $0x4c8] sm:$0xff]
          %v1793 = vld [vmem:[#allocation3 + $0x4d0] sm:$0xff]
          %v1794 = vld [vmem:[#allocation3 + $0x4d8] sm:$0xff]
          %v1795 = vld [vmem:[#allocation3 + $0x4e0] sm:$0xff]
          %v1796 = vld [vmem:[#allocation3 + $0x4e8] sm:$0xff]
          %v1797 = vld [vmem:[#allocation3 + $0x4f0] sm:$0xff]
          %v1798 = vld [vmem:[#allocation3 + $0x4f8] sm:$0xff]
          %v1799 = vld [vmem:[#allocation3 + $0x500] sm:$0xff]
          %v1800 = vld [vmem:[#allocation3 + $0x508] sm:$0xff]
          %v1801 = vld [vmem:[#allocation3 + $0x510] sm:$0xff]
          %v1802 = vld [vmem:[#allocation3 + $0x518] sm:$0xff]
          %v1803 = vld [vmem:[#allocation3 + $0x520] sm:$0xff]
          %v1804 = vld [vmem:[#allocation3 + $0x528] sm:$0xff]
          %v1805 = vld [vmem:[#allocation3 + $0x530] sm:$0xff]
          %v1806 = vld [vmem:[#allocation3 + $0x538] sm:$0xff]
          %v1807 = vld [vmem:[#allocation3 + $0x540] sm:$0xff]
          %v1808 = vld [vmem:[#allocation3 + $0x548] sm:$0xff]
          %v1809 = vld [vmem:[#allocation3 + $0x550] sm:$0xff]
          %v1810 = vld [vmem:[#allocation3 + $0x558] sm:$0xff]
          %v1811 = vld [vmem:[#allocation3 + $0x560] sm:$0xff]
          %v1812 = vld [vmem:[#allocation3 + $0x568] sm:$0xff]
          %v1813 = vld [vmem:[#allocation3 + $0x570] sm:$0xff]
          %v1814 = vld [vmem:[#allocation3 + $0x578] sm:$0xff]
          %v1815 = vld [vmem:[#allocation3 + $0x580] sm:$0xff]
          %v1816 = vld [vmem:[#allocation3 + $0x588] sm:$0xff]
          %v1817 = vld [vmem:[#allocation3 + $0x590] sm:$0xff]
          %v1818 = vld [vmem:[#allocation3 + $0x598] sm:$0xff]
          %v1819 = vld [vmem:[#allocation3 + $0x5a0] sm:$0xff]
          %v1820 = vld [vmem:[#allocation3 + $0x5a8] sm:$0xff]
          %v1821 = vld [vmem:[#allocation3 + $0x5b0] sm:$0xff]
          %v1822 = vld [vmem:[#allocation3 + $0x5b8] sm:$0xff]
          %v1823 = vld [vmem:[#allocation3 + $0x5c0] sm:$0xff]
          %v1824 = vld [vmem:[#allocation3 + $0x5c8] sm:$0xff]
          %v1825 = vld [vmem:[#allocation3 + $0x5d0] sm:$0xff]
          %v1826 = vld [vmem:[#allocation3 + $0x5d8] sm:$0xff]
          %v1827 = vld [vmem:[#allocation3 + $0x5e0] sm:$0xff]
          %v1828 = vld [vmem:[#allocation3 + $0x5e8] sm:$0xff]
          %v1829 = vld [vmem:[#allocation3 + $0x5f0] sm:$0xff]
          %v1830 = vld [vmem:[#allocation3 + $0x5f8] sm:$0xff]
          %v1831 = vld [vmem:[#allocation3 + $0x600] sm:$0xff]
          %v1832 = vld [vmem:[#allocation3 + $0x608] sm:$0xff]
          %v1833 = vld [vmem:[#allocation3 + $0x610] sm:$0xff]
          %v1834 = vld [vmem:[#allocation3 + $0x618] sm:$0xff]
          %v1835 = vld [vmem:[#allocation3 + $0x620] sm:$0xff]
          %v1836 = vld [vmem:[#allocation3 + $0x628] sm:$0xff]
          %v1837 = vld [vmem:[#allocation3 + $0x630] sm:$0xff]
          %v1838 = vld [vmem:[#allocation3 + $0x638] sm:$0xff]
          %v1839 = vld [vmem:[#allocation3 + $0x640] sm:$0xff]
          %v1840 = vld [vmem:[#allocation3 + $0x648] sm:$0xff]
          %v1841 = vld [vmem:[#allocation3 + $0x650] sm:$0xff]
          %v1842 = vld [vmem:[#allocation3 + $0x658] sm:$0xff]
          %v1843 = vld [vmem:[#allocation3 + $0x660] sm:$0xff]
          %v1844 = vld [vmem:[#allocation3 + $0x668] sm:$0xff]
          %v1845 = vld [vmem:[#allocation3 + $0x670] sm:$0xff]
          %v1846 = vld [vmem:[#allocation3 + $0x678] sm:$0xff]
          %v1847 = vld [vmem:[#allocation3 + $0x680] sm:$0xff]
          %v1848 = vld [vmem:[#allocation3 + $0x688] sm:$0xff]
          %v1849 = vld [vmem:[#allocation3 + $0x690] sm:$0xff]
          %v1850 = vld [vmem:[#allocation3 + $0x698] sm:$0xff]
          %v1851 = vld [vmem:[#allocation3 + $0x6a0] sm:$0xff]
          %v1852 = vld [vmem:[#allocation3 + $0x6a8] sm:$0xff]
          %v1853 = vld [vmem:[#allocation3 + $0x6b0] sm:$0xff]
          %v1854 = vld [vmem:[#allocation3 + $0x6b8] sm:$0xff]
          %v1855 = vld [vmem:[#allocation3 + $0x6c0] sm:$0xff]
          %v1856 = vld [vmem:[#allocation3 + $0x6c8] sm:$0xff]
          %v1857 = vld [vmem:[#allocation3 + $0x6d0] sm:$0xff]
          %v1858 = vld [vmem:[#allocation3 + $0x6d8] sm:$0xff]
          %v1859 = vld [vmem:[#allocation3 + $0x6e0] sm:$0xff]
          %v1860 = vld [vmem:[#allocation3 + $0x6e8] sm:$0xff]
          %v1861 = vld [vmem:[#allocation3 + $0x6f0] sm:$0xff]
          %v1862 = vld [vmem:[#allocation3 + $0x6f8] sm:$0xff]
          %v1863 = vld [vmem:[#allocation3 + $0x700] sm:$0xff]
          %v1864 = vld [vmem:[#allocation3 + $0x708] sm:$0xff]
          %v1865 = vld [vmem:[#allocation3 + $0x710] sm:$0xff]
          %v1866 = vld [vmem:[#allocation3 + $0x718] sm:$0xff]
          %v1867 = vld [vmem:[#allocation3 + $0x720] sm:$0xff]
          %v1868 = vld [vmem:[#allocation3 + $0x728] sm:$0xff]
          %v1869 = vld [vmem:[#allocation3 + $0x730] sm:$0xff]
          %v1870 = vld [vmem:[#allocation3 + $0x738] sm:$0xff]
          %v1871 = vld [vmem:[#allocation3 + $0x740] sm:$0xff]
          %v1872 = vld [vmem:[#allocation3 + $0x748] sm:$0xff]
          %v1873 = vld [vmem:[#allocation3 + $0x750] sm:$0xff]
          %v1874 = vld [vmem:[#allocation3 + $0x758] sm:$0xff]
          %v1875 = vld [vmem:[#allocation3 + $0x760] sm:$0xff]
          %v1876 = vld [vmem:[#allocation3 + $0x768] sm:$0xff]
          %v1877 = vld [vmem:[#allocation3 + $0x770] sm:$0xff]
          %v1878 = vld [vmem:[#allocation3 + $0x778] sm:$0xff]
          %v1879 = vld [vmem:[#allocation3 + $0x780] sm:$0xff]
          %v1880 = vld [vmem:[#allocation3 + $0x788] sm:$0xff]
          %v1881 = vld [vmem:[#allocation3 + $0x790] sm:$0xff]
          %v1882 = vld [vmem:[#allocation3 + $0x798] sm:$0xff]
          %v1883 = vld [vmem:[#allocation3 + $0x7a0] sm:$0xff]
          %v1884 = vld [vmem:[#allocation3 + $0x7a8] sm:$0xff]
          %v1885 = vld [vmem:[#allocation3 + $0x7b0] sm:$0xff]
          %v1886 = vld [vmem:[#allocation3 + $0x7b8] sm:$0xff]
          %v1887 = vld [vmem:[#allocation3 + $0x7c0] sm:$0xff]
          %v1888 = vld [vmem:[#allocation3 + $0x7c8] sm:$0xff]
          %v1889 = vld [vmem:[#allocation3 + $0x7d0] sm:$0xff]
          %v1890 = vld [vmem:[#allocation3 + $0x7d8] sm:$0xff]
          %v1891 = vld [vmem:[#allocation3 + $0x7e0] sm:$0xff]
          %v1892 = vld [vmem:[#allocation3 + $0x7e8] sm:$0xff]
          %v1893 = vld [vmem:[#allocation3 + $0x7f0] sm:$0xff]
          %v1894 = vld [vmem:[#allocation3 + $0x7f8] sm:$0xff]
          %v1895 = vld [vmem:[%s18] sm:$0xf]
          %v1897 = vperm.slane %v1895, 0
          %v1898 = vperm.slane %v1895, 1
          %v1899 = vperm.slane %v1895, 2
          %v1900 = vperm.slane %v1895, 3
          %1905 = vmatpush.msra.mxu0 %v1699
          %1906 = vmatpush.msra.mxu0 %v1695
          %1907 = vmatpush.msra.mxu0 %v1691
          %1908 = vmatpush.msra.mxu0 %v1687
          %1909 = vmatpush.msra.mxu0 %v1683
          %1910 = vmatpush.msra.mxu0 %v1679
          %1911 = vmatpush.msra.mxu0 %v1675
          %1912 = vmatpush.msra.mxu0 %v1671
          %1913 = vmatpush.msra.mxu0 %v1667
          %1914 = vmatpush.msra.mxu0 %v1663
          %1915 = vmatpush.msra.mxu0 %v1659
          %1916 = vmatpush.msra.mxu0 %v1655
          %1917 = vmatpush.msra.mxu0 %v1651
          %1918 = vmatpush.msra.mxu0 %v1647
          %1919 = vmatpush.msra.mxu0 %v1643
          %1920 = vmatpush.msra.mxu0 %v1639
          %1921 = vmatmul.f32.gmra.mxu0 %v1635
          %v1922 = vpop.f32.mrf.mxu0
          %v1923 = vadd.f32 %v1897, %v1922
          %1924 = vdwg.mxu0
          %1925 = vmatpush.msra.mxu0 %v1763
          %1926 = vmatpush.msra.mxu0 %v1759
          %1927 = vmatpush.msra.mxu0 %v1755
          %1928 = vmatpush.msra.mxu0 %v1751
          %1929 = vmatpush.msra.mxu0 %v1747
          %1930 = vmatpush.msra.mxu0 %v1743
          %1931 = vmatpush.msra.mxu0 %v1739
          %1932 = vmatpush.msra.mxu0 %v1735
          %1933 = vmatpush.msra.mxu0 %v1731
          %1934 = vmatpush.msra.mxu0 %v1727
          %1935 = vmatpush.msra.mxu0 %v1723
          %1936 = vmatpush.msra.mxu0 %v1719
          %1937 = vmatpush.msra.mxu0 %v1715
          %1938 = vmatpush.msra.mxu0 %v1711
          %1939 = vmatpush.msra.mxu0 %v1707
          %1940 = vmatpush.msra.mxu0 %v1703
          %1941 = vmatmul.f32.gmra.mxu0 %v1636
          %v1942 = vpop.f32.mrf.mxu0
          %v1943 = vadd.f32 %v1923, %v1942
          %1944 = vdwg.mxu0
          %1945 = vmatpush.msra.mxu0 %v1827
          %1946 = vmatpush.msra.mxu0 %v1823
          %1947 = vmatpush.msra.mxu0 %v1819
          %1948 = vmatpush.msra.mxu0 %v1815
          %1949 = vmatpush.msra.mxu0 %v1811
          %1950 = vmatpush.msra.mxu0 %v1807
          %1951 = vmatpush.msra.mxu0 %v1803
          %1952 = vmatpush.msra.mxu0 %v1799
          %1953 = vmatpush.msra.mxu0 %v1795
          %1954 = vmatpush.msra.mxu0 %v1791
          %1955 = vmatpush.msra.mxu0 %v1787
          %1956 = vmatpush.msra.mxu0 %v1783
          %1957 = vmatpush.msra.mxu0 %v1779
          %1958 = vmatpush.msra.mxu0 %v1775
          %1959 = vmatpush.msra.mxu0 %v1771
          %1960 = vmatpush.msra.mxu0 %v1767
          %1961 = vmatmul.f32.gmra.mxu0 %v1637
          %v1962 = vpop.f32.mrf.mxu0
          %v1963 = vadd.f32 %v1943, %v1962
          %1964 = vdwg.mxu0
          %1965 = vmatpush.msra.mxu0 %v1891
          %1966 = vmatpush.msra.mxu0 %v1887
          %1967 = vmatpush.msra.mxu0 %v1883
          %1968 = vmatpush.msra.mxu0 %v1879
          %1969 = vmatpush.msra.mxu0 %v1875
          %1970 = vmatpush.msra.mxu0 %v1871
          %1971 = vmatpush.msra.mxu0 %v1867
          %1972 = vmatpush.msra.mxu0 %v1863
          %1973 = vmatpush.msra.mxu0 %v1859
          %1974 = vmatpush.msra.mxu0 %v1855
          %1975 = vmatpush.msra.mxu0 %v1851
          %1976 = vmatpush.msra.mxu0 %v1847
          %1977 = vmatpush.msra.mxu0 %v1843
          %1978 = vmatpush.msra.mxu0 %v1839
          %1979 = vmatpush.msra.mxu0 %v1835
          %1980 = vmatpush.msra.mxu0 %v1831
          %1981 = vmatmul.f32.gmra.mxu0 %v1638
          %v1982 = vpop.f32.mrf.mxu0
          %v1983 = vadd.f32 %v1963, %v1982
          %1984 = vdwg.mxu0
          %1985 = vmatpush.msra.mxu0 %v1700
          %1986 = vmatpush.msra.mxu0 %v1696
          %1987 = vmatpush.msra.mxu0 %v1692
          %1988 = vmatpush.msra.mxu0 %v1688
          %1989 = vmatpush.msra.mxu0 %v1684
          %1990 = vmatpush.msra.mxu0 %v1680
          %1991 = vmatpush.msra.mxu0 %v1676
          %1992 = vmatpush.msra.mxu0 %v1672
          %1993 = vmatpush.msra.mxu0 %v1668
          %1994 = vmatpush.msra.mxu0 %v1664
          %1995 = vmatpush.msra.mxu0 %v1660
          %1996 = vmatpush.msra.mxu0 %v1656
          %1997 = vmatpush.msra.mxu0 %v1652
          %1998 = vmatpush.msra.mxu0 %v1648
          %1999 = vmatpush.msra.mxu0 %v1644
          %2000 = vmatpush.msra.mxu0 %v1640
          %2001 = vmatmul.f32.gmra.mxu0 %v1635
          %v2002 = vpop.f32.mrf.mxu0
          %v2003 = vadd.f32 %v1898, %v2002
          %2004 = vdwg.mxu0
          %2005 = vmatpush.msra.mxu0 %v1764
          %2006 = vmatpush.msra.mxu0 %v1760
          %2007 = vmatpush.msra.mxu0 %v1756
          %2008 = vmatpush.msra.mxu0 %v1752
          %2009 = vmatpush.msra.mxu0 %v1748
          %2010 = vmatpush.msra.mxu0 %v1744
          %2011 = vmatpush.msra.mxu0 %v1740
          %2012 = vmatpush.msra.mxu0 %v1736
          %2013 = vmatpush.msra.mxu0 %v1732
          %2014 = vmatpush.msra.mxu0 %v1728
          %2015 = vmatpush.msra.mxu0 %v1724
          %2016 = vmatpush.msra.mxu0 %v1720
          %2017 = vmatpush.msra.mxu0 %v1716
          %2018 = vmatpush.msra.mxu0 %v1712
          %2019 = vmatpush.msra.mxu0 %v1708
          %2020 = vmatpush.msra.mxu0 %v1704
          %2021 = vmatmul.f32.gmra.mxu0 %v1636
          %v2022 = vpop.f32.mrf.mxu0
          %v2023 = vadd.f32 %v2003, %v2022
          %2024 = vdwg.mxu0
          %2025 = vmatpush.msra.mxu0 %v1828
          %2026 = vmatpush.msra.mxu0 %v1824
          %2027 = vmatpush.msra.mxu0 %v1820
          %2028 = vmatpush.msra.mxu0 %v1816
          %2029 = vmatpush.msra.mxu0 %v1812
          %2030 = vmatpush.msra.mxu0 %v1808
          %2031 = vmatpush.msra.mxu0 %v1804
          %2032 = vmatpush.msra.mxu0 %v1800
          %2033 = vmatpush.msra.mxu0 %v1796
          %2034 = vmatpush.msra.mxu0 %v1792
          %2035 = vmatpush.msra.mxu0 %v1788
          %2036 = vmatpush.msra.mxu0 %v1784
          %2037 = vmatpush.msra.mxu0 %v1780
          %2038 = vmatpush.msra.mxu0 %v1776
          %2039 = vmatpush.msra.mxu0 %v1772
          %2040 = vmatpush.msra.mxu0 %v1768
          %2041 = vmatmul.f32.gmra.mxu0 %v1637
          %v2042 = vpop.f32.mrf.mxu0
          %v2043 = vadd.f32 %v2023, %v2042
          %2044 = vdwg.mxu0
          %2045 = vmatpush.msra.mxu0 %v1892
          %2046 = vmatpush.msra.mxu0 %v1888
          %2047 = vmatpush.msra.mxu0 %v1884
          %2048 = vmatpush.msra.mxu0 %v1880
          %2049 = vmatpush.msra.mxu0 %v1876
          %2050 = vmatpush.msra.mxu0 %v1872
          %2051 = vmatpush.msra.mxu0 %v1868
          %2052 = vmatpush.msra.mxu0 %v1864
          %2053 = vmatpush.msra.mxu0 %v1860
          %2054 = vmatpush.msra.mxu0 %v1856
          %2055 = vmatpush.msra.mxu0 %v1852
          %2056 = vmatpush.msra.mxu0 %v1848
          %2057 = vmatpush.msra.mxu0 %v1844
          %2058 = vmatpush.msra.mxu0 %v1840
          %2059 = vmatpush.msra.mxu0 %v1836
          %2060 = vmatpush.msra.mxu0 %v1832
          %2061 = vmatmul.f32.gmra.mxu0 %v1638
          %v2062 = vpop.f32.mrf.mxu0
          %v2063 = vadd.f32 %v2043, %v2062
          %2064 = vdwg.mxu0
          %2065 = vmatpush.msra.mxu0 %v1701
          %2066 = vmatpush.msra.mxu0 %v1697
          %2067 = vmatpush.msra.mxu0 %v1693
          %2068 = vmatpush.msra.mxu0 %v1689
          %2069 = vmatpush.msra.mxu0 %v1685
          %2070 = vmatpush.msra.mxu0 %v1681
          %2071 = vmatpush.msra.mxu0 %v1677
          %2072 = vmatpush.msra.mxu0 %v1673
          %2073 = vmatpush.msra.mxu0 %v1669
          %2074 = vmatpush.msra.mxu0 %v1665
          %2075 = vmatpush.msra.mxu0 %v1661
          %2076 = vmatpush.msra.mxu0 %v1657
          %2077 = vmatpush.msra.mxu0 %v1653
          %2078 = vmatpush.msra.mxu0 %v1649
          %2079 = vmatpush.msra.mxu0 %v1645
          %2080 = vmatpush.msra.mxu0 %v1641
          %2081 = vmatmul.f32.gmra.mxu0 %v1635
          %v2082 = vpop.f32.mrf.mxu0
          %v2083 = vadd.f32 %v1899, %v2082
          %2084 = vdwg.mxu0
          %2085 = vmatpush.msra.mxu0 %v1765
          %2086 = vmatpush.msra.mxu0 %v1761
          %2087 = vmatpush.msra.mxu0 %v1757
          %2088 = vmatpush.msra.mxu0 %v1753
          %2089 = vmatpush.msra.mxu0 %v1749
          %2090 = vmatpush.msra.mxu0 %v1745
          %2091 = vmatpush.msra.mxu0 %v1741
          %2092 = vmatpush.msra.mxu0 %v1737
          %2093 = vmatpush.msra.mxu0 %v1733
          %2094 = vmatpush.msra.mxu0 %v1729
          %2095 = vmatpush.msra.mxu0 %v1725
          %2096 = vmatpush.msra.mxu0 %v1721
          %2097 = vmatpush.msra.mxu0 %v1717
          %2098 = vmatpush.msra.mxu0 %v1713
          %2099 = vmatpush.msra.mxu0 %v1709
          %2100 = vmatpush.msra.mxu0 %v1705
          %2101 = vmatmul.f32.gmra.mxu0 %v1636
          %v2102 = vpop.f32.mrf.mxu0
          %v2103 = vadd.f32 %v2083, %v2102
          %2104 = vdwg.mxu0
          %2105 = vmatpush.msra.mxu0 %v1829
          %2106 = vmatpush.msra.mxu0 %v1825
          %2107 = vmatpush.msra.mxu0 %v1821
          %2108 = vmatpush.msra.mxu0 %v1817
          %2109 = vmatpush.msra.mxu0 %v1813
          %2110 = vmatpush.msra.mxu0 %v1809
          %2111 = vmatpush.msra.mxu0 %v1805
          %2112 = vmatpush.msra.mxu0 %v1801
          %2113 = vmatpush.msra.mxu0 %v1797
          %2114 = vmatpush.msra.mxu0 %v1793
          %2115 = vmatpush.msra.mxu0 %v1789
          %2116 = vmatpush.msra.mxu0 %v1785
          %2117 = vmatpush.msra.mxu0 %v1781
          %2118 = vmatpush.msra.mxu0 %v1777
          %2119 = vmatpush.msra.mxu0 %v1773
          %2120 = vmatpush.msra.mxu0 %v1769
          %2121 = vmatmul.f32.gmra.mxu0 %v1637
          %v2122 = vpop.f32.mrf.mxu0
          %v2123 = vadd.f32 %v2103, %v2122
          %2124 = vdwg.mxu0
          %2125 = vmatpush.msra.mxu0 %v1893
          %2126 = vmatpush.msra.mxu0 %v1889
          %2127 = vmatpush.msra.mxu0 %v1885
          %2128 = vmatpush.msra.mxu0 %v1881
          %2129 = vmatpush.msra.mxu0 %v1877
          %2130 = vmatpush.msra.mxu0 %v1873
          %2131 = vmatpush.msra.mxu0 %v1869
          %2132 = vmatpush.msra.mxu0 %v1865
          %2133 = vmatpush.msra.mxu0 %v1861
          %2134 = vmatpush.msra.mxu0 %v1857
          %2135 = vmatpush.msra.mxu0 %v1853
          %2136 = vmatpush.msra.mxu0 %v1849
          %2137 = vmatpush.msra.mxu0 %v1845
          %2138 = vmatpush.msra.mxu0 %v1841
          %2139 = vmatpush.msra.mxu0 %v1837
          %2140 = vmatpush.msra.mxu0 %v1833
          %2141 = vmatmul.f32.gmra.mxu0 %v1638
          %v2142 = vpop.f32.mrf.mxu0
          %v2143 = vadd.f32 %v2123, %v2142
          %2144 = vdwg.mxu0
          %2145 = vmatpush.msra.mxu0 %v1702
          %2146 = vmatpush.msra.mxu0 %v1698
          %2147 = vmatpush.msra.mxu0 %v1694
          %2148 = vmatpush.msra.mxu0 %v1690
          %2149 = vmatpush.msra.mxu0 %v1686
          %2150 = vmatpush.msra.mxu0 %v1682
          %2151 = vmatpush.msra.mxu0 %v1678
          %2152 = vmatpush.msra.mxu0 %v1674
          %2153 = vmatpush.msra.mxu0 %v1670
          %2154 = vmatpush.msra.mxu0 %v1666
          %2155 = vmatpush.msra.mxu0 %v1662
          %2156 = vmatpush.msra.mxu0 %v1658
          %2157 = vmatpush.msra.mxu0 %v1654
          %2158 = vmatpush.msra.mxu0 %v1650
          %2159 = vmatpush.msra.mxu0 %v1646
          %2160 = vmatpush.msra.mxu0 %v1642
          %2161 = vmatmul.f32.gmra.mxu0 %v1635
          %v2162 = vpop.f32.mrf.mxu0
          %v2163 = vadd.f32 %v1900, %v2162
          %2164 = vdwg.mxu0
          %2165 = vmatpush.msra.mxu0 %v1766
          %2166 = vmatpush.msra.mxu0 %v1762
          %2167 = vmatpush.msra.mxu0 %v1758
          %2168 = vmatpush.msra.mxu0 %v1754
          %2169 = vmatpush.msra.mxu0 %v1750
          %2170 = vmatpush.msra.mxu0 %v1746
          %2171 = vmatpush.msra.mxu0 %v1742
          %2172 = vmatpush.msra.mxu0 %v1738
          %2173 = vmatpush.msra.mxu0 %v1734
          %2174 = vmatpush.msra.mxu0 %v1730
          %2175 = vmatpush.msra.mxu0 %v1726
          %2176 = vmatpush.msra.mxu0 %v1722
          %2177 = vmatpush.msra.mxu0 %v1718
          %2178 = vmatpush.msra.mxu0 %v1714
          %2179 = vmatpush.msra.mxu0 %v1710
          %2180 = vmatpush.msra.mxu0 %v1706
          %2181 = vmatmul.f32.gmra.mxu0 %v1636
          %v2182 = vpop.f32.mrf.mxu0
          %v2183 = vadd.f32 %v2163, %v2182
          %2184 = vdwg.mxu0
          %2185 = vmatpush.msra.mxu0 %v1830
          %2186 = vmatpush.msra.mxu0 %v1826
          %2187 = vmatpush.msra.mxu0 %v1822
          %2188 = vmatpush.msra.mxu0 %v1818
          %2189 = vmatpush.msra.mxu0 %v1814
          %2190 = vmatpush.msra.mxu0 %v1810
          %2191 = vmatpush.msra.mxu0 %v1806
          %2192 = vmatpush.msra.mxu0 %v1802
          %2193 = vmatpush.msra.mxu0 %v1798
          %2194 = vmatpush.msra.mxu0 %v1794
          %2195 = vmatpush.msra.mxu0 %v1790
          %2196 = vmatpush.msra.mxu0 %v1786
          %2197 = vmatpush.msra.mxu0 %v1782
          %2198 = vmatpush.msra.mxu0 %v1778
          %2199 = vmatpush.msra.mxu0 %v1774
          %2200 = vmatpush.msra.mxu0 %v1770
          %2201 = vmatmul.f32.gmra.mxu0 %v1637
          %v2202 = vpop.f32.mrf.mxu0
          %v2203 = vadd.f32 %v2183, %v2202
          %2204 = vdwg.mxu0
          %2205 = vmatpush.msra.mxu0 %v1894
          %2206 = vmatpush.msra.mxu0 %v1890
          %2207 = vmatpush.msra.mxu0 %v1886
          %2208 = vmatpush.msra.mxu0 %v1882
          %2209 = vmatpush.msra.mxu0 %v1878
          %2210 = vmatpush.msra.mxu0 %v1874
          %2211 = vmatpush.msra.mxu0 %v1870
          %2212 = vmatpush.msra.mxu0 %v1866
          %2213 = vmatpush.msra.mxu0 %v1862
          %2214 = vmatpush.msra.mxu0 %v1858
          %2215 = vmatpush.msra.mxu0 %v1854
          %2216 = vmatpush.msra.mxu0 %v1850
          %2217 = vmatpush.msra.mxu0 %v1846
          %2218 = vmatpush.msra.mxu0 %v1842
          %2219 = vmatpush.msra.mxu0 %v1838
          %2220 = vmatpush.msra.mxu0 %v1834
          %2221 = vmatmul.f32.gmra.mxu0 %v1638
          %v2222 = vpop.f32.mrf.mxu0
          %v2223 = vadd.f32 %v2203, %v2222
          %2224 = vdwg.mxu0
          %v2225 = vmax.f32 %v1983, 0.0
          %v2226 = vmax.f32 %v2063, 0.0
          %v2227 = vmax.f32 %v2143, 0.0
          %v2228 = vmax.f32 %v2223, 0.0
          %v2229 = vld [vmem:[#allocation6] sm:$0xff]
          %v2230 = vld [vmem:[#allocation6 + $0x8] sm:$0xff]
          %v2231 = vld [vmem:[#allocation6 + $0x10] sm:$0xff]
          %v2232 = vld [vmem:[#allocation6 + $0x18] sm:$0xff]
          %v2233 = vld [vmem:[#allocation6 + $0x20] sm:$0xff]
          %v2234 = vld [vmem:[#allocation6 + $0x28] sm:$0xff]
          %v2235 = vld [vmem:[#allocation6 + $0x30] sm:$0xff]
          %v2236 = vld [vmem:[#allocation6 + $0x38] sm:$0xff]
          %v2237 = vld [vmem:[#allocation6 + $0x40] sm:$0xff]
          %v2238 = vld [vmem:[#allocation6 + $0x48] sm:$0xff]
          %v2239 = vld [vmem:[#allocation6 + $0x50] sm:$0xff]
          %v2240 = vld [vmem:[#allocation6 + $0x58] sm:$0xff]
          %v2241 = vld [vmem:[#allocation6 + $0x60] sm:$0xff]
          %v2242 = vld [vmem:[#allocation6 + $0x68] sm:$0xff]
          %v2243 = vld [vmem:[#allocation6 + $0x70] sm:$0xff]
          %v2244 = vld [vmem:[#allocation6 + $0x78] sm:$0xff]
          %v2245 = vld [vmem:[#allocation6 + $0x80] sm:$0xff]
          %v2246 = vld [vmem:[#allocation6 + $0x88] sm:$0xff]
          %v2247 = vld [vmem:[#allocation6 + $0x90] sm:$0xff]
          %v2248 = vld [vmem:[#allocation6 + $0x98] sm:$0xff]
          %v2249 = vld [vmem:[#allocation6 + $0xa0] sm:$0xff]
          %v2250 = vld [vmem:[#allocation6 + $0xa8] sm:$0xff]
          %v2251 = vld [vmem:[#allocation6 + $0xb0] sm:$0xff]
          %v2252 = vld [vmem:[#allocation6 + $0xb8] sm:$0xff]
          %v2253 = vld [vmem:[#allocation6 + $0xc0] sm:$0xff]
          %v2254 = vld [vmem:[#allocation6 + $0xc8] sm:$0xff]
          %v2255 = vld [vmem:[#allocation6 + $0xd0] sm:$0xff]
          %v2256 = vld [vmem:[#allocation6 + $0xd8] sm:$0xff]
          %v2257 = vld [vmem:[#allocation6 + $0xe0] sm:$0xff]
          %v2258 = vld [vmem:[#allocation6 + $0xe8] sm:$0xff]
          %v2259 = vld [vmem:[#allocation6 + $0xf0] sm:$0xff]
          %v2260 = vld [vmem:[#allocation6 + $0xf8] sm:$0xff]
          %v2261 = vld [vmem:[#allocation6 + $0x100] sm:$0xff]
          %v2262 = vld [vmem:[#allocation6 + $0x108] sm:$0xff]
          %v2263 = vld [vmem:[#allocation6 + $0x110] sm:$0xff]
          %v2264 = vld [vmem:[#allocation6 + $0x118] sm:$0xff]
          %v2265 = vld [vmem:[#allocation6 + $0x120] sm:$0xff]
          %v2266 = vld [vmem:[#allocation6 + $0x128] sm:$0xff]
          %v2267 = vld [vmem:[#allocation6 + $0x130] sm:$0xff]
          %v2268 = vld [vmem:[#allocation6 + $0x138] sm:$0xff]
          %v2269 = vld [vmem:[#allocation6 + $0x140] sm:$0xff]
          %v2270 = vld [vmem:[#allocation6 + $0x148] sm:$0xff]
          %v2271 = vld [vmem:[#allocation6 + $0x150] sm:$0xff]
          %v2272 = vld [vmem:[#allocation6 + $0x158] sm:$0xff]
          %v2273 = vld [vmem:[#allocation6 + $0x160] sm:$0xff]
          %v2274 = vld [vmem:[#allocation6 + $0x168] sm:$0xff]
          %v2275 = vld [vmem:[#allocation6 + $0x170] sm:$0xff]
          %v2276 = vld [vmem:[#allocation6 + $0x178] sm:$0xff]
          %v2277 = vld [vmem:[#allocation6 + $0x180] sm:$0xff]
          %v2278 = vld [vmem:[#allocation6 + $0x188] sm:$0xff]
          %v2279 = vld [vmem:[#allocation6 + $0x190] sm:$0xff]
          %v2280 = vld [vmem:[#allocation6 + $0x198] sm:$0xff]
          %v2281 = vld [vmem:[#allocation6 + $0x1a0] sm:$0xff]
          %v2282 = vld [vmem:[#allocation6 + $0x1a8] sm:$0xff]
          %v2283 = vld [vmem:[#allocation6 + $0x1b0] sm:$0xff]
          %v2284 = vld [vmem:[#allocation6 + $0x1b8] sm:$0xff]
          %v2285 = vld [vmem:[#allocation6 + $0x1c0] sm:$0xff]
          %v2286 = vld [vmem:[#allocation6 + $0x1c8] sm:$0xff]
          %v2287 = vld [vmem:[#allocation6 + $0x1d0] sm:$0xff]
          %v2288 = vld [vmem:[#allocation6 + $0x1d8] sm:$0xff]
          %v2289 = vld [vmem:[#allocation6 + $0x1e0] sm:$0xff]
          %v2290 = vld [vmem:[#allocation6 + $0x1e8] sm:$0xff]
          %v2291 = vld [vmem:[#allocation6 + $0x1f0] sm:$0xff]
          %v2292 = vld [vmem:[#allocation6 + $0x1f8] sm:$0xff]
          %v2293 = vld [vmem:[%s20] sm:$0x1]
          %v2295 = vperm.slane %v2293, 0
          %2297 = vmatpush.msra.mxu0 %v2244
          %2298 = vmatpush.msra.mxu0 %v2243
          %2299 = vmatpush.msra.mxu0 %v2242
          %2300 = vmatpush.msra.mxu0 %v2241
          %2301 = vmatpush.msra.mxu0 %v2240
          %2302 = vmatpush.msra.mxu0 %v2239
          %2303 = vmatpush.msra.mxu0 %v2238
          %2304 = vmatpush.msra.mxu0 %v2237
          %2305 = vmatpush.msra.mxu0 %v2236
          %2306 = vmatpush.msra.mxu0 %v2235
          %2307 = vmatpush.msra.mxu0 %v2234
          %2308 = vmatpush.msra.mxu0 %v2233
          %2309 = vmatpush.msra.mxu0 %v2232
          %2310 = vmatpush.msra.mxu0 %v2231
          %2311 = vmatpush.msra.mxu0 %v2230
          %2312 = vmatpush.msra.mxu0 %v2229
          %2313 = vmatmul.f32.gmra.mxu0 %v2225
          %v2314 = vpop.f32.mrf.mxu0
          %v2315 = vadd.f32 %v2295, %v2314
          %2316 = vdwg.mxu0
          %2317 = vmatpush.msra.mxu0 %v2260
          %2318 = vmatpush.msra.mxu0 %v2259
          %2319 = vmatpush.msra.mxu0 %v2258
          %2320 = vmatpush.msra.mxu0 %v2257
          %2321 = vmatpush.msra.mxu0 %v2256
          %2322 = vmatpush.msra.mxu0 %v2255
          %2323 = vmatpush.msra.mxu0 %v2254
          %2324 = vmatpush.msra.mxu0 %v2253
          %2325 = vmatpush.msra.mxu0 %v2252
          %2326 = vmatpush.msra.mxu0 %v2251
          %2327 = vmatpush.msra.mxu0 %v2250
          %2328 = vmatpush.msra.mxu0 %v2249
          %2329 = vmatpush.msra.mxu0 %v2248
          %2330 = vmatpush.msra.mxu0 %v2247
          %2331 = vmatpush.msra.mxu0 %v2246
          %2332 = vmatpush.msra.mxu0 %v2245
          %2333 = vmatmul.f32.gmra.mxu0 %v2226
          %v2334 = vpop.f32.mrf.mxu0
          %v2335 = vadd.f32 %v2315, %v2334
          %2336 = vdwg.mxu0
          %2337 = vmatpush.msra.mxu0 %v2276
          %2338 = vmatpush.msra.mxu0 %v2275
          %2339 = vmatpush.msra.mxu0 %v2274
          %2340 = vmatpush.msra.mxu0 %v2273
          %2341 = vmatpush.msra.mxu0 %v2272
          %2342 = vmatpush.msra.mxu0 %v2271
          %2343 = vmatpush.msra.mxu0 %v2270
          %2344 = vmatpush.msra.mxu0 %v2269
          %2345 = vmatpush.msra.mxu0 %v2268
          %2346 = vmatpush.msra.mxu0 %v2267
          %2347 = vmatpush.msra.mxu0 %v2266
          %2348 = vmatpush.msra.mxu0 %v2265
          %2349 = vmatpush.msra.mxu0 %v2264
          %2350 = vmatpush.msra.mxu0 %v2263
          %2351 = vmatpush.msra.mxu0 %v2262
          %2352 = vmatpush.msra.mxu0 %v2261
          %2353 = vmatmul.f32.gmra.mxu0 %v2227
          %v2354 = vpop.f32.mrf.mxu0
          %v2355 = vadd.f32 %v2335, %v2354
          %2356 = vdwg.mxu0
          %2357 = vmatpush.msra.mxu0 %v2292
          %2358 = vmatpush.msra.mxu0 %v2291
          %2359 = vmatpush.msra.mxu0 %v2290
          %2360 = vmatpush.msra.mxu0 %v2289
          %2361 = vmatpush.msra.mxu0 %v2288
          %2362 = vmatpush.msra.mxu0 %v2287
          %2363 = vmatpush.msra.mxu0 %v2286
          %2364 = vmatpush.msra.mxu0 %v2285
          %2365 = vmatpush.msra.mxu0 %v2284
          %2366 = vmatpush.msra.mxu0 %v2283
          %2367 = vmatpush.msra.mxu0 %v2282
          %2368 = vmatpush.msra.mxu0 %v2281
          %2369 = vmatpush.msra.mxu0 %v2280
          %2370 = vmatpush.msra.mxu0 %v2279
          %2371 = vmatpush.msra.mxu0 %v2278
          %2372 = vmatpush.msra.mxu0 %v2277
          %2373 = vmatmul.f32.gmra.mxu0 %v2228
          %v2374 = vpop.f32.mrf.mxu0
          %v2375 = vadd.f32 %v2355, %v2374
          %2376 = vdwg.mxu0
          %2377 = vst [vmem:[#allocation8] sm:$0x3] %v2375
        $region120: #{bert_imdb_forward.1} parent=103 // pred_fallthru
          _
        // Predicated region
        $region121: #{bert_imdb_forward.1} parent=103 // pred_check
          %p2378 = pneg %p549
        $region122: #{bert_imdb_forward.1} parent=103 // pred_check_branch
          %2380 = sbr.rel (%p2378) target = $region124
        $region123: #{bert_imdb_forward.1} parent=103 // pred_region
          %2382 = vsyncadd [#allocation5], 0
          %s2384 = sshll.u32 [#allocation8], 4
          %s2385 = int_to_ptr.vmem [resolvable:$true] %s2384
          %s2386 = sshll.u32 %s21, 4
          %s2387 = int_to_ptr.hbm [resolvable:$true] %s2386
          %2389 = dma.vmem_to_hbm [thread:$0]  %s2385, 32, %s2387, [#allocation5]
        $region124: #{bert_imdb_forward.1} parent=103 // pred_fallthru
          _
        // Predicated region
        $region125: #{bert_imdb_forward.1} parent=103 // pred_check
          %p2390 = pneg %p549
        $region126: #{bert_imdb_forward.1} parent=103 // pred_check_branch
          %2392 = sbr.rel (%p2390) target = $region128
        $region127: #{bert_imdb_forward.1} parent=103 // pred_region
          %2394 = dma.done [#allocation5], 32
        $region128: #{bert_imdb_forward.1} parent=103 // pred_fallthru
          _
      $region104: #{bert_imdb_forward.1} parent=5 // pred_fallthru
        _
      %p2395 = scmp.le.s32.totalorder 2, %s30
      // Predicated region
      $region129: #{bert_imdb_forward.1} parent=5 // pred_check
        %p2396 = pneg %p2395
      $region130: #{bert_imdb_forward.1} parent=5 // pred_check_branch
        %2398 = sbr.rel (%p2396) target = $region132
      $region131: #{bert_imdb_forward.1} parent=5 // pred_region
        %s2399 = ssub.s32 %s30, 2
      $region132: #{bert_imdb_forward.1} parent=5 // pred_fallthru
        _
    $region6: #{bert_imdb_forward.1} parent=1 // loop_footer
      %s34 = sadd.s32 1, %s30
    $region7: #{bert_imdb_forward.1} parent=1 // loop_footer_branch
      %29 = sbr.rel target = $region3
    $region8: #{bert_imdb_forward.1} parent=1 // loop_exit
      _
    %2400 = vsyncpa [#allocation4], 1
    %s2401 = scalar_lea.sflag [#allocation4], 1
    %2402 = vsyncpa %s2401, 1
    %2403 = vsyncpa [#allocation7], 1
    %2404 = vsyncpa [#allocation5], 1
    %s2405 = scalar_lea.sflag [#allocation5], 1
    %2406 = vsyncpa %s2405, 1

</llo_original>
